<compile_context>
chip_gen: v7x
topology: tpu7x:2x2x1
jax: 0.10.0
libtpu: 0.0.40
codegen_flags: <defaults>
</compile_context>

<pallas_src>
import jax
import jax.numpy as jnp
from jax.experimental import pallas as pl
from jax.experimental.pallas import tpu as pltpu


LANE = 128
BF16_SUBLANE = 16  # bf16 packs 16 rows per (sublane-pair) vreg tile


def _round_up(n, m):
    return ((n + m - 1) // m) * m


def _cdiv(a, b):
    return (a + b - 1) // b


def _linear(h, w_ref, b_ref, relu):
    # MXU matmul in bf16 with f32 accumulation; bias + ReLU in f32 on the VPU.
    y = jnp.dot(h.astype(w_ref.dtype), w_ref[...],
                preferred_element_type=jnp.float32) + b_ref[...]
    if relu:
        y = jnp.maximum(y, 0.0)
    return y


def ae_forward_kernel(
    x_ref,
    w1_ref, b1_ref, w2_ref, b2_ref, w3_ref, b3_ref, wz_ref, bz_ref,
    w4_ref, b4_ref, w5_ref, b5_ref, w6_ref, b6_ref, wx_ref, bx_ref,
    xbar_ref, h1_ref, h2_ref, h3_ref, z_ref,
):
    # Encoder — store each intermediate the moment it exists (small live set).
    h1 = _linear(x_ref[...], w1_ref, b1_ref, relu=True).astype(h1_ref.dtype)
    h1_ref[...] = h1
    h2 = _linear(h1, w2_ref, b2_ref, relu=True).astype(h2_ref.dtype)
    h2_ref[...] = h2
    h3 = _linear(h2, w3_ref, b3_ref, relu=True).astype(h3_ref.dtype)
    h3_ref[...] = h3
    z = _linear(h3, wz_ref, bz_ref, relu=False).astype(z_ref.dtype)
    z_ref[...] = z

    # Decoder.
    d1 = _linear(z, w4_ref, b4_ref, relu=True)
    d2 = _linear(d1, w5_ref, b5_ref, relu=True)
    d3 = _linear(d2, w6_ref, b6_ref, relu=True)
    x_bar = _linear(d3, wx_ref, bx_ref, relu=False)
    xbar_ref[...] = x_bar.astype(xbar_ref.dtype)


def prepare_params(params):
    """Pad every weight to (round_up(in,128), round_up(out,128)) bf16 and every
    bias to (1, round_up(out,128)) f32.  Call once and reuse across forward
    calls (the padding/cast is pure per-call overhead otherwise).

    params: 8 (W, b) tuples in encoder-then-decoder order; W is (in, out)
    (already transposed from the PyTorch (out, in) layout), b is (out,) or
    (1, out)."""
    in_dims = tuple(int(w.shape[0]) for w, _ in params)
    out_dims = tuple(int(w.shape[1]) for w, _ in params)
    in_p = tuple(_round_up(d, LANE) for d in in_dims)
    out_p = tuple(_round_up(d, LANE) for d in out_dims)
    flat = []
    for li, (w, b) in enumerate(params):
        b = jnp.reshape(b, (1, -1))
        wp = (jnp.zeros((in_p[li], out_p[li]), jnp.bfloat16)
              .at[: w.shape[0], : w.shape[1]].set(w.astype(jnp.bfloat16)))
        bp = (jnp.zeros((1, out_p[li]), jnp.float32)
              .at[:, : b.shape[1]].set(b.astype(jnp.float32)))
        flat += [wp, bp]
    return {"flat": tuple(flat), "in_dims": in_dims, "out_dims": out_dims,
            "in_p": in_p, "out_p": out_p}


def _vmem_limit_bytes():
    # ~75% of physical VMEM (~96 MiB on v5e/v6e, ~48 MiB per core on v7x),
    # capped at 96 MiB in case the query reports per-chip rather than per-core.
    # TODO(synk): confirm vmem_capacity_bytes is per-TensorCore on v7x.
    try:
        cap = int(pltpu.get_tpu_info().vmem_capacity_bytes)
    except Exception:
        cap = 64 << 20
    return min(cap * 3 // 4, 96 << 20)


def _choose_batch_tile(batch, batch_tile, in_p0, act_cols_p, out_cols_p,
                       weight_bytes, out_itemsize, vmem_limit):
    """Pick a batch tile that fits the per-generation VMEM budget and splits
    the batch as evenly as possible (padding waste < one tile)."""
    per_row = (2 * in_p0 * 2                    # double-buffered bf16 input
               + 2 * out_cols_p * out_itemsize  # double-buffered output tiles
               + 4 * act_cols_p)                # f32 intermediates in the body
    avail = vmem_limit - weight_bytes - (4 << 20)  # headroom
    if avail <= per_row * BF16_SUBLANE:
        max_tb = BF16_SUBLANE
    else:
        max_tb = (avail // per_row) // BF16_SUBLANE * BF16_SUBLANE
    cap = max(BF16_SUBLANE, min(batch_tile, max_tb))
    n_tiles = max(1, _cdiv(batch, cap))
    tb = _round_up(_cdiv(batch, n_tiles), BF16_SUBLANE)
    return tb, n_tiles


def ae_forward(x, params=None, *, prepared=None, batch_tile=512,
               out_dtype=jnp.bfloat16):
    """AE forward.  Returns (x_bar, enc_h1, enc_h2, enc_h3, z), each in
    `out_dtype` (default bf16 to halve HBM writeback; pass jnp.float32 for the
    exact PyTorch output dtype)."""
    if prepared is None:
        assert params is not None, "need params or prepared"
        prepared = prepare_params(params)
    flat_params = prepared["flat"]
    in_dims, out_dims = prepared["in_dims"], prepared["out_dims"]
    in_p, out_p = prepared["in_p"], prepared["out_p"]

    batch, n_input = x.shape
    assert in_dims[0] == n_input

    out_dtype = jnp.dtype(out_dtype)
    out_layers = (7, 0, 1, 2, 3)  # x_bar, enc_h1, enc_h2, enc_h3, z
    out_dims_p = tuple(out_p[l] for l in out_layers)

    # --- per-generation batch-tile selection (VMEM budget + even split) ---
    vmem_limit = _vmem_limit_bytes()
    weight_bytes = sum(int(p.size) * p.dtype.itemsize for p in flat_params)
    tb, n_tiles = _choose_batch_tile(
        batch, batch_tile, in_p[0], sum(out_p), sum(out_dims_p),
        weight_bytes, out_dtype.itemsize, vmem_limit)
    batch_p = tb * n_tiles

    # bf16 input (the bf16 cast happened inside the kernel anyway).
    x_p = (jnp.zeros((batch_p, in_p[0]), jnp.bfloat16)
           .at[:batch, :n_input].set(x.astype(jnp.bfloat16)))

    x_spec = pl.BlockSpec((tb, in_p[0]), lambda i: (i, 0))
    out_shapes = tuple(jax.ShapeDtypeStruct((batch_p, d), out_dtype)
                       for d in out_dims_p)
    out_specs = tuple(pl.BlockSpec((tb, d), lambda i: (i, 0))
                      for d in out_dims_p)

    flops = int(2 * batch_p * sum(in_p[l] * out_p[l] for l in range(8)))
    bytes_accessed = int(
        x_p.size * x_p.dtype.itemsize
        + weight_bytes
        + sum(batch_p * d * out_dtype.itemsize for d in out_dims_p))
    cost = pl.CostEstimate(flops=flops, transcendentals=0,
                           bytes_accessed=bytes_accessed)

    def build(weight_mode):
        def resident(p):
            # Constant index_map -> DMA'd once, resident across grid steps.
            if weight_mode is None:
                return pl.BlockSpec(p.shape, lambda i: (0, 0))
            return pl.BlockSpec(p.shape, lambda i: (0, 0),
                                pipeline_mode=weight_mode)
        in_specs = [x_spec] + [resident(p) for p in flat_params]
        return pl.pallas_call(
            ae_forward_kernel,
            grid=(n_tiles,),
            in_specs=in_specs,
            out_specs=out_specs,
            out_shape=out_shapes,
            compiler_params=pltpu.CompilerParams(
                dimension_semantics=("parallel",),
                vmem_limit_bytes=vmem_limit),
            cost_estimate=cost,
        )

    try:
        # Single-buffer the never-refetched resident weights.
        outs = build(pl.Buffered(1))(x_p, *flat_params)
    except Exception:
        outs = build(None)(x_p, *flat_params)

    xbar_p, h1_p, h2_p, h3_p, z_p = outs
    # Slice away batch / lane padding.
    return (
        xbar_p[:batch, :out_dims[7]],
        h1_p[:batch, :out_dims[0]],
        h2_p[:batch, :out_dims[1]],
        h3_p[:batch, :out_dims[2]],
        z_p[:batch, :out_dims[3]],
    )


# ----------------------------- references / test -----------------------------

def init_linear(key, fan_in, fan_out):
    """Deterministic init mimicking torch.nn.Linear (uniform +-1/sqrt(fan_in)).
    Returns W in (in, out) layout plus bias as (1, out)."""
    kw, kb = jax.random.split(key)
    bound = 1.0 / jnp.sqrt(jnp.asarray(fan_in, jnp.float32))
    w = jax.random.uniform(kw, (fan_in, fan_out), jnp.float32, -bound, bound)
    b = jax.random.uniform(kb, (1, fan_out), jnp.float32, -bound, bound)
    return w, b


def _ae_ref_chain(x, params, lin):
    (w1, b1), (w2, b2), (w3, b3), (wz, bz), (w4, b4), (w5, b5), (w6, b6), (wx, bx) = params
    h1 = lin(x, w1, b1, True)
    h2 = lin(h1, w2, b2, True)
    h3 = lin(h2, w3, b3, True)
    z = lin(h3, wz, bz, False)
    d1 = lin(z, w4, b4, True)
    d2 = lin(d1, w5, b5, True)
    d3 = lin(d2, w6, b6, True)
    x_bar = lin(d3, wx, bx, False)
    return x_bar, h1, h2, h3, z


def ae_reference_f32(x, params):
    def lin(h, w, b, relu):
        y = h @ w + jnp.reshape(b, (1, -1))
        return jnp.maximum(y, 0.0) if relu else y
    return _ae_ref_chain(x, params, lin)


def ae_reference_kernel_precision(x, params, out_dtype=jnp.bfloat16):
    # Mimics the kernel: bf16 matmul inputs, f32 accumulation/bias/ReLU,
    # outputs rounded to out_dtype.
    def lin(h, w, b, relu):
        y = jnp.dot(h.astype(jnp.bfloat16), w.astype(jnp.bfloat16),
                    preferred_element_type=jnp.float32) + jnp.reshape(b, (1, -1))
        return jnp.maximum(y, 0.0) if relu else y
    outs = _ae_ref_chain(x, params, lin)
    return tuple(o.astype(out_dtype).astype(jnp.float32) for o in outs)


if __name__ == "__main__":
    # Small AE config: n_input=32, enc=(64,32,16), n_z=8, dec=(16,32,64)
    batch = 8
    n_input, n_enc_1, n_enc_2, n_enc_3 = 32, 64, 32, 16
    n_z, n_dec_1, n_dec_2, n_dec_3 = 8, 16, 32, 64

    key = jax.random.PRNGKey(0)
    keys = jax.random.split(key, 9)

    layer_dims = [
        (n_input, n_enc_1), (n_enc_1, n_enc_2), (n_enc_2, n_enc_3),
        (n_enc_3, n_z),
        (n_z, n_dec_1), (n_dec_1, n_dec_2), (n_dec_2, n_dec_3),
        (n_dec_3, n_input),
    ]
    params = [init_linear(keys[i], fi, fo) for i, (fi, fo) in enumerate(layer_dims)]
    x = jax.random.normal(keys[8], (batch, n_input), jnp.float32)

    prepared = prepare_params(params)           # weight pad/cast hoisted once
    outs = ae_forward(x, prepared=prepared)     # default out_dtype = bf16
    outs = jax.block_until_ready(outs)
    outs_f32 = tuple(o.astype(jnp.float32) for o in outs)

    # Strict check vs a reference that mimics the kernel's bf16/f32 precision
    # (including bf16 output rounding).
    refs_k = ae_reference_kernel_precision(x, params, out_dtype=jnp.bfloat16)
    for o, r in zip(outs_f32, refs_k):
        assert o.shape == r.shape, (o.shape, r.shape)
        assert jnp.allclose(o, r, atol=5e-3, rtol=5e-3), float(jnp.abs(o - r).max())

    # Looser sanity check vs the pure-f32 reference (bf16 rounding across layers).
    refs_f32 = ae_reference_f32(x, params)
    for o, r in zip(outs_f32, refs_f32):
        assert jnp.allclose(o, r, atol=5e-2, rtol=5e-2), float(jnp.abs(o - r).max())

    print("KERNEL_OK")
</pallas_src>

<mosaic_0001>
module attributes {stable_mosaic.version = 11 : i64} {
  func.func @ae_forward_kernel(%arg0: i32, %arg1: memref<16x128xbf16, #tpu.memory_space<vmem>>, %arg2: memref<128x128xbf16, #tpu.memory_space<vmem>>, %arg3: memref<1x128xf32, #tpu.memory_space<vmem>>, %arg4: memref<128x128xbf16, #tpu.memory_space<vmem>>, %arg5: memref<1x128xf32, #tpu.memory_space<vmem>>, %arg6: memref<128x128xbf16, #tpu.memory_space<vmem>>, %arg7: memref<1x128xf32, #tpu.memory_space<vmem>>, %arg8: memref<128x128xbf16, #tpu.memory_space<vmem>>, %arg9: memref<1x128xf32, #tpu.memory_space<vmem>>, %arg10: memref<128x128xbf16, #tpu.memory_space<vmem>>, %arg11: memref<1x128xf32, #tpu.memory_space<vmem>>, %arg12: memref<128x128xbf16, #tpu.memory_space<vmem>>, %arg13: memref<1x128xf32, #tpu.memory_space<vmem>>, %arg14: memref<128x128xbf16, #tpu.memory_space<vmem>>, %arg15: memref<1x128xf32, #tpu.memory_space<vmem>>, %arg16: memref<128x128xbf16, #tpu.memory_space<vmem>>, %arg17: memref<1x128xf32, #tpu.memory_space<vmem>>, %arg18: memref<16x128xbf16, #tpu.memory_space<vmem>>, %arg19: memref<16x128xbf16, #tpu.memory_space<vmem>>, %arg20: memref<16x128xbf16, #tpu.memory_space<vmem>>, %arg21: memref<16x128xbf16, #tpu.memory_space<vmem>>, %arg22: memref<16x128xbf16, #tpu.memory_space<vmem>>) attributes {dimension_semantics = [#tpu.dimension_semantics<parallel>], iteration_bounds = array<i64: 1>, scalar_prefetch = 0 : i64, scratch_operands = 0 : i64, tpu.core_type = #tpu.core_type<tc>, window_params = [{transform_indices = @transform_0, window_bounds = array<i64: 16, 128>}, {pipeline_mode = #tpu.pipeline_mode<synchronous>, transform_indices = @transform_1, window_bounds = array<i64: 128, 128>}, {pipeline_mode = #tpu.pipeline_mode<synchronous>, transform_indices = @transform_2, window_bounds = array<i64: 1, 128>}, {pipeline_mode = #tpu.pipeline_mode<synchronous>, transform_indices = @transform_3, window_bounds = array<i64: 128, 128>}, {pipeline_mode = #tpu.pipeline_mode<synchronous>, transform_indices = @transform_4, window_bounds = array<i64: 1, 128>}, {pipeline_mode = #tpu.pipeline_mode<synchronous>, transform_indices = @transform_5, window_bounds = array<i64: 128, 128>}, {pipeline_mode = #tpu.pipeline_mode<synchronous>, transform_indices = @transform_6, window_bounds = array<i64: 1, 128>}, {pipeline_mode = #tpu.pipeline_mode<synchronous>, transform_indices = @transform_7, window_bounds = array<i64: 128, 128>}, {pipeline_mode = #tpu.pipeline_mode<synchronous>, transform_indices = @transform_8, window_bounds = array<i64: 1, 128>}, {pipeline_mode = #tpu.pipeline_mode<synchronous>, transform_indices = @transform_9, window_bounds = array<i64: 128, 128>}, {pipeline_mode = #tpu.pipeline_mode<synchronous>, transform_indices = @transform_10, window_bounds = array<i64: 1, 128>}, {pipeline_mode = #tpu.pipeline_mode<synchronous>, transform_indices = @transform_11, window_bounds = array<i64: 128, 128>}, {pipeline_mode = #tpu.pipeline_mode<synchronous>, transform_indices = @transform_12, window_bounds = array<i64: 1, 128>}, {pipeline_mode = #tpu.pipeline_mode<synchronous>, transform_indices = @transform_13, window_bounds = array<i64: 128, 128>}, {pipeline_mode = #tpu.pipeline_mode<synchronous>, transform_indices = @transform_14, window_bounds = array<i64: 1, 128>}, {pipeline_mode = #tpu.pipeline_mode<synchronous>, transform_indices = @transform_15, window_bounds = array<i64: 128, 128>}, {pipeline_mode = #tpu.pipeline_mode<synchronous>, transform_indices = @transform_16, window_bounds = array<i64: 1, 128>}, {transform_indices = @transform_17, window_bounds = array<i64: 16, 128>}, {transform_indices = @transform_18, window_bounds = array<i64: 16, 128>}, {transform_indices = @transform_19, window_bounds = array<i64: 16, 128>}, {transform_indices = @transform_20, window_bounds = array<i64: 16, 128>}, {transform_indices = @transform_21, window_bounds = array<i64: 16, 128>}]} {
    %c0 = arith.constant 0 : index
    %c0_0 = arith.constant 0 : index
    %0 = vector.load %arg1[%c0, %c0_0] : memref<16x128xbf16, #tpu.memory_space<vmem>>, vector<16x128xbf16>
    %c0_1 = arith.constant 0 : index
    %c0_2 = arith.constant 0 : index
    %1 = vector.load %arg2[%c0_1, %c0_2] : memref<128x128xbf16, #tpu.memory_space<vmem>>, vector<128x128xbf16>
    %cst = arith.constant dense<0.000000e+00> : vector<16x128xf32>
    %2 = tpu.matmul %0, %1, %cst {dimension_numbers = #tpu.dot_dimension_numbers<[1], [0], [0], [1], [0, 0, 1, 1], [], []>} : vector<16x128xbf16>, vector<128x128xbf16>, vector<16x128xf32> -> vector<16x128xf32>
    %c0_3 = arith.constant 0 : index
    %c0_4 = arith.constant 0 : index
    %3 = vector.load %arg3[%c0_3, %c0_4] : memref<1x128xf32, #tpu.memory_space<vmem>>, vector<1x128xf32>
    %4 = vector.broadcast %3 : vector<1x128xf32> to vector<16x128xf32>
    %5 = arith.addf %2, %4 : vector<16x128xf32>
    %cst_5 = arith.constant 0.000000e+00 : f32
    %6 = vector.broadcast %cst_5 : f32 to vector<16x128xf32>
    %7 = arith.maximumf %5, %6 : vector<16x128xf32>
    %8 = arith.truncf %7 : vector<16x128xf32> to vector<16x128xbf16>
    %c0_6 = arith.constant 0 : index
    %c0_7 = arith.constant 0 : index
    %9 = vector.load %arg19[%c0_6, %c0_7] : memref<16x128xbf16, #tpu.memory_space<vmem>>, vector<16x128xbf16>
    tpu.vector_store %arg19[%c0_6, %c0_7], %8 {strides = array<i32>} : memref<16x128xbf16, #tpu.memory_space<vmem>>, vector<16x128xbf16>,
    %c0_8 = arith.constant 0 : index
    %c0_9 = arith.constant 0 : index
    %10 = vector.load %arg4[%c0_8, %c0_9] : memref<128x128xbf16, #tpu.memory_space<vmem>>, vector<128x128xbf16>
    %cst_10 = arith.constant dense<0.000000e+00> : vector<16x128xf32>
    %11 = tpu.matmul %8, %10, %cst_10 {dimension_numbers = #tpu.dot_dimension_numbers<[1], [0], [0], [1], [0, 0, 1, 1], [], []>} : vector<16x128xbf16>, vector<128x128xbf16>, vector<16x128xf32> -> vector<16x128xf32>
    %c0_11 = arith.constant 0 : index
    %c0_12 = arith.constant 0 : index
    %12 = vector.load %arg5[%c0_11, %c0_12] : memref<1x128xf32, #tpu.memory_space<vmem>>, vector<1x128xf32>
    %13 = vector.broadcast %12 : vector<1x128xf32> to vector<16x128xf32>
    %14 = arith.addf %11, %13 : vector<16x128xf32>
    %cst_13 = arith.constant 0.000000e+00 : f32
    %15 = vector.broadcast %cst_13 : f32 to vector<16x128xf32>
    %16 = arith.maximumf %14, %15 : vector<16x128xf32>
    %17 = arith.truncf %16 : vector<16x128xf32> to vector<16x128xbf16>
    %c0_14 = arith.constant 0 : index
    %c0_15 = arith.constant 0 : index
    %18 = vector.load %arg20[%c0_14, %c0_15] : memref<16x128xbf16, #tpu.memory_space<vmem>>, vector<16x128xbf16>
    tpu.vector_store %arg20[%c0_14, %c0_15], %17 {strides = array<i32>} : memref<16x128xbf16, #tpu.memory_space<vmem>>, vector<16x128xbf16>,
    %c0_16 = arith.constant 0 : index
    %c0_17 = arith.constant 0 : index
    %19 = vector.load %arg6[%c0_16, %c0_17] : memref<128x128xbf16, #tpu.memory_space<vmem>>, vector<128x128xbf16>
    %cst_18 = arith.constant dense<0.000000e+00> : vector<16x128xf32>
    %20 = tpu.matmul %17, %19, %cst_18 {dimension_numbers = #tpu.dot_dimension_numbers<[1], [0], [0], [1], [0, 0, 1, 1], [], []>} : vector<16x128xbf16>, vector<128x128xbf16>, vector<16x128xf32> -> vector<16x128xf32>
    %c0_19 = arith.constant 0 : index
    %c0_20 = arith.constant 0 : index
    %21 = vector.load %arg7[%c0_19, %c0_20] : memref<1x128xf32, #tpu.memory_space<vmem>>, vector<1x128xf32>
    %22 = vector.broadcast %21 : vector<1x128xf32> to vector<16x128xf32>
    %23 = arith.addf %20, %22 : vector<16x128xf32>
    %cst_21 = arith.constant 0.000000e+00 : f32
    %24 = vector.broadcast %cst_21 : f32 to vector<16x128xf32>
    %25 = arith.maximumf %23, %24 : vector<16x128xf32>
    %26 = arith.truncf %25 : vector<16x128xf32> to vector<16x128xbf16>
    %c0_22 = arith.constant 0 : index
    %c0_23 = arith.constant 0 : index
    %27 = vector.load %arg21[%c0_22, %c0_23] : memref<16x128xbf16, #tpu.memory_space<vmem>>, vector<16x128xbf16>
    tpu.vector_store %arg21[%c0_22, %c0_23], %26 {strides = array<i32>} : memref<16x128xbf16, #tpu.memory_space<vmem>>, vector<16x128xbf16>,
    %c0_24 = arith.constant 0 : index
    %c0_25 = arith.constant 0 : index
    %28 = vector.load %arg8[%c0_24, %c0_25] : memref<128x128xbf16, #tpu.memory_space<vmem>>, vector<128x128xbf16>
    %cst_26 = arith.constant dense<0.000000e+00> : vector<16x128xf32>
    %29 = tpu.matmul %26, %28, %cst_26 {dimension_numbers = #tpu.dot_dimension_numbers<[1], [0], [0], [1], [0, 0, 1, 1], [], []>} : vector<16x128xbf16>, vector<128x128xbf16>, vector<16x128xf32> -> vector<16x128xf32>
    %c0_27 = arith.constant 0 : index
    %c0_28 = arith.constant 0 : index
    %30 = vector.load %arg9[%c0_27, %c0_28] : memref<1x128xf32, #tpu.memory_space<vmem>>, vector<1x128xf32>
    %31 = vector.broadcast %30 : vector<1x128xf32> to vector<16x128xf32>
    %32 = arith.addf %29, %31 : vector<16x128xf32>
    %33 = arith.truncf %32 : vector<16x128xf32> to vector<16x128xbf16>
    %c0_29 = arith.constant 0 : index
    %c0_30 = arith.constant 0 : index
    %34 = vector.load %arg22[%c0_29, %c0_30] : memref<16x128xbf16, #tpu.memory_space<vmem>>, vector<16x128xbf16>
    tpu.vector_store %arg22[%c0_29, %c0_30], %33 {strides = array<i32>} : memref<16x128xbf16, #tpu.memory_space<vmem>>, vector<16x128xbf16>,
    %c0_31 = arith.constant 0 : index
    %c0_32 = arith.constant 0 : index
    %35 = vector.load %arg10[%c0_31, %c0_32] : memref<128x128xbf16, #tpu.memory_space<vmem>>, vector<128x128xbf16>
    %cst_33 = arith.constant dense<0.000000e+00> : vector<16x128xf32>
    %36 = tpu.matmul %33, %35, %cst_33 {dimension_numbers = #tpu.dot_dimension_numbers<[1], [0], [0], [1], [0, 0, 1, 1], [], []>} : vector<16x128xbf16>, vector<128x128xbf16>, vector<16x128xf32> -> vector<16x128xf32>
    %c0_34 = arith.constant 0 : index
    %c0_35 = arith.constant 0 : index
    %37 = vector.load %arg11[%c0_34, %c0_35] : memref<1x128xf32, #tpu.memory_space<vmem>>, vector<1x128xf32>
    %38 = vector.broadcast %37 : vector<1x128xf32> to vector<16x128xf32>
    %39 = arith.addf %36, %38 : vector<16x128xf32>
    %cst_36 = arith.constant 0.000000e+00 : f32
    %40 = vector.broadcast %cst_36 : f32 to vector<16x128xf32>
    %41 = arith.maximumf %39, %40 : vector<16x128xf32>
    %42 = arith.truncf %41 : vector<16x128xf32> to vector<16x128xbf16>
    %c0_37 = arith.constant 0 : index
    %c0_38 = arith.constant 0 : index
    %43 = vector.load %arg12[%c0_37, %c0_38] : memref<128x128xbf16, #tpu.memory_space<vmem>>, vector<128x128xbf16>
    %cst_39 = arith.constant dense<0.000000e+00> : vector<16x128xf32>
    %44 = tpu.matmul %42, %43, %cst_39 {dimension_numbers = #tpu.dot_dimension_numbers<[1], [0], [0], [1], [0, 0, 1, 1], [], []>} : vector<16x128xbf16>, vector<128x128xbf16>, vector<16x128xf32> -> vector<16x128xf32>
    %c0_40 = arith.constant 0 : index
    %c0_41 = arith.constant 0 : index
    %45 = vector.load %arg13[%c0_40, %c0_41] : memref<1x128xf32, #tpu.memory_space<vmem>>, vector<1x128xf32>
    %46 = vector.broadcast %45 : vector<1x128xf32> to vector<16x128xf32>
    %47 = arith.addf %44, %46 : vector<16x128xf32>
    %cst_42 = arith.constant 0.000000e+00 : f32
    %48 = vector.broadcast %cst_42 : f32 to vector<16x128xf32>
    %49 = arith.maximumf %47, %48 : vector<16x128xf32>
    %50 = arith.truncf %49 : vector<16x128xf32> to vector<16x128xbf16>
    %c0_43 = arith.constant 0 : index
    %c0_44 = arith.constant 0 : index
    %51 = vector.load %arg14[%c0_43, %c0_44] : memref<128x128xbf16, #tpu.memory_space<vmem>>, vector<128x128xbf16>
    %cst_45 = arith.constant dense<0.000000e+00> : vector<16x128xf32>
    %52 = tpu.matmul %50, %51, %cst_45 {dimension_numbers = #tpu.dot_dimension_numbers<[1], [0], [0], [1], [0, 0, 1, 1], [], []>} : vector<16x128xbf16>, vector<128x128xbf16>, vector<16x128xf32> -> vector<16x128xf32>
    %c0_46 = arith.constant 0 : index
    %c0_47 = arith.constant 0 : index
    %53 = vector.load %arg15[%c0_46, %c0_47] : memref<1x128xf32, #tpu.memory_space<vmem>>, vector<1x128xf32>
    %54 = vector.broadcast %53 : vector<1x128xf32> to vector<16x128xf32>
    %55 = arith.addf %52, %54 : vector<16x128xf32>
    %cst_48 = arith.constant 0.000000e+00 : f32
    %56 = vector.broadcast %cst_48 : f32 to vector<16x128xf32>
    %57 = arith.maximumf %55, %56 : vector<16x128xf32>
    %58 = arith.truncf %57 : vector<16x128xf32> to vector<16x128xbf16>
    %c0_49 = arith.constant 0 : index
    %c0_50 = arith.constant 0 : index
    %59 = vector.load %arg16[%c0_49, %c0_50] : memref<128x128xbf16, #tpu.memory_space<vmem>>, vector<128x128xbf16>
    %cst_51 = arith.constant dense<0.000000e+00> : vector<16x128xf32>
    %60 = tpu.matmul %58, %59, %cst_51 {dimension_numbers = #tpu.dot_dimension_numbers<[1], [0], [0], [1], [0, 0, 1, 1], [], []>} : vector<16x128xbf16>, vector<128x128xbf16>, vector<16x128xf32> -> vector<16x128xf32>
    %c0_52 = arith.constant 0 : index
    %c0_53 = arith.constant 0 : index
    %61 = vector.load %arg17[%c0_52, %c0_53] : memref<1x128xf32, #tpu.memory_space<vmem>>, vector<1x128xf32>
    %62 = vector.broadcast %61 : vector<1x128xf32> to vector<16x128xf32>
    %63 = arith.addf %60, %62 : vector<16x128xf32>
    %64 = arith.truncf %63 : vector<16x128xf32> to vector<16x128xbf16>
    %c0_54 = arith.constant 0 : index
    %c0_55 = arith.constant 0 : index
    %65 = vector.load %arg18[%c0_54, %c0_55] : memref<16x128xbf16, #tpu.memory_space<vmem>>, vector<16x128xbf16>
    tpu.vector_store %arg18[%c0_54, %c0_55], %64 {strides = array<i32>} : memref<16x128xbf16, #tpu.memory_space<vmem>>, vector<16x128xbf16>,
    return
  }
  func.func @transform_0(%arg0: i32) -> (i32, i32) {
    %c0_i32 = arith.constant 0 : i32
    %c0_i32_0 = arith.constant 0 : i32
    return %arg0, %c0_i32 : i32, i32
  }
  func.func @transform_1(%arg0: i32) -> (i32, i32) {
    %c0_i32 = arith.constant 0 : i32
    %c0_i32_0 = arith.constant 0 : i32
    %c0_i32_1 = arith.constant 0 : i32
    return %c0_i32, %c0_i32_0 : i32, i32
  }
  func.func @transform_2(%arg0: i32) -> (i32, i32) {
    %c0_i32 = arith.constant 0 : i32
    %c0_i32_0 = arith.constant 0 : i32
    %c0_i32_1 = arith.constant 0 : i32
    return %c0_i32, %c0_i32_0 : i32, i32
  }
  func.func @transform_3(%arg0: i32) -> (i32, i32) {
    %c0_i32 = arith.constant 0 : i32
    %c0_i32_0 = arith.constant 0 : i32
    %c0_i32_1 = arith.constant 0 : i32
    return %c0_i32, %c0_i32_0 : i32, i32
  }
  func.func @transform_4(%arg0: i32) -> (i32, i32) {
    %c0_i32 = arith.constant 0 : i32
    %c0_i32_0 = arith.constant 0 : i32
    %c0_i32_1 = arith.constant 0 : i32
    return %c0_i32, %c0_i32_0 : i32, i32
  }
  func.func @transform_5(%arg0: i32) -> (i32, i32) {
    %c0_i32 = arith.constant 0 : i32
    %c0_i32_0 = arith.constant 0 : i32
    %c0_i32_1 = arith.constant 0 : i32
    return %c0_i32, %c0_i32_0 : i32, i32
  }
  func.func @transform_6(%arg0: i32) -> (i32, i32) {
    %c0_i32 = arith.constant 0 : i32
    %c0_i32_0 = arith.constant 0 : i32
    %c0_i32_1 = arith.constant 0 : i32
    return %c0_i32, %c0_i32_0 : i32, i32
  }
  func.func @transform_7(%arg0: i32) -> (i32, i32) {
    %c0_i32 = arith.constant 0 : i32
    %c0_i32_0 = arith.constant 0 : i32
    %c0_i32_1 = arith.constant 0 : i32
    return %c0_i32, %c0_i32_0 : i32, i32
  }
  func.func @transform_8(%arg0: i32) -> (i32, i32) {
    %c0_i32 = arith.constant 0 : i32
    %c0_i32_0 = arith.constant 0 : i32
    %c0_i32_1 = arith.constant 0 : i32
    return %c0_i32, %c0_i32_0 : i32, i32
  }
  func.func @transform_9(%arg0: i32) -> (i32, i32) {
    %c0_i32 = arith.constant 0 : i32
    %c0_i32_0 = arith.constant 0 : i32
    %c0_i32_1 = arith.constant 0 : i32
    return %c0_i32, %c0_i32_0 : i32, i32
  }
  func.func @transform_10(%arg0: i32) -> (i32, i32) {
    %c0_i32 = arith.constant 0 : i32
    %c0_i32_0 = arith.constant 0 : i32
    %c0_i32_1 = arith.constant 0 : i32
    return %c0_i32, %c0_i32_0 : i32, i32
  }
  func.func @transform_11(%arg0: i32) -> (i32, i32) {
    %c0_i32 = arith.constant 0 : i32
    %c0_i32_0 = arith.constant 0 : i32
    %c0_i32_1 = arith.constant 0 : i32
    return %c0_i32, %c0_i32_0 : i32, i32
  }
  func.func @transform_12(%arg0: i32) -> (i32, i32) {
    %c0_i32 = arith.constant 0 : i32
    %c0_i32_0 = arith.constant 0 : i32
    %c0_i32_1 = arith.constant 0 : i32
    return %c0_i32, %c0_i32_0 : i32, i32
  }
  func.func @transform_13(%arg0: i32) -> (i32, i32) {
    %c0_i32 = arith.constant 0 : i32
    %c0_i32_0 = arith.constant 0 : i32
    %c0_i32_1 = arith.constant 0 : i32
    return %c0_i32, %c0_i32_0 : i32, i32
  }
  func.func @transform_14(%arg0: i32) -> (i32, i32) {
    %c0_i32 = arith.constant 0 : i32
    %c0_i32_0 = arith.constant 0 : i32
    %c0_i32_1 = arith.constant 0 : i32
    return %c0_i32, %c0_i32_0 : i32, i32
  }
  func.func @transform_15(%arg0: i32) -> (i32, i32) {
    %c0_i32 = arith.constant 0 : i32
    %c0_i32_0 = arith.constant 0 : i32
    %c0_i32_1 = arith.constant 0 : i32
    return %c0_i32, %c0_i32_0 : i32, i32
  }
  func.func @transform_16(%arg0: i32) -> (i32, i32) {
    %c0_i32 = arith.constant 0 : i32
    %c0_i32_0 = arith.constant 0 : i32
    %c0_i32_1 = arith.constant 0 : i32
    return %c0_i32, %c0_i32_0 : i32, i32
  }
  func.func @transform_17(%arg0: i32) -> (i32, i32) {
    %c0_i32 = arith.constant 0 : i32
    %c0_i32_0 = arith.constant 0 : i32
    return %arg0, %c0_i32 : i32, i32
  }
  func.func @transform_18(%arg0: i32) -> (i32, i32) {
    %c0_i32 = arith.constant 0 : i32
    %c0_i32_0 = arith.constant 0 : i32
    return %arg0, %c0_i32 : i32, i32
  }
  func.func @transform_19(%arg0: i32) -> (i32, i32) {
    %c0_i32 = arith.constant 0 : i32
    %c0_i32_0 = arith.constant 0 : i32
    return %arg0, %c0_i32 : i32, i32
  }
  func.func @transform_20(%arg0: i32) -> (i32, i32) {
    %c0_i32 = arith.constant 0 : i32
    %c0_i32_0 = arith.constant 0 : i32
    return %arg0, %c0_i32 : i32, i32
  }
  func.func @transform_21(%arg0: i32) -> (i32, i32) {
    %c0_i32 = arith.constant 0 : i32
    %c0_i32_0 = arith.constant 0 : i32
    return %arg0, %c0_i32 : i32, i32
  }
}

module attributes {stable_mosaic.version = 11 : i64} {
  func.func @ae_forward_kernel(%arg0: i32, %arg1: memref<16x128xbf16, #tpu.memory_space<vmem>>, %arg2: memref<128x128xbf16, #tpu.memory_space<vmem>>, %arg3: memref<1x128xf32, #tpu.memory_space<vmem>>, %arg4: memref<128x128xbf16, #tpu.memory_space<vmem>>, %arg5: memref<1x128xf32, #tpu.memory_space<vmem>>, %arg6: memref<128x128xbf16, #tpu.memory_space<vmem>>, %arg7: memref<1x128xf32, #tpu.memory_space<vmem>>, %arg8: memref<128x128xbf16, #tpu.memory_space<vmem>>, %arg9: memref<1x128xf32, #tpu.memory_space<vmem>>, %arg10: memref<128x128xbf16, #tpu.memory_space<vmem>>, %arg11: memref<1x128xf32, #tpu.memory_space<vmem>>, %arg12: memref<128x128xbf16, #tpu.memory_space<vmem>>, %arg13: memref<1x128xf32, #tpu.memory_space<vmem>>, %arg14: memref<128x128xbf16, #tpu.memory_space<vmem>>, %arg15: memref<1x128xf32, #tpu.memory_space<vmem>>, %arg16: memref<128x128xbf16, #tpu.memory_space<vmem>>, %arg17: memref<1x128xf32, #tpu.memory_space<vmem>>, %arg18: memref<16x128xbf16, #tpu.memory_space<vmem>>, %arg19: memref<16x128xbf16, #tpu.memory_space<vmem>>, %arg20: memref<16x128xbf16, #tpu.memory_space<vmem>>, %arg21: memref<16x128xbf16, #tpu.memory_space<vmem>>, %arg22: memref<16x128xbf16, #tpu.memory_space<vmem>>) attributes {dimension_semantics = [#tpu.dimension_semantics<parallel>], iteration_bounds = array<i64: 1>, scalar_prefetch = 0 : i64, scratch_operands = 0 : i64, tpu.core_type = #tpu.core_type<tc>, window_params = [{transform_indices = @transform_0, window_bounds = array<i64: 16, 128>}, {pipeline_mode = #tpu.pipeline_mode<synchronous>, transform_indices = @transform_1, window_bounds = array<i64: 128, 128>}, {pipeline_mode = #tpu.pipeline_mode<synchronous>, transform_indices = @transform_2, window_bounds = array<i64: 1, 128>}, {pipeline_mode = #tpu.pipeline_mode<synchronous>, transform_indices = @transform_3, window_bounds = array<i64: 128, 128>}, {pipeline_mode = #tpu.pipeline_mode<synchronous>, transform_indices = @transform_4, window_bounds = array<i64: 1, 128>}, {pipeline_mode = #tpu.pipeline_mode<synchronous>, transform_indices = @transform_5, window_bounds = array<i64: 128, 128>}, {pipeline_mode = #tpu.pipeline_mode<synchronous>, transform_indices = @transform_6, window_bounds = array<i64: 1, 128>}, {pipeline_mode = #tpu.pipeline_mode<synchronous>, transform_indices = @transform_7, window_bounds = array<i64: 128, 128>}, {pipeline_mode = #tpu.pipeline_mode<synchronous>, transform_indices = @transform_8, window_bounds = array<i64: 1, 128>}, {pipeline_mode = #tpu.pipeline_mode<synchronous>, transform_indices = @transform_9, window_bounds = array<i64: 128, 128>}, {pipeline_mode = #tpu.pipeline_mode<synchronous>, transform_indices = @transform_10, window_bounds = array<i64: 1, 128>}, {pipeline_mode = #tpu.pipeline_mode<synchronous>, transform_indices = @transform_11, window_bounds = array<i64: 128, 128>}, {pipeline_mode = #tpu.pipeline_mode<synchronous>, transform_indices = @transform_12, window_bounds = array<i64: 1, 128>}, {pipeline_mode = #tpu.pipeline_mode<synchronous>, transform_indices = @transform_13, window_bounds = array<i64: 128, 128>}, {pipeline_mode = #tpu.pipeline_mode<synchronous>, transform_indices = @transform_14, window_bounds = array<i64: 1, 128>}, {pipeline_mode = #tpu.pipeline_mode<synchronous>, transform_indices = @transform_15, window_bounds = array<i64: 128, 128>}, {pipeline_mode = #tpu.pipeline_mode<synchronous>, transform_indices = @transform_16, window_bounds = array<i64: 1, 128>}, {transform_indices = @transform_17, window_bounds = array<i64: 16, 128>}, {transform_indices = @transform_18, window_bounds = array<i64: 16, 128>}, {transform_indices = @transform_19, window_bounds = array<i64: 16, 128>}, {transform_indices = @transform_20, window_bounds = array<i64: 16, 128>}, {transform_indices = @transform_21, window_bounds = array<i64: 16, 128>}]} {
    %c0 = arith.constant 0 : index
    %c0_0 = arith.constant 0 : index
    %0 = vector.load %arg1[%c0, %c0_0] : memref<16x128xbf16, #tpu.memory_space<vmem>>, vector<16x128xbf16>
    %c0_1 = arith.constant 0 : index
    %c0_2 = arith.constant 0 : index
    %1 = vector.load %arg2[%c0_1, %c0_2] : memref<128x128xbf16, #tpu.memory_space<vmem>>, vector<128x128xbf16>
    %cst = arith.constant dense<0.000000e+00> : vector<16x128xf32>
    %2 = tpu.matmul %0, %1, %cst {dimension_numbers = #tpu.dot_dimension_numbers<[1], [0], [0], [1], [0, 0, 1, 1], [], []>} : vector<16x128xbf16>, vector<128x128xbf16>, vector<16x128xf32> -> vector<16x128xf32>
    %c0_3 = arith.constant 0 : index
    %c0_4 = arith.constant 0 : index
    %3 = vector.load %arg3[%c0_3, %c0_4] : memref<1x128xf32, #tpu.memory_space<vmem>>, vector<1x128xf32>
    %4 = vector.broadcast %3 : vector<1x128xf32> to vector<16x128xf32>
    %5 = arith.addf %2, %4 : vector<16x128xf32>
    %cst_5 = arith.constant 0.000000e+00 : f32
    %6 = vector.broadcast %cst_5 : f32 to vector<16x128xf32>
    %7 = arith.maximumf %5, %6 : vector<16x128xf32>
    %8 = arith.truncf %7 : vector<16x128xf32> to vector<16x128xbf16>
    %c0_6 = arith.constant 0 : index
    %c0_7 = arith.constant 0 : index
    %9 = vector.load %arg19[%c0_6, %c0_7] : memref<16x128xbf16, #tpu.memory_space<vmem>>, vector<16x128xbf16>
    tpu.vector_store %arg19[%c0_6, %c0_7], %8 {strides = array<i32>} : memref<16x128xbf16, #tpu.memory_space<vmem>>, vector<16x128xbf16>,
    %c0_8 = arith.constant 0 : index
    %c0_9 = arith.constant 0 : index
    %10 = vector.load %arg4[%c0_8, %c0_9] : memref<128x128xbf16, #tpu.memory_space<vmem>>, vector<128x128xbf16>
    %cst_10 = arith.constant dense<0.000000e+00> : vector<16x128xf32>
    %11 = tpu.matmul %8, %10, %cst_10 {dimension_numbers = #tpu.dot_dimension_numbers<[1], [0], [0], [1], [0, 0, 1, 1], [], []>} : vector<16x128xbf16>, vector<128x128xbf16>, vector<16x128xf32> -> vector<16x128xf32>
    %c0_11 = arith.constant 0 : index
    %c0_12 = arith.constant 0 : index
    %12 = vector.load %arg5[%c0_11, %c0_12] : memref<1x128xf32, #tpu.memory_space<vmem>>, vector<1x128xf32>
    %13 = vector.broadcast %12 : vector<1x128xf32> to vector<16x128xf32>
    %14 = arith.addf %11, %13 : vector<16x128xf32>
    %cst_13 = arith.constant 0.000000e+00 : f32
    %15 = vector.broadcast %cst_13 : f32 to vector<16x128xf32>
    %16 = arith.maximumf %14, %15 : vector<16x128xf32>
    %17 = arith.truncf %16 : vector<16x128xf32> to vector<16x128xbf16>
    %c0_14 = arith.constant 0 : index
    %c0_15 = arith.constant 0 : index
    %18 = vector.load %arg20[%c0_14, %c0_15] : memref<16x128xbf16, #tpu.memory_space<vmem>>, vector<16x128xbf16>
    tpu.vector_store %arg20[%c0_14, %c0_15], %17 {strides = array<i32>} : memref<16x128xbf16, #tpu.memory_space<vmem>>, vector<16x128xbf16>,
    %c0_16 = arith.constant 0 : index
    %c0_17 = arith.constant 0 : index
    %19 = vector.load %arg6[%c0_16, %c0_17] : memref<128x128xbf16, #tpu.memory_space<vmem>>, vector<128x128xbf16>
    %cst_18 = arith.constant dense<0.000000e+00> : vector<16x128xf32>
    %20 = tpu.matmul %17, %19, %cst_18 {dimension_numbers = #tpu.dot_dimension_numbers<[1], [0], [0], [1], [0, 0, 1, 1], [], []>} : vector<16x128xbf16>, vector<128x128xbf16>, vector<16x128xf32> -> vector<16x128xf32>
    %c0_19 = arith.constant 0 : index
    %c0_20 = arith.constant 0 : index
    %21 = vector.load %arg7[%c0_19, %c0_20] : memref<1x128xf32, #tpu.memory_space<vmem>>, vector<1x128xf32>
    %22 = vector.broadcast %21 : vector<1x128xf32> to vector<16x128xf32>
    %23 = arith.addf %20, %22 : vector<16x128xf32>
    %cst_21 = arith.constant 0.000000e+00 : f32
    %24 = vector.broadcast %cst_21 : f32 to vector<16x128xf32>
    %25 = arith.maximumf %23, %24 : vector<16x128xf32>
    %26 = arith.truncf %25 : vector<16x128xf32> to vector<16x128xbf16>
    %c0_22 = arith.constant 0 : index
    %c0_23 = arith.constant 0 : index
    %27 = vector.load %arg21[%c0_22, %c0_23] : memref<16x128xbf16, #tpu.memory_space<vmem>>, vector<16x128xbf16>
    tpu.vector_store %arg21[%c0_22, %c0_23], %26 {strides = array<i32>} : memref<16x128xbf16, #tpu.memory_space<vmem>>, vector<16x128xbf16>,
    %c0_24 = arith.constant 0 : index
    %c0_25 = arith.constant 0 : index
    %28 = vector.load %arg8[%c0_24, %c0_25] : memref<128x128xbf16, #tpu.memory_space<vmem>>, vector<128x128xbf16>
    %cst_26 = arith.constant dense<0.000000e+00> : vector<16x128xf32>
    %29 = tpu.matmul %26, %28, %cst_26 {dimension_numbers = #tpu.dot_dimension_numbers<[1], [0], [0], [1], [0, 0, 1, 1], [], []>} : vector<16x128xbf16>, vector<128x128xbf16>, vector<16x128xf32> -> vector<16x128xf32>
    %c0_27 = arith.constant 0 : index
    %c0_28 = arith.constant 0 : index
    %30 = vector.load %arg9[%c0_27, %c0_28] : memref<1x128xf32, #tpu.memory_space<vmem>>, vector<1x128xf32>
    %31 = vector.broadcast %30 : vector<1x128xf32> to vector<16x128xf32>
    %32 = arith.addf %29, %31 : vector<16x128xf32>
    %33 = arith.truncf %32 : vector<16x128xf32> to vector<16x128xbf16>
    %c0_29 = arith.constant 0 : index
    %c0_30 = arith.constant 0 : index
    %34 = vector.load %arg22[%c0_29, %c0_30] : memref<16x128xbf16, #tpu.memory_space<vmem>>, vector<16x128xbf16>
    tpu.vector_store %arg22[%c0_29, %c0_30], %33 {strides = array<i32>} : memref<16x128xbf16, #tpu.memory_space<vmem>>, vector<16x128xbf16>,
    %c0_31 = arith.constant 0 : index
    %c0_32 = arith.constant 0 : index
    %35 = vector.load %arg10[%c0_31, %c0_32] : memref<128x128xbf16, #tpu.memory_space<vmem>>, vector<128x128xbf16>
    %cst_33 = arith.constant dense<0.000000e+00> : vector<16x128xf32>
    %36 = tpu.matmul %33, %35, %cst_33 {dimension_numbers = #tpu.dot_dimension_numbers<[1], [0], [0], [1], [0, 0, 1, 1], [], []>} : vector<16x128xbf16>, vector<128x128xbf16>, vector<16x128xf32> -> vector<16x128xf32>
    %c0_34 = arith.constant 0 : index
    %c0_35 = arith.constant 0 : index
    %37 = vector.load %arg11[%c0_34, %c0_35] : memref<1x128xf32, #tpu.memory_space<vmem>>, vector<1x128xf32>
    %38 = vector.broadcast %37 : vector<1x128xf32> to vector<16x128xf32>
    %39 = arith.addf %36, %38 : vector<16x128xf32>
    %cst_36 = arith.constant 0.000000e+00 : f32
    %40 = vector.broadcast %cst_36 : f32 to vector<16x128xf32>
    %41 = arith.maximumf %39, %40 : vector<16x128xf32>
    %42 = arith.truncf %41 : vector<16x128xf32> to vector<16x128xbf16>
    %c0_37 = arith.constant 0 : index
    %c0_38 = arith.constant 0 : index
    %43 = vector.load %arg12[%c0_37, %c0_38] : memref<128x128xbf16, #tpu.memory_space<vmem>>, vector<128x128xbf16>
    %cst_39 = arith.constant dense<0.000000e+00> : vector<16x128xf32>
    %44 = tpu.matmul %42, %43, %cst_39 {dimension_numbers = #tpu.dot_dimension_numbers<[1], [0], [0], [1], [0, 0, 1, 1], [], []>} : vector<16x128xbf16>, vector<128x128xbf16>, vector<16x128xf32> -> vector<16x128xf32>
    %c0_40 = arith.constant 0 : index
    %c0_41 = arith.constant 0 : index
    %45 = vector.load %arg13[%c0_40, %c0_41] : memref<1x128xf32, #tpu.memory_space<vmem>>, vector<1x128xf32>
    %46 = vector.broadcast %45 : vector<1x128xf32> to vector<16x128xf32>
    %47 = arith.addf %44, %46 : vector<16x128xf32>
    %cst_42 = arith.constant 0.000000e+00 : f32
    %48 = vector.broadcast %cst_42 : f32 to vector<16x128xf32>
    %49 = arith.maximumf %47, %48 : vector<16x128xf32>
    %50 = arith.truncf %49 : vector<16x128xf32> to vector<16x128xbf16>
    %c0_43 = arith.constant 0 : index
    %c0_44 = arith.constant 0 : index
    %51 = vector.load %arg14[%c0_43, %c0_44] : memref<128x128xbf16, #tpu.memory_space<vmem>>, vector<128x128xbf16>
    %cst_45 = arith.constant dense<0.000000e+00> : vector<16x128xf32>
    %52 = tpu.matmul %50, %51, %cst_45 {dimension_numbers = #tpu.dot_dimension_numbers<[1], [0], [0], [1], [0, 0, 1, 1], [], []>} : vector<16x128xbf16>, vector<128x128xbf16>, vector<16x128xf32> -> vector<16x128xf32>
    %c0_46 = arith.constant 0 : index
    %c0_47 = arith.constant 0 : index
    %53 = vector.load %arg15[%c0_46, %c0_47] : memref<1x128xf32, #tpu.memory_space<vmem>>, vector<1x128xf32>
    %54 = vector.broadcast %53 : vector<1x128xf32> to vector<16x128xf32>
    %55 = arith.addf %52, %54 : vector<16x128xf32>
    %cst_48 = arith.constant 0.000000e+00 : f32
    %56 = vector.broadcast %cst_48 : f32 to vector<16x128xf32>
    %57 = arith.maximumf %55, %56 : vector<16x128xf32>
    %58 = arith.truncf %57 : vector<16x128xf32> to vector<16x128xbf16>
    %c0_49 = arith.constant 0 : index
    %c0_50 = arith.constant 0 : index
    %59 = vector.load %arg16[%c0_49, %c0_50] : memref<128x128xbf16, #tpu.memory_space<vmem>>, vector<128x128xbf16>
    %cst_51 = arith.constant dense<0.000000e+00> : vector<16x128xf32>
    %60 = tpu.matmul %58, %59, %cst_51 {dimension_numbers = #tpu.dot_dimension_numbers<[1], [0], [0], [1], [0, 0, 1, 1], [], []>} : vector<16x128xbf16>, vector<128x128xbf16>, vector<16x128xf32> -> vector<16x128xf32>
    %c0_52 = arith.constant 0 : index
    %c0_53 = arith.constant 0 : index
    %61 = vector.load %arg17[%c0_52, %c0_53] : memref<1x128xf32, #tpu.memory_space<vmem>>, vector<1x128xf32>
    %62 = vector.broadcast %61 : vector<1x128xf32> to vector<16x128xf32>
    %63 = arith.addf %60, %62 : vector<16x128xf32>
    %64 = arith.truncf %63 : vector<16x128xf32> to vector<16x128xbf16>
    %c0_54 = arith.constant 0 : index
    %c0_55 = arith.constant 0 : index
    %65 = vector.load %arg18[%c0_54, %c0_55] : memref<16x128xbf16, #tpu.memory_space<vmem>>, vector<16x128xbf16>
    tpu.vector_store %arg18[%c0_54, %c0_55], %64 {strides = array<i32>} : memref<16x128xbf16, #tpu.memory_space<vmem>>, vector<16x128xbf16>,
    return
  }
  func.func @transform_0(%arg0: i32) -> (i32, i32) {
    %c0_i32 = arith.constant 0 : i32
    %c0_i32_0 = arith.constant 0 : i32
    return %arg0, %c0_i32 : i32, i32
  }
  func.func @transform_1(%arg0: i32) -> (i32, i32) {
    %c0_i32 = arith.constant 0 : i32
    %c0_i32_0 = arith.constant 0 : i32
    %c0_i32_1 = arith.constant 0 : i32
    return %c0_i32, %c0_i32_0 : i32, i32
  }
  func.func @transform_2(%arg0: i32) -> (i32, i32) {
    %c0_i32 = arith.constant 0 : i32
    %c0_i32_0 = arith.constant 0 : i32
    %c0_i32_1 = arith.constant 0 : i32
    return %c0_i32, %c0_i32_0 : i32, i32
  }
  func.func @transform_3(%arg0: i32) -> (i32, i32) {
    %c0_i32 = arith.constant 0 : i32
    %c0_i32_0 = arith.constant 0 : i32
    %c0_i32_1 = arith.constant 0 : i32
    return %c0_i32, %c0_i32_0 : i32, i32
  }
  func.func @transform_4(%arg0: i32) -> (i32, i32) {
    %c0_i32 = arith.constant 0 : i32
    %c0_i32_0 = arith.constant 0 : i32
    %c0_i32_1 = arith.constant 0 : i32
    return %c0_i32, %c0_i32_0 : i32, i32
  }
  func.func @transform_5(%arg0: i32) -> (i32, i32) {
    %c0_i32 = arith.constant 0 : i32
    %c0_i32_0 = arith.constant 0 : i32
    %c0_i32_1 = arith.constant 0 : i32
    return %c0_i32, %c0_i32_0 : i32, i32
  }
  func.func @transform_6(%arg0: i32) -> (i32, i32) {
    %c0_i32 = arith.constant 0 : i32
    %c0_i32_0 = arith.constant 0 : i32
    %c0_i32_1 = arith.constant 0 : i32
    return %c0_i32, %c0_i32_0 : i32, i32
  }
  func.func @transform_7(%arg0: i32) -> (i32, i32) {
    %c0_i32 = arith.constant 0 : i32
    %c0_i32_0 = arith.constant 0 : i32
    %c0_i32_1 = arith.constant 0 : i32
    return %c0_i32, %c0_i32_0 : i32, i32
  }
  func.func @transform_8(%arg0: i32) -> (i32, i32) {
    %c0_i32 = arith.constant 0 : i32
    %c0_i32_0 = arith.constant 0 : i32
    %c0_i32_1 = arith.constant 0 : i32
    return %c0_i32, %c0_i32_0 : i32, i32
  }
  func.func @transform_9(%arg0: i32) -> (i32, i32) {
    %c0_i32 = arith.constant 0 : i32
    %c0_i32_0 = arith.constant 0 : i32
    %c0_i32_1 = arith.constant 0 : i32
    return %c0_i32, %c0_i32_0 : i32, i32
  }
  func.func @transform_10(%arg0: i32) -> (i32, i32) {
    %c0_i32 = arith.constant 0 : i32
    %c0_i32_0 = arith.constant 0 : i32
    %c0_i32_1 = arith.constant 0 : i32
    return %c0_i32, %c0_i32_0 : i32, i32
  }
  func.func @transform_11(%arg0: i32) -> (i32, i32) {
    %c0_i32 = arith.constant 0 : i32
    %c0_i32_0 = arith.constant 0 : i32
    %c0_i32_1 = arith.constant 0 : i32
    return %c0_i32, %c0_i32_0 : i32, i32
  }
  func.func @transform_12(%arg0: i32) -> (i32, i32) {
    %c0_i32 = arith.constant 0 : i32
    %c0_i32_0 = arith.constant 0 : i32
    %c0_i32_1 = arith.constant 0 : i32
    return %c0_i32, %c0_i32_0 : i32, i32
  }
  func.func @transform_13(%arg0: i32) -> (i32, i32) {
    %c0_i32 = arith.constant 0 : i32
    %c0_i32_0 = arith.constant 0 : i32
    %c0_i32_1 = arith.constant 0 : i32
    return %c0_i32, %c0_i32_0 : i32, i32
  }
  func.func @transform_14(%arg0: i32) -> (i32, i32) {
    %c0_i32 = arith.constant 0 : i32
    %c0_i32_0 = arith.constant 0 : i32
    %c0_i32_1 = arith.constant 0 : i32
    return %c0_i32, %c0_i32_0 : i32, i32
  }
  func.func @transform_15(%arg0: i32) -> (i32, i32) {
    %c0_i32 = arith.constant 0 : i32
    %c0_i32_0 = arith.constant 0 : i32
    %c0_i32_1 = arith.constant 0 : i32
    return %c0_i32, %c0_i32_0 : i32, i32
  }
  func.func @transform_16(%arg0: i32) -> (i32, i32) {
    %c0_i32 = arith.constant 0 : i32
    %c0_i32_0 = arith.constant 0 : i32
    %c0_i32_1 = arith.constant 0 : i32
    return %c0_i32, %c0_i32_0 : i32, i32
  }
  func.func @transform_17(%arg0: i32) -> (i32, i32) {
    %c0_i32 = arith.constant 0 : i32
    %c0_i32_0 = arith.constant 0 : i32
    return %arg0, %c0_i32 : i32, i32
  }
  func.func @transform_18(%arg0: i32) -> (i32, i32) {
    %c0_i32 = arith.constant 0 : i32
    %c0_i32_0 = arith.constant 0 : i32
    return %arg0, %c0_i32 : i32, i32
  }
  func.func @transform_19(%arg0: i32) -> (i32, i32) {
    %c0_i32 = arith.constant 0 : i32
    %c0_i32_0 = arith.constant 0 : i32
    return %arg0, %c0_i32 : i32, i32
  }
  func.func @transform_20(%arg0: i32) -> (i32, i32) {
    %c0_i32 = arith.constant 0 : i32
    %c0_i32_0 = arith.constant 0 : i32
    return %arg0, %c0_i32 : i32, i32
  }
  func.func @transform_21(%arg0: i32) -> (i32, i32) {
    %c0_i32 = arith.constant 0 : i32
    %c0_i32_0 = arith.constant 0 : i32
    return %arg0, %c0_i32 : i32, i32
  }
}

</mosaic_0001>

<llo_original>
// kernel: tpu_custom_call.1
$region0: #{tpu_custom_call.1}
  #allocation0 [shape = 'u32[]', space=smem, size = 0x4, offset = 0x4, fixed_abs, tag = 'smem constant byte address 0x4 - core index']
  #allocation1 [shape = 'u32[144,128]{1,0:T(1,128)}', space=vmem, size = 0x12000, scoped, tag = 'internal scratch']
  %s0 = inlined_call_operand.hbm [shape: bf16[16,128], index: 0, kind: input, shape index: {}]
  %s1 = inlined_call_operand.hbm [shape: bf16[128,128], index: 1, kind: input, shape index: {}]
  %s2 = inlined_call_operand.vmem [shape: f32[1,128], index: 2, kind: input, shape index: {}]
  %s3 = inlined_call_operand.hbm [shape: bf16[128,128], index: 3, kind: input, shape index: {}]
  %s4 = inlined_call_operand.vmem [shape: f32[1,128], index: 4, kind: input, shape index: {}]
  %s5 = inlined_call_operand.hbm [shape: bf16[128,128], index: 5, kind: input, shape index: {}]
  %s6 = inlined_call_operand.vmem [shape: f32[1,128], index: 6, kind: input, shape index: {}]
  %s7 = inlined_call_operand.hbm [shape: bf16[128,128], index: 7, kind: input, shape index: {}]
  %s8 = inlined_call_operand.vmem [shape: f32[1,128], index: 8, kind: input, shape index: {}]
  %s9 = inlined_call_operand.hbm [shape: bf16[128,128], index: 9, kind: input, shape index: {}]
  %s10 = inlined_call_operand.vmem [shape: f32[1,128], index: 10, kind: input, shape index: {}]
  %s11 = inlined_call_operand.hbm [shape: bf16[128,128], index: 11, kind: input, shape index: {}]
  %s12 = inlined_call_operand.vmem [shape: f32[1,128], index: 12, kind: input, shape index: {}]
  %s13 = inlined_call_operand.hbm [shape: bf16[128,128], index: 13, kind: input, shape index: {}]
  %s14 = inlined_call_operand.vmem [shape: f32[1,128], index: 14, kind: input, shape index: {}]
  %s15 = inlined_call_operand.hbm [shape: bf16[128,128], index: 15, kind: input, shape index: {}]
  %s16 = inlined_call_operand.vmem [shape: f32[1,128], index: 16, kind: input, shape index: {}]
  %s17 = inlined_call_operand.hbm [shape: bf16[16,128], index: 17, kind: output, shape index: {0}]
  %s18 = inlined_call_operand.hbm [shape: bf16[16,128], index: 18, kind: output, shape index: {1}]
  %s19 = inlined_call_operand.hbm [shape: bf16[16,128], index: 19, kind: output, shape index: {2}]
  %s20 = inlined_call_operand.hbm [shape: bf16[16,128], index: 20, kind: output, shape index: {3}]
  %s21 = inlined_call_operand.hbm [shape: bf16[16,128], index: 21, kind: output, shape index: {4}]
  %22 = xla_tuple %s17, %s18, %s19, %s20, %s21
  %s23 = sld [smem:[#allocation0]]
  $region146: #{tpu_custom_call.1} parent=0
    _
  %s25 = ssub.s32 1, %s23
  %s26 = scalar_select 0, %s25, %s23
  $region1: #{tpu_custom_call.1} parent=0
    #allocation2 [shape = 'u8[4096]{0}', space=vmem, size = 0x1000, scoped, tag = 'input window, operand 0, single buffered']
    #allocation3 [shape = 's32[1]{0}', space=sflag, size = 0x4, scoped, tag = 'scoped memory for tpu_custom_call.1']
    #allocation4 [shape = 's32[1]{0}', space=sflag, size = 0x4, scoped, tag = 'scoped memory for tpu_custom_call.1']
    #allocation5 [shape = 'u8[32768]{0}', space=vmem, size = 0x8000, scoped, tag = 'input window, operand 1, single buffered']
    #allocation6 [shape = 's32[1]{0}', space=sflag, size = 0x4, scoped, tag = 'scoped memory for tpu_custom_call.1']
    #allocation7 [shape = 'u8[32768]{0}', space=vmem, size = 0x8000, scoped, tag = 'input window, operand 3, single buffered']
    #allocation8 [shape = 'u8[32768]{0}', space=vmem, size = 0x8000, scoped, tag = 'input window, operand 5, single buffered']
    #allocation9 [shape = 's32[1]{0}', space=sflag, size = 0x4, scoped, tag = 'scoped memory for tpu_custom_call.1']
    #allocation10 [shape = 'u8[32768]{0}', space=vmem, size = 0x8000, scoped, tag = 'input window, operand 7, single buffered']
    #allocation11 [shape = 'u8[32768]{0}', space=vmem, size = 0x8000, scoped, tag = 'input window, operand 9, single buffered']
    #allocation12 [shape = 's32[1]{0}', space=sflag, size = 0x4, scoped, tag = 'scoped memory for tpu_custom_call.1']
    #allocation13 [shape = 'u8[32768]{0}', space=vmem, size = 0x8000, scoped, tag = 'input window, operand 11, single buffered']
    #allocation14 [shape = 'u8[32768]{0}', space=vmem, size = 0x8000, scoped, tag = 'input window, operand 13, single buffered']
    #allocation15 [shape = 's32[1]{0}', space=sflag, size = 0x4, scoped, tag = 'scoped memory for tpu_custom_call.1']
    #allocation16 [shape = 'u8[32768]{0}', space=vmem, size = 0x8000, scoped, tag = 'input window, operand 15, single buffered']
    #allocation17 [shape = 'u8[4096]{0}', space=vmem, size = 0x1000, scoped, tag = 'output window, operand 0, single buffered']
    #allocation18 [shape = 'u8[4096]{0}', space=vmem, size = 0x1000, scoped, tag = 'output window, operand 1, single buffered']
    #allocation19 [shape = 's32[1]{0}', space=sflag, size = 0x4, scoped, tag = 'scoped memory for tpu_custom_call.1']
    #allocation20 [shape = 'u8[4096]{0}', space=vmem, size = 0x1000, scoped, tag = 'output window, operand 2, single buffered']
    #allocation21 [shape = 'u8[4096]{0}', space=vmem, size = 0x1000, scoped, tag = 'output window, operand 3, single buffered']
    #allocation22 [shape = 's32[1]{0}', space=sflag, size = 0x4, scoped, tag = 'scoped memory for tpu_custom_call.1']
    #allocation23 [shape = 'u8[4096]{0}', space=vmem, size = 0x1000, scoped, tag = 'output window, operand 4, single buffered']
    %27 = vsyncpa [#allocation3], 0
    %28 = vsyncpa [#allocation6], 0
    %29 = vsyncpa [#allocation9], 0
    %30 = vsyncpa [#allocation12], 0
    %31 = vsyncpa [#allocation15], 0
    %32 = vsyncpa [#allocation4], 0
    %33 = vsyncpa [#allocation19], 0
    %34 = vsyncpa [#allocation22], 0
    // Predicated region
    $region2: #{tpu_custom_call.1} parent=1 // pred_check
      _
    $region3: #{tpu_custom_call.1} parent=1 // pred_check_branch
      %36 = sbr.rel (0) target = $region5
    $region4: #{tpu_custom_call.1} parent=1 // pred_region
      %s38 = ssub.s32 128, 128
      %39 = vsyncadd [#allocation3], %s38
      %s40 = sshll.u32 [#allocation2], 4
      %s41 = int_to_ptr.vmem [resolvable:$true] %s40
      %46 = dma.hbm_to_vmem [thread:$0]  %s0, 128, %s41, [#allocation3], 64, 64, 4
    $region5: #{tpu_custom_call.1} parent=1 // pred_fallthru
      _
    // Predicated region
    $region6: #{tpu_custom_call.1} parent=1 // pred_check
      _
    $region7: #{tpu_custom_call.1} parent=1 // pred_check_branch
      %48 = sbr.rel (0) target = $region9
    $region8: #{tpu_custom_call.1} parent=1 // pred_region
      %s50 = ssub.s32 1024, 1024
      %51 = vsyncadd [#allocation6], %s50
      %s52 = sshll.u32 [#allocation5], 4
      %s53 = int_to_ptr.vmem [resolvable:$true] %s52
      %58 = dma.hbm_to_vmem [thread:$0]  %s1, 1024, %s53, [#allocation6], 64, 64, 4
    $region9: #{tpu_custom_call.1} parent=1 // pred_fallthru
      _
    // Predicated region
    $region10: #{tpu_custom_call.1} parent=1 // pred_check
      _
    $region11: #{tpu_custom_call.1} parent=1 // pred_check_branch
      %60 = sbr.rel (0) target = $region13
    $region12: #{tpu_custom_call.1} parent=1 // pred_region
      _
    $region13: #{tpu_custom_call.1} parent=1 // pred_fallthru
      _
    // Predicated region
    $region14: #{tpu_custom_call.1} parent=1 // pred_check
      _
    $region15: #{tpu_custom_call.1} parent=1 // pred_check_branch
      %62 = sbr.rel (0) target = $region17
    $region16: #{tpu_custom_call.1} parent=1 // pred_region
      %s64 = ssub.s32 1024, 1024
      %65 = vsyncadd [#allocation6], %s64
      %s66 = sshll.u32 [#allocation7], 4
      %s67 = int_to_ptr.vmem [resolvable:$true] %s66
      %72 = dma.hbm_to_vmem [thread:$0]  %s3, 1024, %s67, [#allocation6], 64, 64, 4
    $region17: #{tpu_custom_call.1} parent=1 // pred_fallthru
      _
    // Predicated region
    $region18: #{tpu_custom_call.1} parent=1 // pred_check
      _
    $region19: #{tpu_custom_call.1} parent=1 // pred_check_branch
      %74 = sbr.rel (0) target = $region21
    $region20: #{tpu_custom_call.1} parent=1 // pred_region
      _
    $region21: #{tpu_custom_call.1} parent=1 // pred_fallthru
      _
    // Predicated region
    $region22: #{tpu_custom_call.1} parent=1 // pred_check
      _
    $region23: #{tpu_custom_call.1} parent=1 // pred_check_branch
      %76 = sbr.rel (0) target = $region25
    $region24: #{tpu_custom_call.1} parent=1 // pred_region
      %s78 = ssub.s32 1024, 1024
      %79 = vsyncadd [#allocation9], %s78
      %s80 = sshll.u32 [#allocation8], 4
      %s81 = int_to_ptr.vmem [resolvable:$true] %s80
      %86 = dma.hbm_to_vmem [thread:$0]  %s5, 1024, %s81, [#allocation9], 64, 64, 4
    $region25: #{tpu_custom_call.1} parent=1 // pred_fallthru
      _
    // Predicated region
    $region26: #{tpu_custom_call.1} parent=1 // pred_check
      _
    $region27: #{tpu_custom_call.1} parent=1 // pred_check_branch
      %88 = sbr.rel (0) target = $region29
    $region28: #{tpu_custom_call.1} parent=1 // pred_region
      _
    $region29: #{tpu_custom_call.1} parent=1 // pred_fallthru
      _
    // Predicated region
    $region30: #{tpu_custom_call.1} parent=1 // pred_check
      _
    $region31: #{tpu_custom_call.1} parent=1 // pred_check_branch
      %90 = sbr.rel (0) target = $region33
    $region32: #{tpu_custom_call.1} parent=1 // pred_region
      %s92 = ssub.s32 1024, 1024
      %93 = vsyncadd [#allocation9], %s92
      %s94 = sshll.u32 [#allocation10], 4
      %s95 = int_to_ptr.vmem [resolvable:$true] %s94
      %100 = dma.hbm_to_vmem [thread:$0]  %s7, 1024, %s95, [#allocation9], 64, 64, 4
    $region33: #{tpu_custom_call.1} parent=1 // pred_fallthru
      _
    // Predicated region
    $region34: #{tpu_custom_call.1} parent=1 // pred_check
      _
    $region35: #{tpu_custom_call.1} parent=1 // pred_check_branch
      %102 = sbr.rel (0) target = $region37
    $region36: #{tpu_custom_call.1} parent=1 // pred_region
      _
    $region37: #{tpu_custom_call.1} parent=1 // pred_fallthru
      _
    // Predicated region
    $region38: #{tpu_custom_call.1} parent=1 // pred_check
      _
    $region39: #{tpu_custom_call.1} parent=1 // pred_check_branch
      %104 = sbr.rel (0) target = $region41
    $region40: #{tpu_custom_call.1} parent=1 // pred_region
      %s106 = ssub.s32 1024, 1024
      %107 = vsyncadd [#allocation12], %s106
      %s108 = sshll.u32 [#allocation11], 4
      %s109 = int_to_ptr.vmem [resolvable:$true] %s108
      %114 = dma.hbm_to_vmem [thread:$0]  %s9, 1024, %s109, [#allocation12], 64, 64, 4
    $region41: #{tpu_custom_call.1} parent=1 // pred_fallthru
      _
    // Predicated region
    $region42: #{tpu_custom_call.1} parent=1 // pred_check
      _
    $region43: #{tpu_custom_call.1} parent=1 // pred_check_branch
      %116 = sbr.rel (0) target = $region45
    $region44: #{tpu_custom_call.1} parent=1 // pred_region
      _
    $region45: #{tpu_custom_call.1} parent=1 // pred_fallthru
      _
    // Predicated region
    $region46: #{tpu_custom_call.1} parent=1 // pred_check
      _
    $region47: #{tpu_custom_call.1} parent=1 // pred_check_branch
      %118 = sbr.rel (0) target = $region49
    $region48: #{tpu_custom_call.1} parent=1 // pred_region
      %s120 = ssub.s32 1024, 1024
      %121 = vsyncadd [#allocation12], %s120
      %s122 = sshll.u32 [#allocation13], 4
      %s123 = int_to_ptr.vmem [resolvable:$true] %s122
      %128 = dma.hbm_to_vmem [thread:$0]  %s11, 1024, %s123, [#allocation12], 64, 64, 4
    $region49: #{tpu_custom_call.1} parent=1 // pred_fallthru
      _
    // Predicated region
    $region50: #{tpu_custom_call.1} parent=1 // pred_check
      _
    $region51: #{tpu_custom_call.1} parent=1 // pred_check_branch
      %130 = sbr.rel (0) target = $region53
    $region52: #{tpu_custom_call.1} parent=1 // pred_region
      _
    $region53: #{tpu_custom_call.1} parent=1 // pred_fallthru
      _
    // Predicated region
    $region54: #{tpu_custom_call.1} parent=1 // pred_check
      _
    $region55: #{tpu_custom_call.1} parent=1 // pred_check_branch
      %132 = sbr.rel (0) target = $region57
    $region56: #{tpu_custom_call.1} parent=1 // pred_region
      %s134 = ssub.s32 1024, 1024
      %135 = vsyncadd [#allocation15], %s134
      %s136 = sshll.u32 [#allocation14], 4
      %s137 = int_to_ptr.vmem [resolvable:$true] %s136
      %142 = dma.hbm_to_vmem [thread:$0]  %s13, 1024, %s137, [#allocation15], 64, 64, 4
    $region57: #{tpu_custom_call.1} parent=1 // pred_fallthru
      _
    // Predicated region
    $region58: #{tpu_custom_call.1} parent=1 // pred_check
      _
    $region59: #{tpu_custom_call.1} parent=1 // pred_check_branch
      %144 = sbr.rel (0) target = $region61
    $region60: #{tpu_custom_call.1} parent=1 // pred_region
      _
    $region61: #{tpu_custom_call.1} parent=1 // pred_fallthru
      _
    // Predicated region
    $region62: #{tpu_custom_call.1} parent=1 // pred_check
      _
    $region63: #{tpu_custom_call.1} parent=1 // pred_check_branch
      %146 = sbr.rel (0) target = $region65
    $region64: #{tpu_custom_call.1} parent=1 // pred_region
      %s148 = ssub.s32 1024, 1024
      %149 = vsyncadd [#allocation15], %s148
      %s150 = sshll.u32 [#allocation16], 4
      %s151 = int_to_ptr.vmem [resolvable:$true] %s150
      %156 = dma.hbm_to_vmem [thread:$0]  %s15, 1024, %s151, [#allocation15], 64, 64, 4
    $region65: #{tpu_custom_call.1} parent=1 // pred_fallthru
      _
    // Predicated region
    $region66: #{tpu_custom_call.1} parent=1 // pred_check
      _
    $region67: #{tpu_custom_call.1} parent=1 // pred_check_branch
      %158 = sbr.rel (0) target = $region69
    $region68: #{tpu_custom_call.1} parent=1 // pred_region
      _
    $region69: #{tpu_custom_call.1} parent=1 // pred_fallthru
      _
    // Predicated region
    $region70: #{tpu_custom_call.1} parent=1 // pred_check
      _
    $region71: #{tpu_custom_call.1} parent=1 // pred_check_branch
      %160 = sbr.rel (0) target = $region73
    $region72: #{tpu_custom_call.1} parent=1 // pred_region
      %161 = dma.done [#allocation3], 128
    $region73: #{tpu_custom_call.1} parent=1 // pred_fallthru
      _
    // Predicated region
    $region74: #{tpu_custom_call.1} parent=1 // pred_check
      _
    $region75: #{tpu_custom_call.1} parent=1 // pred_check_branch
      %163 = sbr.rel (0) target = $region77
    $region76: #{tpu_custom_call.1} parent=1 // pred_region
      %164 = dma.done [#allocation6], 1024
    $region77: #{tpu_custom_call.1} parent=1 // pred_fallthru
      _
    // Predicated region
    $region78: #{tpu_custom_call.1} parent=1 // pred_check
      _
    $region79: #{tpu_custom_call.1} parent=1 // pred_check_branch
      %166 = sbr.rel (0) target = $region81
    $region80: #{tpu_custom_call.1} parent=1 // pred_region
      %167 = dma.done [#allocation6], 1024
    $region81: #{tpu_custom_call.1} parent=1 // pred_fallthru
      _
    // Predicated region
    $region82: #{tpu_custom_call.1} parent=1 // pred_check
      _
    $region83: #{tpu_custom_call.1} parent=1 // pred_check_branch
      %169 = sbr.rel (0) target = $region85
    $region84: #{tpu_custom_call.1} parent=1 // pred_region
      %170 = dma.done [#allocation9], 1024
    $region85: #{tpu_custom_call.1} parent=1 // pred_fallthru
      _
    // Predicated region
    $region86: #{tpu_custom_call.1} parent=1 // pred_check
      _
    $region87: #{tpu_custom_call.1} parent=1 // pred_check_branch
      %172 = sbr.rel (0) target = $region89
    $region88: #{tpu_custom_call.1} parent=1 // pred_region
      %173 = dma.done [#allocation9], 1024
    $region89: #{tpu_custom_call.1} parent=1 // pred_fallthru
      _
    // Predicated region
    $region90: #{tpu_custom_call.1} parent=1 // pred_check
      _
    $region91: #{tpu_custom_call.1} parent=1 // pred_check_branch
      %175 = sbr.rel (0) target = $region93
    $region92: #{tpu_custom_call.1} parent=1 // pred_region
      %176 = dma.done [#allocation12], 1024
    $region93: #{tpu_custom_call.1} parent=1 // pred_fallthru
      _
    // Predicated region
    $region94: #{tpu_custom_call.1} parent=1 // pred_check
      _
    $region95: #{tpu_custom_call.1} parent=1 // pred_check_branch
      %178 = sbr.rel (0) target = $region97
    $region96: #{tpu_custom_call.1} parent=1 // pred_region
      %179 = dma.done [#allocation12], 1024
    $region97: #{tpu_custom_call.1} parent=1 // pred_fallthru
      _
    // Predicated region
    $region98: #{tpu_custom_call.1} parent=1 // pred_check
      _
    $region99: #{tpu_custom_call.1} parent=1 // pred_check_branch
      %181 = sbr.rel (0) target = $region101
    $region100: #{tpu_custom_call.1} parent=1 // pred_region
      %182 = dma.done [#allocation15], 1024
    $region101: #{tpu_custom_call.1} parent=1 // pred_fallthru
      _
    // Predicated region
    $region102: #{tpu_custom_call.1} parent=1 // pred_check
      _
    $region103: #{tpu_custom_call.1} parent=1 // pred_check_branch
      %184 = sbr.rel (0) target = $region105
    $region104: #{tpu_custom_call.1} parent=1 // pred_region
      %185 = dma.done [#allocation15], 1024
    $region105: #{tpu_custom_call.1} parent=1 // pred_fallthru
      _
    %v187 = vld [vmem:[#allocation2] sm:$0xf]
    %v188 = vld [vmem:[#allocation2 + $0x4] sm:$0xf]
    %v189 = vld [vmem:[#allocation5] sm:$0xf]
    %v190 = vld [vmem:[#allocation5 + $0x4] sm:$0xf]
    %v191 = vld [vmem:[#allocation5 + $0x8] sm:$0xf]
    %v192 = vld [vmem:[#allocation5 + $0xc] sm:$0xf]
    %v193 = vld [vmem:[#allocation5 + $0x10] sm:$0xf]
    %v194 = vld [vmem:[#allocation5 + $0x14] sm:$0xf]
    %v195 = vld [vmem:[#allocation5 + $0x18] sm:$0xf]
    %v196 = vld [vmem:[#allocation5 + $0x1c] sm:$0xf]
    %v197 = vld [vmem:[#allocation5 + $0x20] sm:$0xf]
    %v198 = vld [vmem:[#allocation5 + $0x24] sm:$0xf]
    %v199 = vld [vmem:[#allocation5 + $0x28] sm:$0xf]
    %v200 = vld [vmem:[#allocation5 + $0x2c] sm:$0xf]
    %v201 = vld [vmem:[#allocation5 + $0x30] sm:$0xf]
    %v202 = vld [vmem:[#allocation5 + $0x34] sm:$0xf]
    %v203 = vld [vmem:[#allocation5 + $0x38] sm:$0xf]
    %v204 = vld [vmem:[#allocation5 + $0x3c] sm:$0xf]
    %v205 = vld [vmem:[%s2] sm:$0x1]
    %v207 = vlaneseq
    %v208 = vshrl.u32 %v207, 7
    %v209 = vsub.s32 0, %v208
    %v210 = vrot.slane %v205, %v209
    %v214 = vunpack.c.l.b16 %v187
    %v215 = vunpack.c.l.b16 %v188
    %v216 = vpack.c.b16 %v215, %v214
    %v234 = vunpack.c.l.b16 %v189
    %v235 = vunpack.c.l.b16 %v190
    %v236 = vunpack.c.l.b16 %v191
    %v237 = vunpack.c.l.b16 %v192
    %v238 = vunpack.c.l.b16 %v193
    %v239 = vunpack.c.l.b16 %v194
    %v240 = vunpack.c.l.b16 %v195
    %v241 = vunpack.c.l.b16 %v196
    %v242 = vunpack.c.l.b16 %v197
    %v243 = vunpack.c.l.b16 %v198
    %v244 = vunpack.c.l.b16 %v199
    %v245 = vunpack.c.l.b16 %v200
    %v246 = vunpack.c.l.b16 %v201
    %v247 = vunpack.c.l.b16 %v202
    %v248 = vunpack.c.l.b16 %v203
    %v249 = vunpack.c.l.b16 %v204
    %v250 = vpack.c.b16 %v235, %v234
    %v251 = vpack.c.b16 %v237, %v236
    %v252 = vpack.c.b16 %v239, %v238
    %v253 = vpack.c.b16 %v241, %v240
    %v254 = vpack.c.b16 %v243, %v242
    %v255 = vpack.c.b16 %v245, %v244
    %v256 = vpack.c.b16 %v247, %v246
    %v257 = vpack.c.b16 %v249, %v248
    %266 = vmatprep.subr.bf16.mxu0 0
    %267 = vmatpush1.bf16.msra.mxu0 %v250
    %268 = vmatprep.subr.bf16.mxu0 0
    %269 = vmatpush1.bf16.msra.mxu0 %v251
    %270 = vmatprep.subr.bf16.mxu0 0
    %271 = vmatpush1.bf16.msra.mxu0 %v252
    %272 = vmatprep.subr.bf16.mxu0 0
    %273 = vmatpush1.bf16.msra.mxu0 %v253
    %274 = vmatprep.subr.bf16.mxu0 0
    %275 = vmatpush1.bf16.msra.mxu0 %v254
    %276 = vmatprep.subr.bf16.mxu0 0
    %277 = vmatpush1.bf16.msra.mxu0 %v255
    %278 = vmatprep.subr.bf16.mxu0 0
    %279 = vmatpush1.bf16.msra.mxu0 %v256
    %280 = vmatprep.subr.bf16.mxu0 0
    %281 = vmatpush1.bf16.msra.mxu0 %v257
    %282 = vmatprep.subr.bf16.mxu0 0
    %283 = vmatpush1.bf16.msra.mxu0 0
    %284 = vmatprep.subr.bf16.mxu0 0
    %285 = vmatpush1.bf16.msra.mxu0 0
    %286 = vmatprep.subr.bf16.mxu0 0
    %287 = vmatpush1.bf16.msra.mxu0 0
    %288 = vmatprep.subr.bf16.mxu0 0
    %289 = vmatpush1.bf16.msra.mxu0 0
    %290 = vmatprep.subr.bf16.mxu0 0
    %291 = vmatpush1.bf16.msra.mxu0 0
    %292 = vmatprep.subr.bf16.mxu0 0
    %293 = vmatpush1.bf16.msra.mxu0 0
    %294 = vmatprep.subr.bf16.mxu0 0
    %295 = vmatpush1.bf16.msra.mxu0 0
    %296 = vmatprep.subr.bf16.mxu0 0
    %297 = vmatpush1.bf16.msra.mxu0 0
    %298 = vmatprep.mubr.bf16.mxu0 0
    %299 = vmatmul.mubr.bf16.gmra.mrb[0].mxu0 %v216
    %v300 = vpop.f32.mrb[0].mxu0
    %v301 = vadd.f32 %v210, %v300
    %v302 = vpop.f32.mrb[0].mxu0
    %v303 = vpop.f32.mrb[0].mxu0
    %v304 = vadd.f32 %v210, %v303
    %v305 = vpop.f32.mrb[0].mxu0
    %306 = vdwg.mxu0
    %v307 = vmax.f32 %v301, 0.0
    %v308 = vmax.f32 %v304, 0.0
    %v309 = vpack.c.bf16 %v308, %v307
    %v311 = vunpack.c.l.b16 %v309
    %v312 = vunpack.c.h.b16 %v309
    %v313 = vpack.c.b16 %v311, %v311
    %v314 = vpack.c.b16 %v312, %v312
    %317 = vst [vmem:[#allocation18] sm:$0xf] %v313
    %318 = vst [vmem:[#allocation18 + $0x4] sm:$0xf] %v314
    %v319 = vld [vmem:[#allocation7] sm:$0xf]
    %v320 = vld [vmem:[#allocation7 + $0x4] sm:$0xf]
    %v321 = vld [vmem:[#allocation7 + $0x8] sm:$0xf]
    %v322 = vld [vmem:[#allocation7 + $0xc] sm:$0xf]
    %v323 = vld [vmem:[#allocation7 + $0x10] sm:$0xf]
    %v324 = vld [vmem:[#allocation7 + $0x14] sm:$0xf]
    %v325 = vld [vmem:[#allocation7 + $0x18] sm:$0xf]
    %v326 = vld [vmem:[#allocation7 + $0x1c] sm:$0xf]
    %v327 = vld [vmem:[#allocation7 + $0x20] sm:$0xf]
    %v328 = vld [vmem:[#allocation7 + $0x24] sm:$0xf]
    %v329 = vld [vmem:[#allocation7 + $0x28] sm:$0xf]
    %v330 = vld [vmem:[#allocation7 + $0x2c] sm:$0xf]
    %v331 = vld [vmem:[#allocation7 + $0x30] sm:$0xf]
    %v332 = vld [vmem:[#allocation7 + $0x34] sm:$0xf]
    %v333 = vld [vmem:[#allocation7 + $0x38] sm:$0xf]
    %v334 = vld [vmem:[#allocation7 + $0x3c] sm:$0xf]
    %v335 = vld [vmem:[%s4] sm:$0x1]
    %v337 = vlaneseq
    %v338 = vshrl.u32 %v337, 7
    %v339 = vsub.s32 0, %v338
    %v340 = vrot.slane %v335, %v339
    %v358 = vunpack.c.l.b16 %v319
    %v359 = vunpack.c.l.b16 %v320
    %v360 = vunpack.c.l.b16 %v321
    %v361 = vunpack.c.l.b16 %v322
    %v362 = vunpack.c.l.b16 %v323
    %v363 = vunpack.c.l.b16 %v324
    %v364 = vunpack.c.l.b16 %v325
    %v365 = vunpack.c.l.b16 %v326
    %v366 = vunpack.c.l.b16 %v327
    %v367 = vunpack.c.l.b16 %v328
    %v368 = vunpack.c.l.b16 %v329
    %v369 = vunpack.c.l.b16 %v330
    %v370 = vunpack.c.l.b16 %v331
    %v371 = vunpack.c.l.b16 %v332
    %v372 = vunpack.c.l.b16 %v333
    %v373 = vunpack.c.l.b16 %v334
    %v374 = vpack.c.b16 %v359, %v358
    %v375 = vpack.c.b16 %v361, %v360
    %v376 = vpack.c.b16 %v363, %v362
    %v377 = vpack.c.b16 %v365, %v364
    %v378 = vpack.c.b16 %v367, %v366
    %v379 = vpack.c.b16 %v369, %v368
    %v380 = vpack.c.b16 %v371, %v370
    %v381 = vpack.c.b16 %v373, %v372
    %390 = vmatprep.subr.bf16.mxu0 0
    %391 = vmatpush1.bf16.msra.mxu0 %v374
    %392 = vmatprep.subr.bf16.mxu0 0
    %393 = vmatpush1.bf16.msra.mxu0 %v375
    %394 = vmatprep.subr.bf16.mxu0 0
    %395 = vmatpush1.bf16.msra.mxu0 %v376
    %396 = vmatprep.subr.bf16.mxu0 0
    %397 = vmatpush1.bf16.msra.mxu0 %v377
    %398 = vmatprep.subr.bf16.mxu0 0
    %399 = vmatpush1.bf16.msra.mxu0 %v378
    %400 = vmatprep.subr.bf16.mxu0 0
    %401 = vmatpush1.bf16.msra.mxu0 %v379
    %402 = vmatprep.subr.bf16.mxu0 0
    %403 = vmatpush1.bf16.msra.mxu0 %v380
    %404 = vmatprep.subr.bf16.mxu0 0
    %405 = vmatpush1.bf16.msra.mxu0 %v381
    %406 = vmatprep.subr.bf16.mxu0 0
    %407 = vmatpush1.bf16.msra.mxu0 0
    %408 = vmatprep.subr.bf16.mxu0 0
    %409 = vmatpush1.bf16.msra.mxu0 0
    %410 = vmatprep.subr.bf16.mxu0 0
    %411 = vmatpush1.bf16.msra.mxu0 0
    %412 = vmatprep.subr.bf16.mxu0 0
    %413 = vmatpush1.bf16.msra.mxu0 0
    %414 = vmatprep.subr.bf16.mxu0 0
    %415 = vmatpush1.bf16.msra.mxu0 0
    %416 = vmatprep.subr.bf16.mxu0 0
    %417 = vmatpush1.bf16.msra.mxu0 0
    %418 = vmatprep.subr.bf16.mxu0 0
    %419 = vmatpush1.bf16.msra.mxu0 0
    %420 = vmatprep.subr.bf16.mxu0 0
    %421 = vmatpush1.bf16.msra.mxu0 0
    %422 = vmatprep.mubr.bf16.mxu0 0
    %423 = vmatmul.mubr.bf16.gmra.mrb[0].mxu0 %v309
    %v424 = vpop.f32.mrb[0].mxu0
    %v425 = vadd.f32 %v340, %v424
    %v426 = vpop.f32.mrb[0].mxu0
    %v427 = vpop.f32.mrb[0].mxu0
    %v428 = vadd.f32 %v340, %v427
    %v429 = vpop.f32.mrb[0].mxu0
    %430 = vdwg.mxu0
    %v431 = vmax.f32 %v425, 0.0
    %v432 = vmax.f32 %v428, 0.0
    %v433 = vpack.c.bf16 %v432, %v431
    %v435 = vunpack.c.l.b16 %v433
    %v436 = vunpack.c.h.b16 %v433
    %v437 = vpack.c.b16 %v435, %v435
    %v438 = vpack.c.b16 %v436, %v436
    %441 = vst [vmem:[#allocation20] sm:$0xf] %v437
    %442 = vst [vmem:[#allocation20 + $0x4] sm:$0xf] %v438
    %v443 = vld [vmem:[#allocation8] sm:$0xf]
    %v444 = vld [vmem:[#allocation8 + $0x4] sm:$0xf]
    %v445 = vld [vmem:[#allocation8 + $0x8] sm:$0xf]
    %v446 = vld [vmem:[#allocation8 + $0xc] sm:$0xf]
    %v447 = vld [vmem:[#allocation8 + $0x10] sm:$0xf]
    %v448 = vld [vmem:[#allocation8 + $0x14] sm:$0xf]
    %v449 = vld [vmem:[#allocation8 + $0x18] sm:$0xf]
    %v450 = vld [vmem:[#allocation8 + $0x1c] sm:$0xf]
    %v451 = vld [vmem:[#allocation8 + $0x20] sm:$0xf]
    %v452 = vld [vmem:[#allocation8 + $0x24] sm:$0xf]
    %v453 = vld [vmem:[#allocation8 + $0x28] sm:$0xf]
    %v454 = vld [vmem:[#allocation8 + $0x2c] sm:$0xf]
    %v455 = vld [vmem:[#allocation8 + $0x30] sm:$0xf]
    %v456 = vld [vmem:[#allocation8 + $0x34] sm:$0xf]
    %v457 = vld [vmem:[#allocation8 + $0x38] sm:$0xf]
    %v458 = vld [vmem:[#allocation8 + $0x3c] sm:$0xf]
    %v459 = vld [vmem:[%s6] sm:$0x1]
    %v461 = vlaneseq
    %v462 = vshrl.u32 %v461, 7
    %v463 = vsub.s32 0, %v462
    %v464 = vrot.slane %v459, %v463
    %v482 = vunpack.c.l.b16 %v443
    %v483 = vunpack.c.l.b16 %v444
    %v484 = vunpack.c.l.b16 %v445
    %v485 = vunpack.c.l.b16 %v446
    %v486 = vunpack.c.l.b16 %v447
    %v487 = vunpack.c.l.b16 %v448
    %v488 = vunpack.c.l.b16 %v449
    %v489 = vunpack.c.l.b16 %v450
    %v490 = vunpack.c.l.b16 %v451
    %v491 = vunpack.c.l.b16 %v452
    %v492 = vunpack.c.l.b16 %v453
    %v493 = vunpack.c.l.b16 %v454
    %v494 = vunpack.c.l.b16 %v455
    %v495 = vunpack.c.l.b16 %v456
    %v496 = vunpack.c.l.b16 %v457
    %v497 = vunpack.c.l.b16 %v458
    %v498 = vpack.c.b16 %v483, %v482
    %v499 = vpack.c.b16 %v485, %v484
    %v500 = vpack.c.b16 %v487, %v486
    %v501 = vpack.c.b16 %v489, %v488
    %v502 = vpack.c.b16 %v491, %v490
    %v503 = vpack.c.b16 %v493, %v492
    %v504 = vpack.c.b16 %v495, %v494
    %v505 = vpack.c.b16 %v497, %v496
    %514 = vmatprep.subr.bf16.mxu0 0
    %515 = vmatpush1.bf16.msra.mxu0 %v498
    %516 = vmatprep.subr.bf16.mxu0 0
    %517 = vmatpush1.bf16.msra.mxu0 %v499
    %518 = vmatprep.subr.bf16.mxu0 0
    %519 = vmatpush1.bf16.msra.mxu0 %v500
    %520 = vmatprep.subr.bf16.mxu0 0
    %521 = vmatpush1.bf16.msra.mxu0 %v501
    %522 = vmatprep.subr.bf16.mxu0 0
    %523 = vmatpush1.bf16.msra.mxu0 %v502
    %524 = vmatprep.subr.bf16.mxu0 0
    %525 = vmatpush1.bf16.msra.mxu0 %v503
    %526 = vmatprep.subr.bf16.mxu0 0
    %527 = vmatpush1.bf16.msra.mxu0 %v504
    %528 = vmatprep.subr.bf16.mxu0 0
    %529 = vmatpush1.bf16.msra.mxu0 %v505
    %530 = vmatprep.subr.bf16.mxu0 0
    %531 = vmatpush1.bf16.msra.mxu0 0
    %532 = vmatprep.subr.bf16.mxu0 0
    %533 = vmatpush1.bf16.msra.mxu0 0
    %534 = vmatprep.subr.bf16.mxu0 0
    %535 = vmatpush1.bf16.msra.mxu0 0
    %536 = vmatprep.subr.bf16.mxu0 0
    %537 = vmatpush1.bf16.msra.mxu0 0
    %538 = vmatprep.subr.bf16.mxu0 0
    %539 = vmatpush1.bf16.msra.mxu0 0
    %540 = vmatprep.subr.bf16.mxu0 0
    %541 = vmatpush1.bf16.msra.mxu0 0
    %542 = vmatprep.subr.bf16.mxu0 0
    %543 = vmatpush1.bf16.msra.mxu0 0
    %544 = vmatprep.subr.bf16.mxu0 0
    %545 = vmatpush1.bf16.msra.mxu0 0
    %546 = vmatprep.mubr.bf16.mxu0 0
    %547 = vmatmul.mubr.bf16.gmra.mrb[0].mxu0 %v433
    %v548 = vpop.f32.mrb[0].mxu0
    %v549 = vadd.f32 %v464, %v548
    %v550 = vpop.f32.mrb[0].mxu0
    %v551 = vpop.f32.mrb[0].mxu0
    %v552 = vadd.f32 %v464, %v551
    %v553 = vpop.f32.mrb[0].mxu0
    %554 = vdwg.mxu0
    %v555 = vmax.f32 %v549, 0.0
    %v556 = vmax.f32 %v552, 0.0
    %v557 = vpack.c.bf16 %v556, %v555
    %v559 = vunpack.c.l.b16 %v557
    %v560 = vunpack.c.h.b16 %v557
    %v561 = vpack.c.b16 %v559, %v559
    %v562 = vpack.c.b16 %v560, %v560
    %565 = vst [vmem:[#allocation21] sm:$0xf] %v561
    %566 = vst [vmem:[#allocation21 + $0x4] sm:$0xf] %v562
    %v567 = vld [vmem:[#allocation10] sm:$0xf]
    %v568 = vld [vmem:[#allocation10 + $0x4] sm:$0xf]
    %v569 = vld [vmem:[#allocation10 + $0x8] sm:$0xf]
    %v570 = vld [vmem:[#allocation10 + $0xc] sm:$0xf]
    %v571 = vld [vmem:[#allocation10 + $0x10] sm:$0xf]
    %v572 = vld [vmem:[#allocation10 + $0x14] sm:$0xf]
    %v573 = vld [vmem:[#allocation10 + $0x18] sm:$0xf]
    %v574 = vld [vmem:[#allocation10 + $0x1c] sm:$0xf]
    %v575 = vld [vmem:[#allocation10 + $0x20] sm:$0xf]
    %v576 = vld [vmem:[#allocation10 + $0x24] sm:$0xf]
    %v577 = vld [vmem:[#allocation10 + $0x28] sm:$0xf]
    %v578 = vld [vmem:[#allocation10 + $0x2c] sm:$0xf]
    %v579 = vld [vmem:[#allocation10 + $0x30] sm:$0xf]
    %v580 = vld [vmem:[#allocation10 + $0x34] sm:$0xf]
    %v581 = vld [vmem:[#allocation10 + $0x38] sm:$0xf]
    %v582 = vld [vmem:[#allocation10 + $0x3c] sm:$0xf]
    %v583 = vld [vmem:[%s8] sm:$0x1]
    %v585 = vlaneseq
    %v586 = vshrl.u32 %v585, 7
    %v587 = vsub.s32 0, %v586
    %v588 = vrot.slane %v583, %v587
    %v606 = vunpack.c.l.b16 %v567
    %v607 = vunpack.c.l.b16 %v568
    %v608 = vunpack.c.l.b16 %v569
    %v609 = vunpack.c.l.b16 %v570
    %v610 = vunpack.c.l.b16 %v571
    %v611 = vunpack.c.l.b16 %v572
    %v612 = vunpack.c.l.b16 %v573
    %v613 = vunpack.c.l.b16 %v574
    %v614 = vunpack.c.l.b16 %v575
    %v615 = vunpack.c.l.b16 %v576
    %v616 = vunpack.c.l.b16 %v577
    %v617 = vunpack.c.l.b16 %v578
    %v618 = vunpack.c.l.b16 %v579
    %v619 = vunpack.c.l.b16 %v580
    %v620 = vunpack.c.l.b16 %v581
    %v621 = vunpack.c.l.b16 %v582
    %v622 = vpack.c.b16 %v607, %v606
    %v623 = vpack.c.b16 %v609, %v608
    %v624 = vpack.c.b16 %v611, %v610
    %v625 = vpack.c.b16 %v613, %v612
    %v626 = vpack.c.b16 %v615, %v614
    %v627 = vpack.c.b16 %v617, %v616
    %v628 = vpack.c.b16 %v619, %v618
    %v629 = vpack.c.b16 %v621, %v620
    %638 = vmatprep.subr.bf16.mxu0 0
    %639 = vmatpush1.bf16.msra.mxu0 %v622
    %640 = vmatprep.subr.bf16.mxu0 0
    %641 = vmatpush1.bf16.msra.mxu0 %v623
    %642 = vmatprep.subr.bf16.mxu0 0
    %643 = vmatpush1.bf16.msra.mxu0 %v624
    %644 = vmatprep.subr.bf16.mxu0 0
    %645 = vmatpush1.bf16.msra.mxu0 %v625
    %646 = vmatprep.subr.bf16.mxu0 0
    %647 = vmatpush1.bf16.msra.mxu0 %v626
    %648 = vmatprep.subr.bf16.mxu0 0
    %649 = vmatpush1.bf16.msra.mxu0 %v627
    %650 = vmatprep.subr.bf16.mxu0 0
    %651 = vmatpush1.bf16.msra.mxu0 %v628
    %652 = vmatprep.subr.bf16.mxu0 0
    %653 = vmatpush1.bf16.msra.mxu0 %v629
    %654 = vmatprep.subr.bf16.mxu0 0
    %655 = vmatpush1.bf16.msra.mxu0 0
    %656 = vmatprep.subr.bf16.mxu0 0
    %657 = vmatpush1.bf16.msra.mxu0 0
    %658 = vmatprep.subr.bf16.mxu0 0
    %659 = vmatpush1.bf16.msra.mxu0 0
    %660 = vmatprep.subr.bf16.mxu0 0
    %661 = vmatpush1.bf16.msra.mxu0 0
    %662 = vmatprep.subr.bf16.mxu0 0
    %663 = vmatpush1.bf16.msra.mxu0 0
    %664 = vmatprep.subr.bf16.mxu0 0
    %665 = vmatpush1.bf16.msra.mxu0 0
    %666 = vmatprep.subr.bf16.mxu0 0
    %667 = vmatpush1.bf16.msra.mxu0 0
    %668 = vmatprep.subr.bf16.mxu0 0
    %669 = vmatpush1.bf16.msra.mxu0 0
    %670 = vmatprep.mubr.bf16.mxu0 0
    %671 = vmatmul.mubr.bf16.gmra.mrb[0].mxu0 %v557
    %v672 = vpop.f32.mrb[0].mxu0
    %v673 = vadd.f32 %v588, %v672
    %v674 = vpop.f32.mrb[0].mxu0
    %v675 = vpop.f32.mrb[0].mxu0
    %v676 = vadd.f32 %v588, %v675
    %v677 = vpop.f32.mrb[0].mxu0
    %678 = vdwg.mxu0
    %v679 = vpack.c.bf16 %v676, %v673
    %v681 = vunpack.c.l.b16 %v679
    %v682 = vunpack.c.h.b16 %v679
    %v683 = vpack.c.b16 %v681, %v681
    %v684 = vpack.c.b16 %v682, %v682
    %687 = vst [vmem:[#allocation23] sm:$0xf] %v683
    %688 = vst [vmem:[#allocation23 + $0x4] sm:$0xf] %v684
    %v689 = vld [vmem:[#allocation11] sm:$0xf]
    %v690 = vld [vmem:[#allocation11 + $0x4] sm:$0xf]
    %v691 = vld [vmem:[#allocation11 + $0x8] sm:$0xf]
    %v692 = vld [vmem:[#allocation11 + $0xc] sm:$0xf]
    %v693 = vld [vmem:[#allocation11 + $0x10] sm:$0xf]
    %v694 = vld [vmem:[#allocation11 + $0x14] sm:$0xf]
    %v695 = vld [vmem:[#allocation11 + $0x18] sm:$0xf]
    %v696 = vld [vmem:[#allocation11 + $0x1c] sm:$0xf]
    %v697 = vld [vmem:[#allocation11 + $0x20] sm:$0xf]
    %v698 = vld [vmem:[#allocation11 + $0x24] sm:$0xf]
    %v699 = vld [vmem:[#allocation11 + $0x28] sm:$0xf]
    %v700 = vld [vmem:[#allocation11 + $0x2c] sm:$0xf]
    %v701 = vld [vmem:[#allocation11 + $0x30] sm:$0xf]
    %v702 = vld [vmem:[#allocation11 + $0x34] sm:$0xf]
    %v703 = vld [vmem:[#allocation11 + $0x38] sm:$0xf]
    %v704 = vld [vmem:[#allocation11 + $0x3c] sm:$0xf]
    %v705 = vld [vmem:[%s10] sm:$0x1]
    %v707 = vlaneseq
    %v708 = vshrl.u32 %v707, 7
    %v709 = vsub.s32 0, %v708
    %v710 = vrot.slane %v705, %v709
    %v728 = vunpack.c.l.b16 %v689
    %v729 = vunpack.c.l.b16 %v690
    %v730 = vunpack.c.l.b16 %v691
    %v731 = vunpack.c.l.b16 %v692
    %v732 = vunpack.c.l.b16 %v693
    %v733 = vunpack.c.l.b16 %v694
    %v734 = vunpack.c.l.b16 %v695
    %v735 = vunpack.c.l.b16 %v696
    %v736 = vunpack.c.l.b16 %v697
    %v737 = vunpack.c.l.b16 %v698
    %v738 = vunpack.c.l.b16 %v699
    %v739 = vunpack.c.l.b16 %v700
    %v740 = vunpack.c.l.b16 %v701
    %v741 = vunpack.c.l.b16 %v702
    %v742 = vunpack.c.l.b16 %v703
    %v743 = vunpack.c.l.b16 %v704
    %v744 = vpack.c.b16 %v729, %v728
    %v745 = vpack.c.b16 %v731, %v730
    %v746 = vpack.c.b16 %v733, %v732
    %v747 = vpack.c.b16 %v735, %v734
    %v748 = vpack.c.b16 %v737, %v736
    %v749 = vpack.c.b16 %v739, %v738
    %v750 = vpack.c.b16 %v741, %v740
    %v751 = vpack.c.b16 %v743, %v742
    %760 = vmatprep.subr.bf16.mxu0 0
    %761 = vmatpush1.bf16.msra.mxu0 %v744
    %762 = vmatprep.subr.bf16.mxu0 0
    %763 = vmatpush1.bf16.msra.mxu0 %v745
    %764 = vmatprep.subr.bf16.mxu0 0
    %765 = vmatpush1.bf16.msra.mxu0 %v746
    %766 = vmatprep.subr.bf16.mxu0 0
    %767 = vmatpush1.bf16.msra.mxu0 %v747
    %768 = vmatprep.subr.bf16.mxu0 0
    %769 = vmatpush1.bf16.msra.mxu0 %v748
    %770 = vmatprep.subr.bf16.mxu0 0
    %771 = vmatpush1.bf16.msra.mxu0 %v749
    %772 = vmatprep.subr.bf16.mxu0 0
    %773 = vmatpush1.bf16.msra.mxu0 %v750
    %774 = vmatprep.subr.bf16.mxu0 0
    %775 = vmatpush1.bf16.msra.mxu0 %v751
    %776 = vmatprep.subr.bf16.mxu0 0
    %777 = vmatpush1.bf16.msra.mxu0 0
    %778 = vmatprep.subr.bf16.mxu0 0
    %779 = vmatpush1.bf16.msra.mxu0 0
    %780 = vmatprep.subr.bf16.mxu0 0
    %781 = vmatpush1.bf16.msra.mxu0 0
    %782 = vmatprep.subr.bf16.mxu0 0
    %783 = vmatpush1.bf16.msra.mxu0 0
    %784 = vmatprep.subr.bf16.mxu0 0
    %785 = vmatpush1.bf16.msra.mxu0 0
    %786 = vmatprep.subr.bf16.mxu0 0
    %787 = vmatpush1.bf16.msra.mxu0 0
    %788 = vmatprep.subr.bf16.mxu0 0
    %789 = vmatpush1.bf16.msra.mxu0 0
    %790 = vmatprep.subr.bf16.mxu0 0
    %791 = vmatpush1.bf16.msra.mxu0 0
    %792 = vmatprep.mubr.bf16.mxu0 0
    %793 = vmatmul.mubr.bf16.gmra.mrb[0].mxu0 %v679
    %v794 = vpop.f32.mrb[0].mxu0
    %v795 = vadd.f32 %v710, %v794
    %v796 = vpop.f32.mrb[0].mxu0
    %v797 = vpop.f32.mrb[0].mxu0
    %v798 = vadd.f32 %v710, %v797
    %v799 = vpop.f32.mrb[0].mxu0
    %800 = vdwg.mxu0
    %v801 = vmax.f32 %v795, 0.0
    %v802 = vmax.f32 %v798, 0.0
    %v803 = vpack.c.bf16 %v802, %v801
    %v804 = vld [vmem:[#allocation13] sm:$0xf]
    %v805 = vld [vmem:[#allocation13 + $0x4] sm:$0xf]
    %v806 = vld [vmem:[#allocation13 + $0x8] sm:$0xf]
    %v807 = vld [vmem:[#allocation13 + $0xc] sm:$0xf]
    %v808 = vld [vmem:[#allocation13 + $0x10] sm:$0xf]
    %v809 = vld [vmem:[#allocation13 + $0x14] sm:$0xf]
    %v810 = vld [vmem:[#allocation13 + $0x18] sm:$0xf]
    %v811 = vld [vmem:[#allocation13 + $0x1c] sm:$0xf]
    %v812 = vld [vmem:[#allocation13 + $0x20] sm:$0xf]
    %v813 = vld [vmem:[#allocation13 + $0x24] sm:$0xf]
    %v814 = vld [vmem:[#allocation13 + $0x28] sm:$0xf]
    %v815 = vld [vmem:[#allocation13 + $0x2c] sm:$0xf]
    %v816 = vld [vmem:[#allocation13 + $0x30] sm:$0xf]
    %v817 = vld [vmem:[#allocation13 + $0x34] sm:$0xf]
    %v818 = vld [vmem:[#allocation13 + $0x38] sm:$0xf]
    %v819 = vld [vmem:[#allocation13 + $0x3c] sm:$0xf]
    %v820 = vld [vmem:[%s12] sm:$0x1]
    %v822 = vlaneseq
    %v823 = vshrl.u32 %v822, 7
    %v824 = vsub.s32 0, %v823
    %v825 = vrot.slane %v820, %v824
    %v843 = vunpack.c.l.b16 %v804
    %v844 = vunpack.c.l.b16 %v805
    %v845 = vunpack.c.l.b16 %v806
    %v846 = vunpack.c.l.b16 %v807
    %v847 = vunpack.c.l.b16 %v808
    %v848 = vunpack.c.l.b16 %v809
    %v849 = vunpack.c.l.b16 %v810
    %v850 = vunpack.c.l.b16 %v811
    %v851 = vunpack.c.l.b16 %v812
    %v852 = vunpack.c.l.b16 %v813
    %v853 = vunpack.c.l.b16 %v814
    %v854 = vunpack.c.l.b16 %v815
    %v855 = vunpack.c.l.b16 %v816
    %v856 = vunpack.c.l.b16 %v817
    %v857 = vunpack.c.l.b16 %v818
    %v858 = vunpack.c.l.b16 %v819
    %v859 = vpack.c.b16 %v844, %v843
    %v860 = vpack.c.b16 %v846, %v845
    %v861 = vpack.c.b16 %v848, %v847
    %v862 = vpack.c.b16 %v850, %v849
    %v863 = vpack.c.b16 %v852, %v851
    %v864 = vpack.c.b16 %v854, %v853
    %v865 = vpack.c.b16 %v856, %v855
    %v866 = vpack.c.b16 %v858, %v857
    %875 = vmatprep.subr.bf16.mxu0 0
    %876 = vmatpush1.bf16.msra.mxu0 %v859
    %877 = vmatprep.subr.bf16.mxu0 0
    %878 = vmatpush1.bf16.msra.mxu0 %v860
    %879 = vmatprep.subr.bf16.mxu0 0
    %880 = vmatpush1.bf16.msra.mxu0 %v861
    %881 = vmatprep.subr.bf16.mxu0 0
    %882 = vmatpush1.bf16.msra.mxu0 %v862
    %883 = vmatprep.subr.bf16.mxu0 0
    %884 = vmatpush1.bf16.msra.mxu0 %v863
    %885 = vmatprep.subr.bf16.mxu0 0
    %886 = vmatpush1.bf16.msra.mxu0 %v864
    %887 = vmatprep.subr.bf16.mxu0 0
    %888 = vmatpush1.bf16.msra.mxu0 %v865
    %889 = vmatprep.subr.bf16.mxu0 0
    %890 = vmatpush1.bf16.msra.mxu0 %v866
    %891 = vmatprep.subr.bf16.mxu0 0
    %892 = vmatpush1.bf16.msra.mxu0 0
    %893 = vmatprep.subr.bf16.mxu0 0
    %894 = vmatpush1.bf16.msra.mxu0 0
    %895 = vmatprep.subr.bf16.mxu0 0
    %896 = vmatpush1.bf16.msra.mxu0 0
    %897 = vmatprep.subr.bf16.mxu0 0
    %898 = vmatpush1.bf16.msra.mxu0 0
    %899 = vmatprep.subr.bf16.mxu0 0
    %900 = vmatpush1.bf16.msra.mxu0 0
    %901 = vmatprep.subr.bf16.mxu0 0
    %902 = vmatpush1.bf16.msra.mxu0 0
    %903 = vmatprep.subr.bf16.mxu0 0
    %904 = vmatpush1.bf16.msra.mxu0 0
    %905 = vmatprep.subr.bf16.mxu0 0
    %906 = vmatpush1.bf16.msra.mxu0 0
    %907 = vmatprep.mubr.bf16.mxu0 0
    %908 = vmatmul.mubr.bf16.gmra.mrb[0].mxu0 %v803
    %v909 = vpop.f32.mrb[0].mxu0
    %v910 = vadd.f32 %v825, %v909
    %v911 = vpop.f32.mrb[0].mxu0
    %v912 = vpop.f32.mrb[0].mxu0
    %v913 = vadd.f32 %v825, %v912
    %v914 = vpop.f32.mrb[0].mxu0
    %915 = vdwg.mxu0
    %v916 = vmax.f32 %v910, 0.0
    %v917 = vmax.f32 %v913, 0.0
    %v918 = vpack.c.bf16 %v917, %v916
    %v919 = vld [vmem:[#allocation14] sm:$0xf]
    %v920 = vld [vmem:[#allocation14 + $0x4] sm:$0xf]
    %v921 = vld [vmem:[#allocation14 + $0x8] sm:$0xf]
    %v922 = vld [vmem:[#allocation14 + $0xc] sm:$0xf]
    %v923 = vld [vmem:[#allocation14 + $0x10] sm:$0xf]
    %v924 = vld [vmem:[#allocation14 + $0x14] sm:$0xf]
    %v925 = vld [vmem:[#allocation14 + $0x18] sm:$0xf]
    %v926 = vld [vmem:[#allocation14 + $0x1c] sm:$0xf]
    %v927 = vld [vmem:[#allocation14 + $0x20] sm:$0xf]
    %v928 = vld [vmem:[#allocation14 + $0x24] sm:$0xf]
    %v929 = vld [vmem:[#allocation14 + $0x28] sm:$0xf]
    %v930 = vld [vmem:[#allocation14 + $0x2c] sm:$0xf]
    %v931 = vld [vmem:[#allocation14 + $0x30] sm:$0xf]
    %v932 = vld [vmem:[#allocation14 + $0x34] sm:$0xf]
    %v933 = vld [vmem:[#allocation14 + $0x38] sm:$0xf]
    %v934 = vld [vmem:[#allocation14 + $0x3c] sm:$0xf]
    %v935 = vld [vmem:[%s14] sm:$0x1]
    %v937 = vlaneseq
    %v938 = vshrl.u32 %v937, 7
    %v939 = vsub.s32 0, %v938
    %v940 = vrot.slane %v935, %v939
    %v958 = vunpack.c.l.b16 %v919
    %v959 = vunpack.c.l.b16 %v920
    %v960 = vunpack.c.l.b16 %v921
    %v961 = vunpack.c.l.b16 %v922
    %v962 = vunpack.c.l.b16 %v923
    %v963 = vunpack.c.l.b16 %v924
    %v964 = vunpack.c.l.b16 %v925
    %v965 = vunpack.c.l.b16 %v926
    %v966 = vunpack.c.l.b16 %v927
    %v967 = vunpack.c.l.b16 %v928
    %v968 = vunpack.c.l.b16 %v929
    %v969 = vunpack.c.l.b16 %v930
    %v970 = vunpack.c.l.b16 %v931
    %v971 = vunpack.c.l.b16 %v932
    %v972 = vunpack.c.l.b16 %v933
    %v973 = vunpack.c.l.b16 %v934
    %v974 = vpack.c.b16 %v959, %v958
    %v975 = vpack.c.b16 %v961, %v960
    %v976 = vpack.c.b16 %v963, %v962
    %v977 = vpack.c.b16 %v965, %v964
    %v978 = vpack.c.b16 %v967, %v966
    %v979 = vpack.c.b16 %v969, %v968
    %v980 = vpack.c.b16 %v971, %v970
    %v981 = vpack.c.b16 %v973, %v972
    %990 = vmatprep.subr.bf16.mxu0 0
    %991 = vmatpush1.bf16.msra.mxu0 %v974
    %992 = vmatprep.subr.bf16.mxu0 0
    %993 = vmatpush1.bf16.msra.mxu0 %v975
    %994 = vmatprep.subr.bf16.mxu0 0
    %995 = vmatpush1.bf16.msra.mxu0 %v976
    %996 = vmatprep.subr.bf16.mxu0 0
    %997 = vmatpush1.bf16.msra.mxu0 %v977
    %998 = vmatprep.subr.bf16.mxu0 0
    %999 = vmatpush1.bf16.msra.mxu0 %v978
    %1000 = vmatprep.subr.bf16.mxu0 0
    %1001 = vmatpush1.bf16.msra.mxu0 %v979
    %1002 = vmatprep.subr.bf16.mxu0 0
    %1003 = vmatpush1.bf16.msra.mxu0 %v980
    %1004 = vmatprep.subr.bf16.mxu0 0
    %1005 = vmatpush1.bf16.msra.mxu0 %v981
    %1006 = vmatprep.subr.bf16.mxu0 0
    %1007 = vmatpush1.bf16.msra.mxu0 0
    %1008 = vmatprep.subr.bf16.mxu0 0
    %1009 = vmatpush1.bf16.msra.mxu0 0
    %1010 = vmatprep.subr.bf16.mxu0 0
    %1011 = vmatpush1.bf16.msra.mxu0 0
    %1012 = vmatprep.subr.bf16.mxu0 0
    %1013 = vmatpush1.bf16.msra.mxu0 0
    %1014 = vmatprep.subr.bf16.mxu0 0
    %1015 = vmatpush1.bf16.msra.mxu0 0
    %1016 = vmatprep.subr.bf16.mxu0 0
    %1017 = vmatpush1.bf16.msra.mxu0 0
    %1018 = vmatprep.subr.bf16.mxu0 0
    %1019 = vmatpush1.bf16.msra.mxu0 0
    %1020 = vmatprep.subr.bf16.mxu0 0
    %1021 = vmatpush1.bf16.msra.mxu0 0
    %1022 = vmatprep.mubr.bf16.mxu0 0
    %1023 = vmatmul.mubr.bf16.gmra.mrb[0].mxu0 %v918
    %v1024 = vpop.f32.mrb[0].mxu0
    %v1025 = vadd.f32 %v940, %v1024
    %v1026 = vpop.f32.mrb[0].mxu0
    %v1027 = vpop.f32.mrb[0].mxu0
    %v1028 = vadd.f32 %v940, %v1027
    %v1029 = vpop.f32.mrb[0].mxu0
    %1030 = vdwg.mxu0
    %v1031 = vmax.f32 %v1025, 0.0
    %v1032 = vmax.f32 %v1028, 0.0
    %v1033 = vpack.c.bf16 %v1032, %v1031
    %v1034 = vld [vmem:[#allocation16] sm:$0xf]
    %v1035 = vld [vmem:[#allocation16 + $0x4] sm:$0xf]
    %v1036 = vld [vmem:[#allocation16 + $0x8] sm:$0xf]
    %v1037 = vld [vmem:[#allocation16 + $0xc] sm:$0xf]
    %v1038 = vld [vmem:[#allocation16 + $0x10] sm:$0xf]
    %v1039 = vld [vmem:[#allocation16 + $0x14] sm:$0xf]
    %v1040 = vld [vmem:[#allocation16 + $0x18] sm:$0xf]
    %v1041 = vld [vmem:[#allocation16 + $0x1c] sm:$0xf]
    %v1042 = vld [vmem:[#allocation16 + $0x20] sm:$0xf]
    %v1043 = vld [vmem:[#allocation16 + $0x24] sm:$0xf]
    %v1044 = vld [vmem:[#allocation16 + $0x28] sm:$0xf]
    %v1045 = vld [vmem:[#allocation16 + $0x2c] sm:$0xf]
    %v1046 = vld [vmem:[#allocation16 + $0x30] sm:$0xf]
    %v1047 = vld [vmem:[#allocation16 + $0x34] sm:$0xf]
    %v1048 = vld [vmem:[#allocation16 + $0x38] sm:$0xf]
    %v1049 = vld [vmem:[#allocation16 + $0x3c] sm:$0xf]
    %v1050 = vld [vmem:[%s16] sm:$0x1]
    %v1052 = vlaneseq
    %v1053 = vshrl.u32 %v1052, 7
    %v1054 = vsub.s32 0, %v1053
    %v1055 = vrot.slane %v1050, %v1054
    %v1073 = vunpack.c.l.b16 %v1034
    %v1074 = vunpack.c.l.b16 %v1035
    %v1075 = vunpack.c.l.b16 %v1036
    %v1076 = vunpack.c.l.b16 %v1037
    %v1077 = vunpack.c.l.b16 %v1038
    %v1078 = vunpack.c.l.b16 %v1039
    %v1079 = vunpack.c.l.b16 %v1040
    %v1080 = vunpack.c.l.b16 %v1041
    %v1081 = vunpack.c.l.b16 %v1042
    %v1082 = vunpack.c.l.b16 %v1043
    %v1083 = vunpack.c.l.b16 %v1044
    %v1084 = vunpack.c.l.b16 %v1045
    %v1085 = vunpack.c.l.b16 %v1046
    %v1086 = vunpack.c.l.b16 %v1047
    %v1087 = vunpack.c.l.b16 %v1048
    %v1088 = vunpack.c.l.b16 %v1049
    %v1089 = vpack.c.b16 %v1074, %v1073
    %v1090 = vpack.c.b16 %v1076, %v1075
    %v1091 = vpack.c.b16 %v1078, %v1077
    %v1092 = vpack.c.b16 %v1080, %v1079
    %v1093 = vpack.c.b16 %v1082, %v1081
    %v1094 = vpack.c.b16 %v1084, %v1083
    %v1095 = vpack.c.b16 %v1086, %v1085
    %v1096 = vpack.c.b16 %v1088, %v1087
    %1105 = vmatprep.subr.bf16.mxu0 0
    %1106 = vmatpush1.bf16.msra.mxu0 %v1089
    %1107 = vmatprep.subr.bf16.mxu0 0
    %1108 = vmatpush1.bf16.msra.mxu0 %v1090
    %1109 = vmatprep.subr.bf16.mxu0 0
    %1110 = vmatpush1.bf16.msra.mxu0 %v1091
    %1111 = vmatprep.subr.bf16.mxu0 0
    %1112 = vmatpush1.bf16.msra.mxu0 %v1092
    %1113 = vmatprep.subr.bf16.mxu0 0
    %1114 = vmatpush1.bf16.msra.mxu0 %v1093
    %1115 = vmatprep.subr.bf16.mxu0 0
    %1116 = vmatpush1.bf16.msra.mxu0 %v1094
    %1117 = vmatprep.subr.bf16.mxu0 0
    %1118 = vmatpush1.bf16.msra.mxu0 %v1095
    %1119 = vmatprep.subr.bf16.mxu0 0
    %1120 = vmatpush1.bf16.msra.mxu0 %v1096
    %1121 = vmatprep.subr.bf16.mxu0 0
    %1122 = vmatpush1.bf16.msra.mxu0 0
    %1123 = vmatprep.subr.bf16.mxu0 0
    %1124 = vmatpush1.bf16.msra.mxu0 0
    %1125 = vmatprep.subr.bf16.mxu0 0
    %1126 = vmatpush1.bf16.msra.mxu0 0
    %1127 = vmatprep.subr.bf16.mxu0 0
    %1128 = vmatpush1.bf16.msra.mxu0 0
    %1129 = vmatprep.subr.bf16.mxu0 0
    %1130 = vmatpush1.bf16.msra.mxu0 0
    %1131 = vmatprep.subr.bf16.mxu0 0
    %1132 = vmatpush1.bf16.msra.mxu0 0
    %1133 = vmatprep.subr.bf16.mxu0 0
    %1134 = vmatpush1.bf16.msra.mxu0 0
    %1135 = vmatprep.subr.bf16.mxu0 0
    %1136 = vmatpush1.bf16.msra.mxu0 0
    %1137 = vmatprep.mubr.bf16.mxu0 0
    %1138 = vmatmul.mubr.bf16.gmra.mrb[0].mxu0 %v1033
    %v1139 = vpop.f32.mrb[0].mxu0
    %v1140 = vadd.f32 %v1055, %v1139
    %v1141 = vpop.f32.mrb[0].mxu0
    %v1142 = vpop.f32.mrb[0].mxu0
    %v1143 = vadd.f32 %v1055, %v1142
    %v1144 = vpop.f32.mrb[0].mxu0
    %1145 = vdwg.mxu0
    %v1146 = vpack.c.bf16 %v1143, %v1140
    %v1148 = vunpack.c.l.b16 %v1146
    %v1149 = vunpack.c.h.b16 %v1146
    %v1150 = vpack.c.b16 %v1148, %v1148
    %v1151 = vpack.c.b16 %v1149, %v1149
    %1154 = vst [vmem:[#allocation17] sm:$0xf] %v1150
    %1155 = vst [vmem:[#allocation17 + $0x4] sm:$0xf] %v1151
    // Predicated region
    $region106: #{tpu_custom_call.1} parent=1 // pred_check
      _
    $region107: #{tpu_custom_call.1} parent=1 // pred_check_branch
      %1157 = sbr.rel (0) target = $region109
    $region108: #{tpu_custom_call.1} parent=1 // pred_region
      %s1159 = ssub.s32 128, 128
      %1160 = vsyncadd [#allocation4], %s1159
      %s1161 = sshll.u32 [#allocation17], 4
      %s1162 = int_to_ptr.vmem [resolvable:$true] %s1161
      %1167 = dma.vmem_to_hbm [thread:$0]  %s1162, 128, %s17, [#allocation4], 64, 64, 4
    $region109: #{tpu_custom_call.1} parent=1 // pred_fallthru
      _
    // Predicated region
    $region110: #{tpu_custom_call.1} parent=1 // pred_check
      _
    $region111: #{tpu_custom_call.1} parent=1 // pred_check_branch
      %1169 = sbr.rel (0) target = $region113
    $region112: #{tpu_custom_call.1} parent=1 // pred_region
      %s1171 = ssub.s32 128, 128
      %1172 = vsyncadd [#allocation19], %s1171
      %s1173 = sshll.u32 [#allocation18], 4
      %s1174 = int_to_ptr.vmem [resolvable:$true] %s1173
      %1179 = dma.vmem_to_hbm [thread:$0]  %s1174, 128, %s18, [#allocation19], 64, 64, 4
    $region113: #{tpu_custom_call.1} parent=1 // pred_fallthru
      _
    // Predicated region
    $region114: #{tpu_custom_call.1} parent=1 // pred_check
      _
    $region115: #{tpu_custom_call.1} parent=1 // pred_check_branch
      %1181 = sbr.rel (0) target = $region117
    $region116: #{tpu_custom_call.1} parent=1 // pred_region
      %s1183 = ssub.s32 128, 128
      %1184 = vsyncadd [#allocation19], %s1183
      %s1185 = sshll.u32 [#allocation20], 4
      %s1186 = int_to_ptr.vmem [resolvable:$true] %s1185
      %1191 = dma.vmem_to_hbm [thread:$0]  %s1186, 128, %s19, [#allocation19], 64, 64, 4
    $region117: #{tpu_custom_call.1} parent=1 // pred_fallthru
      _
    // Predicated region
    $region118: #{tpu_custom_call.1} parent=1 // pred_check
      _
    $region119: #{tpu_custom_call.1} parent=1 // pred_check_branch
      %1193 = sbr.rel (0) target = $region121
    $region120: #{tpu_custom_call.1} parent=1 // pred_region
      %s1195 = ssub.s32 128, 128
      %1196 = vsyncadd [#allocation22], %s1195
      %s1197 = sshll.u32 [#allocation21], 4
      %s1198 = int_to_ptr.vmem [resolvable:$true] %s1197
      %1203 = dma.vmem_to_hbm [thread:$0]  %s1198, 128, %s20, [#allocation22], 64, 64, 4
    $region121: #{tpu_custom_call.1} parent=1 // pred_fallthru
      _
    // Predicated region
    $region122: #{tpu_custom_call.1} parent=1 // pred_check
      _
    $region123: #{tpu_custom_call.1} parent=1 // pred_check_branch
      %1205 = sbr.rel (0) target = $region125
    $region124: #{tpu_custom_call.1} parent=1 // pred_region
      %s1207 = ssub.s32 128, 128
      %1208 = vsyncadd [#allocation22], %s1207
      %s1209 = sshll.u32 [#allocation23], 4
      %s1210 = int_to_ptr.vmem [resolvable:$true] %s1209
      %1215 = dma.vmem_to_hbm [thread:$0]  %s1210, 128, %s21, [#allocation22], 64, 64, 4
    $region125: #{tpu_custom_call.1} parent=1 // pred_fallthru
      _
    // Predicated region
    $region126: #{tpu_custom_call.1} parent=1 // pred_check
      _
    $region127: #{tpu_custom_call.1} parent=1 // pred_check_branch
      %1217 = sbr.rel (0) target = $region129
    $region128: #{tpu_custom_call.1} parent=1 // pred_region
      %1218 = dma.done [#allocation4], 128
    $region129: #{tpu_custom_call.1} parent=1 // pred_fallthru
      _
    // Predicated region
    $region130: #{tpu_custom_call.1} parent=1 // pred_check
      _
    $region131: #{tpu_custom_call.1} parent=1 // pred_check_branch
      %1220 = sbr.rel (0) target = $region133
    $region132: #{tpu_custom_call.1} parent=1 // pred_region
      %1221 = dma.done [#allocation19], 128
    $region133: #{tpu_custom_call.1} parent=1 // pred_fallthru
      _
    // Predicated region
    $region134: #{tpu_custom_call.1} parent=1 // pred_check
      _
    $region135: #{tpu_custom_call.1} parent=1 // pred_check_branch
      %1223 = sbr.rel (0) target = $region137
    $region136: #{tpu_custom_call.1} parent=1 // pred_region
      %1224 = dma.done [#allocation19], 128
    $region137: #{tpu_custom_call.1} parent=1 // pred_fallthru
      _
    // Predicated region
    $region138: #{tpu_custom_call.1} parent=1 // pred_check
      _
    $region139: #{tpu_custom_call.1} parent=1 // pred_check_branch
      %1226 = sbr.rel (0) target = $region141
    $region140: #{tpu_custom_call.1} parent=1 // pred_region
      %1227 = dma.done [#allocation22], 128
    $region141: #{tpu_custom_call.1} parent=1 // pred_fallthru
      _
    // Predicated region
    $region142: #{tpu_custom_call.1} parent=1 // pred_check
      _
    $region143: #{tpu_custom_call.1} parent=1 // pred_check_branch
      %1229 = sbr.rel (0) target = $region145
    $region144: #{tpu_custom_call.1} parent=1 // pred_region
      %1230 = dma.done [#allocation22], 128
    $region145: #{tpu_custom_call.1} parent=1 // pred_fallthru
      _
    %1231 = vsyncpa [#allocation3], 1
    %1232 = vsyncpa [#allocation6], 1
    %1233 = vsyncpa [#allocation9], 1
    %1234 = vsyncpa [#allocation12], 1
    %1235 = vsyncpa [#allocation15], 1
    %1236 = vsyncpa [#allocation4], 1
    %1237 = vsyncpa [#allocation19], 1
    %1238 = vsyncpa [#allocation22], 1

// kernel: tpu_custom_call.1
$region0: #{tpu_custom_call.1}
  #allocation0 [shape = 'u32[]', space=smem, size = 0x4, offset = 0x4, fixed_abs, tag = 'smem constant byte address 0x4 - core index']
  #allocation1 [shape = 'u32[144,128]{1,0:T(1,128)}', space=vmem, size = 0x12000, scoped, tag = 'internal scratch']
  %s0 = inlined_call_operand.hbm [shape: bf16[16,128], index: 0, kind: input, shape index: {}]
  %s1 = inlined_call_operand.hbm [shape: bf16[128,128], index: 1, kind: input, shape index: {}]
  %s2 = inlined_call_operand.vmem [shape: f32[1,128], index: 2, kind: input, shape index: {}]
  %s3 = inlined_call_operand.hbm [shape: bf16[128,128], index: 3, kind: input, shape index: {}]
  %s4 = inlined_call_operand.vmem [shape: f32[1,128], index: 4, kind: input, shape index: {}]
  %s5 = inlined_call_operand.hbm [shape: bf16[128,128], index: 5, kind: input, shape index: {}]
  %s6 = inlined_call_operand.vmem [shape: f32[1,128], index: 6, kind: input, shape index: {}]
  %s7 = inlined_call_operand.hbm [shape: bf16[128,128], index: 7, kind: input, shape index: {}]
  %s8 = inlined_call_operand.vmem [shape: f32[1,128], index: 8, kind: input, shape index: {}]
  %s9 = inlined_call_operand.hbm [shape: bf16[128,128], index: 9, kind: input, shape index: {}]
  %s10 = inlined_call_operand.vmem [shape: f32[1,128], index: 10, kind: input, shape index: {}]
  %s11 = inlined_call_operand.hbm [shape: bf16[128,128], index: 11, kind: input, shape index: {}]
  %s12 = inlined_call_operand.vmem [shape: f32[1,128], index: 12, kind: input, shape index: {}]
  %s13 = inlined_call_operand.hbm [shape: bf16[128,128], index: 13, kind: input, shape index: {}]
  %s14 = inlined_call_operand.vmem [shape: f32[1,128], index: 14, kind: input, shape index: {}]
  %s15 = inlined_call_operand.hbm [shape: bf16[128,128], index: 15, kind: input, shape index: {}]
  %s16 = inlined_call_operand.vmem [shape: f32[1,128], index: 16, kind: input, shape index: {}]
  %s17 = inlined_call_operand.hbm [shape: bf16[16,128], index: 17, kind: output, shape index: {0}]
  %s18 = inlined_call_operand.hbm [shape: bf16[16,128], index: 18, kind: output, shape index: {1}]
  %s19 = inlined_call_operand.hbm [shape: bf16[16,128], index: 19, kind: output, shape index: {2}]
  %s20 = inlined_call_operand.hbm [shape: bf16[16,128], index: 20, kind: output, shape index: {3}]
  %s21 = inlined_call_operand.hbm [shape: bf16[16,128], index: 21, kind: output, shape index: {4}]
  %22 = xla_tuple %s17, %s18, %s19, %s20, %s21
  %s23 = sld [smem:[#allocation0]]
  $region146: #{tpu_custom_call.1} parent=0
    _
  %s25 = ssub.s32 1, %s23
  %s26 = scalar_select 0, %s25, %s23
  $region1: #{tpu_custom_call.1} parent=0
    #allocation2 [shape = 'u8[4096]{0}', space=vmem, size = 0x1000, scoped, tag = 'input window, operand 0, single buffered']
    #allocation3 [shape = 's32[1]{0}', space=sflag, size = 0x4, scoped, tag = 'scoped memory for tpu_custom_call.1']
    #allocation4 [shape = 's32[1]{0}', space=sflag, size = 0x4, scoped, tag = 'scoped memory for tpu_custom_call.1']
    #allocation5 [shape = 'u8[32768]{0}', space=vmem, size = 0x8000, scoped, tag = 'input window, operand 1, single buffered']
    #allocation6 [shape = 's32[1]{0}', space=sflag, size = 0x4, scoped, tag = 'scoped memory for tpu_custom_call.1']
    #allocation7 [shape = 'u8[32768]{0}', space=vmem, size = 0x8000, scoped, tag = 'input window, operand 3, single buffered']
    #allocation8 [shape = 'u8[32768]{0}', space=vmem, size = 0x8000, scoped, tag = 'input window, operand 5, single buffered']
    #allocation9 [shape = 's32[1]{0}', space=sflag, size = 0x4, scoped, tag = 'scoped memory for tpu_custom_call.1']
    #allocation10 [shape = 'u8[32768]{0}', space=vmem, size = 0x8000, scoped, tag = 'input window, operand 7, single buffered']
    #allocation11 [shape = 'u8[32768]{0}', space=vmem, size = 0x8000, scoped, tag = 'input window, operand 9, single buffered']
    #allocation12 [shape = 's32[1]{0}', space=sflag, size = 0x4, scoped, tag = 'scoped memory for tpu_custom_call.1']
    #allocation13 [shape = 'u8[32768]{0}', space=vmem, size = 0x8000, scoped, tag = 'input window, operand 11, single buffered']
    #allocation14 [shape = 'u8[32768]{0}', space=vmem, size = 0x8000, scoped, tag = 'input window, operand 13, single buffered']
    #allocation15 [shape = 's32[1]{0}', space=sflag, size = 0x4, scoped, tag = 'scoped memory for tpu_custom_call.1']
    #allocation16 [shape = 'u8[32768]{0}', space=vmem, size = 0x8000, scoped, tag = 'input window, operand 15, single buffered']
    #allocation17 [shape = 'u8[4096]{0}', space=vmem, size = 0x1000, scoped, tag = 'output window, operand 0, single buffered']
    #allocation18 [shape = 'u8[4096]{0}', space=vmem, size = 0x1000, scoped, tag = 'output window, operand 1, single buffered']
    #allocation19 [shape = 's32[1]{0}', space=sflag, size = 0x4, scoped, tag = 'scoped memory for tpu_custom_call.1']
    #allocation20 [shape = 'u8[4096]{0}', space=vmem, size = 0x1000, scoped, tag = 'output window, operand 2, single buffered']
    #allocation21 [shape = 'u8[4096]{0}', space=vmem, size = 0x1000, scoped, tag = 'output window, operand 3, single buffered']
    #allocation22 [shape = 's32[1]{0}', space=sflag, size = 0x4, scoped, tag = 'scoped memory for tpu_custom_call.1']
    #allocation23 [shape = 'u8[4096]{0}', space=vmem, size = 0x1000, scoped, tag = 'output window, operand 4, single buffered']
    %27 = vsyncpa [#allocation3], 0
    %28 = vsyncpa [#allocation6], 0
    %29 = vsyncpa [#allocation9], 0
    %30 = vsyncpa [#allocation12], 0
    %31 = vsyncpa [#allocation15], 0
    %32 = vsyncpa [#allocation4], 0
    %33 = vsyncpa [#allocation19], 0
    %34 = vsyncpa [#allocation22], 0
    // Predicated region
    $region2: #{tpu_custom_call.1} parent=1 // pred_check
      _
    $region3: #{tpu_custom_call.1} parent=1 // pred_check_branch
      %36 = sbr.rel (0) target = $region5
    $region4: #{tpu_custom_call.1} parent=1 // pred_region
      %s38 = ssub.s32 128, 128
      %39 = vsyncadd [#allocation3], %s38
      %s40 = sshll.u32 [#allocation2], 4
      %s41 = int_to_ptr.vmem [resolvable:$true] %s40
      %46 = dma.hbm_to_vmem [thread:$0]  %s0, 128, %s41, [#allocation3], 64, 64, 4
    $region5: #{tpu_custom_call.1} parent=1 // pred_fallthru
      _
    // Predicated region
    $region6: #{tpu_custom_call.1} parent=1 // pred_check
      _
    $region7: #{tpu_custom_call.1} parent=1 // pred_check_branch
      %48 = sbr.rel (0) target = $region9
    $region8: #{tpu_custom_call.1} parent=1 // pred_region
      %s50 = ssub.s32 1024, 1024
      %51 = vsyncadd [#allocation6], %s50
      %s52 = sshll.u32 [#allocation5], 4
      %s53 = int_to_ptr.vmem [resolvable:$true] %s52
      %58 = dma.hbm_to_vmem [thread:$0]  %s1, 1024, %s53, [#allocation6], 64, 64, 4
    $region9: #{tpu_custom_call.1} parent=1 // pred_fallthru
      _
    // Predicated region
    $region10: #{tpu_custom_call.1} parent=1 // pred_check
      _
    $region11: #{tpu_custom_call.1} parent=1 // pred_check_branch
      %60 = sbr.rel (0) target = $region13
    $region12: #{tpu_custom_call.1} parent=1 // pred_region
      _
    $region13: #{tpu_custom_call.1} parent=1 // pred_fallthru
      _
    // Predicated region
    $region14: #{tpu_custom_call.1} parent=1 // pred_check
      _
    $region15: #{tpu_custom_call.1} parent=1 // pred_check_branch
      %62 = sbr.rel (0) target = $region17
    $region16: #{tpu_custom_call.1} parent=1 // pred_region
      %s64 = ssub.s32 1024, 1024
      %65 = vsyncadd [#allocation6], %s64
      %s66 = sshll.u32 [#allocation7], 4
      %s67 = int_to_ptr.vmem [resolvable:$true] %s66
      %72 = dma.hbm_to_vmem [thread:$0]  %s3, 1024, %s67, [#allocation6], 64, 64, 4
    $region17: #{tpu_custom_call.1} parent=1 // pred_fallthru
      _
    // Predicated region
    $region18: #{tpu_custom_call.1} parent=1 // pred_check
      _
    $region19: #{tpu_custom_call.1} parent=1 // pred_check_branch
      %74 = sbr.rel (0) target = $region21
    $region20: #{tpu_custom_call.1} parent=1 // pred_region
      _
    $region21: #{tpu_custom_call.1} parent=1 // pred_fallthru
      _
    // Predicated region
    $region22: #{tpu_custom_call.1} parent=1 // pred_check
      _
    $region23: #{tpu_custom_call.1} parent=1 // pred_check_branch
      %76 = sbr.rel (0) target = $region25
    $region24: #{tpu_custom_call.1} parent=1 // pred_region
      %s78 = ssub.s32 1024, 1024
      %79 = vsyncadd [#allocation9], %s78
      %s80 = sshll.u32 [#allocation8], 4
      %s81 = int_to_ptr.vmem [resolvable:$true] %s80
      %86 = dma.hbm_to_vmem [thread:$0]  %s5, 1024, %s81, [#allocation9], 64, 64, 4
    $region25: #{tpu_custom_call.1} parent=1 // pred_fallthru
      _
    // Predicated region
    $region26: #{tpu_custom_call.1} parent=1 // pred_check
      _
    $region27: #{tpu_custom_call.1} parent=1 // pred_check_branch
      %88 = sbr.rel (0) target = $region29
    $region28: #{tpu_custom_call.1} parent=1 // pred_region
      _
    $region29: #{tpu_custom_call.1} parent=1 // pred_fallthru
      _
    // Predicated region
    $region30: #{tpu_custom_call.1} parent=1 // pred_check
      _
    $region31: #{tpu_custom_call.1} parent=1 // pred_check_branch
      %90 = sbr.rel (0) target = $region33
    $region32: #{tpu_custom_call.1} parent=1 // pred_region
      %s92 = ssub.s32 1024, 1024
      %93 = vsyncadd [#allocation9], %s92
      %s94 = sshll.u32 [#allocation10], 4
      %s95 = int_to_ptr.vmem [resolvable:$true] %s94
      %100 = dma.hbm_to_vmem [thread:$0]  %s7, 1024, %s95, [#allocation9], 64, 64, 4
    $region33: #{tpu_custom_call.1} parent=1 // pred_fallthru
      _
    // Predicated region
    $region34: #{tpu_custom_call.1} parent=1 // pred_check
      _
    $region35: #{tpu_custom_call.1} parent=1 // pred_check_branch
      %102 = sbr.rel (0) target = $region37
    $region36: #{tpu_custom_call.1} parent=1 // pred_region
      _
    $region37: #{tpu_custom_call.1} parent=1 // pred_fallthru
      _
    // Predicated region
    $region38: #{tpu_custom_call.1} parent=1 // pred_check
      _
    $region39: #{tpu_custom_call.1} parent=1 // pred_check_branch
      %104 = sbr.rel (0) target = $region41
    $region40: #{tpu_custom_call.1} parent=1 // pred_region
      %s106 = ssub.s32 1024, 1024
      %107 = vsyncadd [#allocation12], %s106
      %s108 = sshll.u32 [#allocation11], 4
      %s109 = int_to_ptr.vmem [resolvable:$true] %s108
      %114 = dma.hbm_to_vmem [thread:$0]  %s9, 1024, %s109, [#allocation12], 64, 64, 4
    $region41: #{tpu_custom_call.1} parent=1 // pred_fallthru
      _
    // Predicated region
    $region42: #{tpu_custom_call.1} parent=1 // pred_check
      _
    $region43: #{tpu_custom_call.1} parent=1 // pred_check_branch
      %116 = sbr.rel (0) target = $region45
    $region44: #{tpu_custom_call.1} parent=1 // pred_region
      _
    $region45: #{tpu_custom_call.1} parent=1 // pred_fallthru
      _
    // Predicated region
    $region46: #{tpu_custom_call.1} parent=1 // pred_check
      _
    $region47: #{tpu_custom_call.1} parent=1 // pred_check_branch
      %118 = sbr.rel (0) target = $region49
    $region48: #{tpu_custom_call.1} parent=1 // pred_region
      %s120 = ssub.s32 1024, 1024
      %121 = vsyncadd [#allocation12], %s120
      %s122 = sshll.u32 [#allocation13], 4
      %s123 = int_to_ptr.vmem [resolvable:$true] %s122
      %128 = dma.hbm_to_vmem [thread:$0]  %s11, 1024, %s123, [#allocation12], 64, 64, 4
    $region49: #{tpu_custom_call.1} parent=1 // pred_fallthru
      _
    // Predicated region
    $region50: #{tpu_custom_call.1} parent=1 // pred_check
      _
    $region51: #{tpu_custom_call.1} parent=1 // pred_check_branch
      %130 = sbr.rel (0) target = $region53
    $region52: #{tpu_custom_call.1} parent=1 // pred_region
      _
    $region53: #{tpu_custom_call.1} parent=1 // pred_fallthru
      _
    // Predicated region
    $region54: #{tpu_custom_call.1} parent=1 // pred_check
      _
    $region55: #{tpu_custom_call.1} parent=1 // pred_check_branch
      %132 = sbr.rel (0) target = $region57
    $region56: #{tpu_custom_call.1} parent=1 // pred_region
      %s134 = ssub.s32 1024, 1024
      %135 = vsyncadd [#allocation15], %s134
      %s136 = sshll.u32 [#allocation14], 4
      %s137 = int_to_ptr.vmem [resolvable:$true] %s136
      %142 = dma.hbm_to_vmem [thread:$0]  %s13, 1024, %s137, [#allocation15], 64, 64, 4
    $region57: #{tpu_custom_call.1} parent=1 // pred_fallthru
      _
    // Predicated region
    $region58: #{tpu_custom_call.1} parent=1 // pred_check
      _
    $region59: #{tpu_custom_call.1} parent=1 // pred_check_branch
      %144 = sbr.rel (0) target = $region61
    $region60: #{tpu_custom_call.1} parent=1 // pred_region
      _
    $region61: #{tpu_custom_call.1} parent=1 // pred_fallthru
      _
    // Predicated region
    $region62: #{tpu_custom_call.1} parent=1 // pred_check
      _
    $region63: #{tpu_custom_call.1} parent=1 // pred_check_branch
      %146 = sbr.rel (0) target = $region65
    $region64: #{tpu_custom_call.1} parent=1 // pred_region
      %s148 = ssub.s32 1024, 1024
      %149 = vsyncadd [#allocation15], %s148
      %s150 = sshll.u32 [#allocation16], 4
      %s151 = int_to_ptr.vmem [resolvable:$true] %s150
      %156 = dma.hbm_to_vmem [thread:$0]  %s15, 1024, %s151, [#allocation15], 64, 64, 4
    $region65: #{tpu_custom_call.1} parent=1 // pred_fallthru
      _
    // Predicated region
    $region66: #{tpu_custom_call.1} parent=1 // pred_check
      _
    $region67: #{tpu_custom_call.1} parent=1 // pred_check_branch
      %158 = sbr.rel (0) target = $region69
    $region68: #{tpu_custom_call.1} parent=1 // pred_region
      _
    $region69: #{tpu_custom_call.1} parent=1 // pred_fallthru
      _
    // Predicated region
    $region70: #{tpu_custom_call.1} parent=1 // pred_check
      _
    $region71: #{tpu_custom_call.1} parent=1 // pred_check_branch
      %160 = sbr.rel (0) target = $region73
    $region72: #{tpu_custom_call.1} parent=1 // pred_region
      %161 = dma.done [#allocation3], 128
    $region73: #{tpu_custom_call.1} parent=1 // pred_fallthru
      _
    // Predicated region
    $region74: #{tpu_custom_call.1} parent=1 // pred_check
      _
    $region75: #{tpu_custom_call.1} parent=1 // pred_check_branch
      %163 = sbr.rel (0) target = $region77
    $region76: #{tpu_custom_call.1} parent=1 // pred_region
      %164 = dma.done [#allocation6], 1024
    $region77: #{tpu_custom_call.1} parent=1 // pred_fallthru
      _
    // Predicated region
    $region78: #{tpu_custom_call.1} parent=1 // pred_check
      _
    $region79: #{tpu_custom_call.1} parent=1 // pred_check_branch
      %166 = sbr.rel (0) target = $region81
    $region80: #{tpu_custom_call.1} parent=1 // pred_region
      %167 = dma.done [#allocation6], 1024
    $region81: #{tpu_custom_call.1} parent=1 // pred_fallthru
      _
    // Predicated region
    $region82: #{tpu_custom_call.1} parent=1 // pred_check
      _
    $region83: #{tpu_custom_call.1} parent=1 // pred_check_branch
      %169 = sbr.rel (0) target = $region85
    $region84: #{tpu_custom_call.1} parent=1 // pred_region
      %170 = dma.done [#allocation9], 1024
    $region85: #{tpu_custom_call.1} parent=1 // pred_fallthru
      _
    // Predicated region
    $region86: #{tpu_custom_call.1} parent=1 // pred_check
      _
    $region87: #{tpu_custom_call.1} parent=1 // pred_check_branch
      %172 = sbr.rel (0) target = $region89
    $region88: #{tpu_custom_call.1} parent=1 // pred_region
      %173 = dma.done [#allocation9], 1024
    $region89: #{tpu_custom_call.1} parent=1 // pred_fallthru
      _
    // Predicated region
    $region90: #{tpu_custom_call.1} parent=1 // pred_check
      _
    $region91: #{tpu_custom_call.1} parent=1 // pred_check_branch
      %175 = sbr.rel (0) target = $region93
    $region92: #{tpu_custom_call.1} parent=1 // pred_region
      %176 = dma.done [#allocation12], 1024
    $region93: #{tpu_custom_call.1} parent=1 // pred_fallthru
      _
    // Predicated region
    $region94: #{tpu_custom_call.1} parent=1 // pred_check
      _
    $region95: #{tpu_custom_call.1} parent=1 // pred_check_branch
      %178 = sbr.rel (0) target = $region97
    $region96: #{tpu_custom_call.1} parent=1 // pred_region
      %179 = dma.done [#allocation12], 1024
    $region97: #{tpu_custom_call.1} parent=1 // pred_fallthru
      _
    // Predicated region
    $region98: #{tpu_custom_call.1} parent=1 // pred_check
      _
    $region99: #{tpu_custom_call.1} parent=1 // pred_check_branch
      %181 = sbr.rel (0) target = $region101
    $region100: #{tpu_custom_call.1} parent=1 // pred_region
      %182 = dma.done [#allocation15], 1024
    $region101: #{tpu_custom_call.1} parent=1 // pred_fallthru
      _
    // Predicated region
    $region102: #{tpu_custom_call.1} parent=1 // pred_check
      _
    $region103: #{tpu_custom_call.1} parent=1 // pred_check_branch
      %184 = sbr.rel (0) target = $region105
    $region104: #{tpu_custom_call.1} parent=1 // pred_region
      %185 = dma.done [#allocation15], 1024
    $region105: #{tpu_custom_call.1} parent=1 // pred_fallthru
      _
    %v187 = vld [vmem:[#allocation2] sm:$0xf]
    %v188 = vld [vmem:[#allocation2 + $0x4] sm:$0xf]
    %v189 = vld [vmem:[#allocation5] sm:$0xf]
    %v190 = vld [vmem:[#allocation5 + $0x4] sm:$0xf]
    %v191 = vld [vmem:[#allocation5 + $0x8] sm:$0xf]
    %v192 = vld [vmem:[#allocation5 + $0xc] sm:$0xf]
    %v193 = vld [vmem:[#allocation5 + $0x10] sm:$0xf]
    %v194 = vld [vmem:[#allocation5 + $0x14] sm:$0xf]
    %v195 = vld [vmem:[#allocation5 + $0x18] sm:$0xf]
    %v196 = vld [vmem:[#allocation5 + $0x1c] sm:$0xf]
    %v197 = vld [vmem:[#allocation5 + $0x20] sm:$0xf]
    %v198 = vld [vmem:[#allocation5 + $0x24] sm:$0xf]
    %v199 = vld [vmem:[#allocation5 + $0x28] sm:$0xf]
    %v200 = vld [vmem:[#allocation5 + $0x2c] sm:$0xf]
    %v201 = vld [vmem:[#allocation5 + $0x30] sm:$0xf]
    %v202 = vld [vmem:[#allocation5 + $0x34] sm:$0xf]
    %v203 = vld [vmem:[#allocation5 + $0x38] sm:$0xf]
    %v204 = vld [vmem:[#allocation5 + $0x3c] sm:$0xf]
    %v205 = vld [vmem:[%s2] sm:$0x1]
    %v207 = vlaneseq
    %v208 = vshrl.u32 %v207, 7
    %v209 = vsub.s32 0, %v208
    %v210 = vrot.slane %v205, %v209
    %v214 = vunpack.c.l.b16 %v187
    %v215 = vunpack.c.l.b16 %v188
    %v216 = vpack.c.b16 %v215, %v214
    %v234 = vunpack.c.l.b16 %v189
    %v235 = vunpack.c.l.b16 %v190
    %v236 = vunpack.c.l.b16 %v191
    %v237 = vunpack.c.l.b16 %v192
    %v238 = vunpack.c.l.b16 %v193
    %v239 = vunpack.c.l.b16 %v194
    %v240 = vunpack.c.l.b16 %v195
    %v241 = vunpack.c.l.b16 %v196
    %v242 = vunpack.c.l.b16 %v197
    %v243 = vunpack.c.l.b16 %v198
    %v244 = vunpack.c.l.b16 %v199
    %v245 = vunpack.c.l.b16 %v200
    %v246 = vunpack.c.l.b16 %v201
    %v247 = vunpack.c.l.b16 %v202
    %v248 = vunpack.c.l.b16 %v203
    %v249 = vunpack.c.l.b16 %v204
    %v250 = vpack.c.b16 %v235, %v234
    %v251 = vpack.c.b16 %v237, %v236
    %v252 = vpack.c.b16 %v239, %v238
    %v253 = vpack.c.b16 %v241, %v240
    %v254 = vpack.c.b16 %v243, %v242
    %v255 = vpack.c.b16 %v245, %v244
    %v256 = vpack.c.b16 %v247, %v246
    %v257 = vpack.c.b16 %v249, %v248
    %266 = vmatprep.subr.bf16.mxu0 0
    %267 = vmatpush1.bf16.msra.mxu0 %v250
    %268 = vmatprep.subr.bf16.mxu0 0
    %269 = vmatpush1.bf16.msra.mxu0 %v251
    %270 = vmatprep.subr.bf16.mxu0 0
    %271 = vmatpush1.bf16.msra.mxu0 %v252
    %272 = vmatprep.subr.bf16.mxu0 0
    %273 = vmatpush1.bf16.msra.mxu0 %v253
    %274 = vmatprep.subr.bf16.mxu0 0
    %275 = vmatpush1.bf16.msra.mxu0 %v254
    %276 = vmatprep.subr.bf16.mxu0 0
    %277 = vmatpush1.bf16.msra.mxu0 %v255
    %278 = vmatprep.subr.bf16.mxu0 0
    %279 = vmatpush1.bf16.msra.mxu0 %v256
    %280 = vmatprep.subr.bf16.mxu0 0
    %281 = vmatpush1.bf16.msra.mxu0 %v257
    %282 = vmatprep.subr.bf16.mxu0 0
    %283 = vmatpush1.bf16.msra.mxu0 0
    %284 = vmatprep.subr.bf16.mxu0 0
    %285 = vmatpush1.bf16.msra.mxu0 0
    %286 = vmatprep.subr.bf16.mxu0 0
    %287 = vmatpush1.bf16.msra.mxu0 0
    %288 = vmatprep.subr.bf16.mxu0 0
    %289 = vmatpush1.bf16.msra.mxu0 0
    %290 = vmatprep.subr.bf16.mxu0 0
    %291 = vmatpush1.bf16.msra.mxu0 0
    %292 = vmatprep.subr.bf16.mxu0 0
    %293 = vmatpush1.bf16.msra.mxu0 0
    %294 = vmatprep.subr.bf16.mxu0 0
    %295 = vmatpush1.bf16.msra.mxu0 0
    %296 = vmatprep.subr.bf16.mxu0 0
    %297 = vmatpush1.bf16.msra.mxu0 0
    %298 = vmatprep.mubr.bf16.mxu0 0
    %299 = vmatmul.mubr.bf16.gmra.mrb[0].mxu0 %v216
    %v300 = vpop.f32.mrb[0].mxu0
    %v301 = vadd.f32 %v210, %v300
    %v302 = vpop.f32.mrb[0].mxu0
    %v303 = vpop.f32.mrb[0].mxu0
    %v304 = vadd.f32 %v210, %v303
    %v305 = vpop.f32.mrb[0].mxu0
    %306 = vdwg.mxu0
    %v307 = vmax.f32 %v301, 0.0
    %v308 = vmax.f32 %v304, 0.0
    %v309 = vpack.c.bf16 %v308, %v307
    %v311 = vunpack.c.l.b16 %v309
    %v312 = vunpack.c.h.b16 %v309
    %v313 = vpack.c.b16 %v311, %v311
    %v314 = vpack.c.b16 %v312, %v312
    %317 = vst [vmem:[#allocation18] sm:$0xf] %v313
    %318 = vst [vmem:[#allocation18 + $0x4] sm:$0xf] %v314
    %v319 = vld [vmem:[#allocation7] sm:$0xf]
    %v320 = vld [vmem:[#allocation7 + $0x4] sm:$0xf]
    %v321 = vld [vmem:[#allocation7 + $0x8] sm:$0xf]
    %v322 = vld [vmem:[#allocation7 + $0xc] sm:$0xf]
    %v323 = vld [vmem:[#allocation7 + $0x10] sm:$0xf]
    %v324 = vld [vmem:[#allocation7 + $0x14] sm:$0xf]
    %v325 = vld [vmem:[#allocation7 + $0x18] sm:$0xf]
    %v326 = vld [vmem:[#allocation7 + $0x1c] sm:$0xf]
    %v327 = vld [vmem:[#allocation7 + $0x20] sm:$0xf]
    %v328 = vld [vmem:[#allocation7 + $0x24] sm:$0xf]
    %v329 = vld [vmem:[#allocation7 + $0x28] sm:$0xf]
    %v330 = vld [vmem:[#allocation7 + $0x2c] sm:$0xf]
    %v331 = vld [vmem:[#allocation7 + $0x30] sm:$0xf]
    %v332 = vld [vmem:[#allocation7 + $0x34] sm:$0xf]
    %v333 = vld [vmem:[#allocation7 + $0x38] sm:$0xf]
    %v334 = vld [vmem:[#allocation7 + $0x3c] sm:$0xf]
    %v335 = vld [vmem:[%s4] sm:$0x1]
    %v337 = vlaneseq
    %v338 = vshrl.u32 %v337, 7
    %v339 = vsub.s32 0, %v338
    %v340 = vrot.slane %v335, %v339
    %v358 = vunpack.c.l.b16 %v319
    %v359 = vunpack.c.l.b16 %v320
    %v360 = vunpack.c.l.b16 %v321
    %v361 = vunpack.c.l.b16 %v322
    %v362 = vunpack.c.l.b16 %v323
    %v363 = vunpack.c.l.b16 %v324
    %v364 = vunpack.c.l.b16 %v325
    %v365 = vunpack.c.l.b16 %v326
    %v366 = vunpack.c.l.b16 %v327
    %v367 = vunpack.c.l.b16 %v328
    %v368 = vunpack.c.l.b16 %v329
    %v369 = vunpack.c.l.b16 %v330
    %v370 = vunpack.c.l.b16 %v331
    %v371 = vunpack.c.l.b16 %v332
    %v372 = vunpack.c.l.b16 %v333
    %v373 = vunpack.c.l.b16 %v334
    %v374 = vpack.c.b16 %v359, %v358
    %v375 = vpack.c.b16 %v361, %v360
    %v376 = vpack.c.b16 %v363, %v362
    %v377 = vpack.c.b16 %v365, %v364
    %v378 = vpack.c.b16 %v367, %v366
    %v379 = vpack.c.b16 %v369, %v368
    %v380 = vpack.c.b16 %v371, %v370
    %v381 = vpack.c.b16 %v373, %v372
    %390 = vmatprep.subr.bf16.mxu0 0
    %391 = vmatpush1.bf16.msra.mxu0 %v374
    %392 = vmatprep.subr.bf16.mxu0 0
    %393 = vmatpush1.bf16.msra.mxu0 %v375
    %394 = vmatprep.subr.bf16.mxu0 0
    %395 = vmatpush1.bf16.msra.mxu0 %v376
    %396 = vmatprep.subr.bf16.mxu0 0
    %397 = vmatpush1.bf16.msra.mxu0 %v377
    %398 = vmatprep.subr.bf16.mxu0 0
    %399 = vmatpush1.bf16.msra.mxu0 %v378
    %400 = vmatprep.subr.bf16.mxu0 0
    %401 = vmatpush1.bf16.msra.mxu0 %v379
    %402 = vmatprep.subr.bf16.mxu0 0
    %403 = vmatpush1.bf16.msra.mxu0 %v380
    %404 = vmatprep.subr.bf16.mxu0 0
    %405 = vmatpush1.bf16.msra.mxu0 %v381
    %406 = vmatprep.subr.bf16.mxu0 0
    %407 = vmatpush1.bf16.msra.mxu0 0
    %408 = vmatprep.subr.bf16.mxu0 0
    %409 = vmatpush1.bf16.msra.mxu0 0
    %410 = vmatprep.subr.bf16.mxu0 0
    %411 = vmatpush1.bf16.msra.mxu0 0
    %412 = vmatprep.subr.bf16.mxu0 0
    %413 = vmatpush1.bf16.msra.mxu0 0
    %414 = vmatprep.subr.bf16.mxu0 0
    %415 = vmatpush1.bf16.msra.mxu0 0
    %416 = vmatprep.subr.bf16.mxu0 0
    %417 = vmatpush1.bf16.msra.mxu0 0
    %418 = vmatprep.subr.bf16.mxu0 0
    %419 = vmatpush1.bf16.msra.mxu0 0
    %420 = vmatprep.subr.bf16.mxu0 0
    %421 = vmatpush1.bf16.msra.mxu0 0
    %422 = vmatprep.mubr.bf16.mxu0 0
    %423 = vmatmul.mubr.bf16.gmra.mrb[0].mxu0 %v309
    %v424 = vpop.f32.mrb[0].mxu0
    %v425 = vadd.f32 %v340, %v424
    %v426 = vpop.f32.mrb[0].mxu0
    %v427 = vpop.f32.mrb[0].mxu0
    %v428 = vadd.f32 %v340, %v427
    %v429 = vpop.f32.mrb[0].mxu0
    %430 = vdwg.mxu0
    %v431 = vmax.f32 %v425, 0.0
    %v432 = vmax.f32 %v428, 0.0
    %v433 = vpack.c.bf16 %v432, %v431
    %v435 = vunpack.c.l.b16 %v433
    %v436 = vunpack.c.h.b16 %v433
    %v437 = vpack.c.b16 %v435, %v435
    %v438 = vpack.c.b16 %v436, %v436
    %441 = vst [vmem:[#allocation20] sm:$0xf] %v437
    %442 = vst [vmem:[#allocation20 + $0x4] sm:$0xf] %v438
    %v443 = vld [vmem:[#allocation8] sm:$0xf]
    %v444 = vld [vmem:[#allocation8 + $0x4] sm:$0xf]
    %v445 = vld [vmem:[#allocation8 + $0x8] sm:$0xf]
    %v446 = vld [vmem:[#allocation8 + $0xc] sm:$0xf]
    %v447 = vld [vmem:[#allocation8 + $0x10] sm:$0xf]
    %v448 = vld [vmem:[#allocation8 + $0x14] sm:$0xf]
    %v449 = vld [vmem:[#allocation8 + $0x18] sm:$0xf]
    %v450 = vld [vmem:[#allocation8 + $0x1c] sm:$0xf]
    %v451 = vld [vmem:[#allocation8 + $0x20] sm:$0xf]
    %v452 = vld [vmem:[#allocation8 + $0x24] sm:$0xf]
    %v453 = vld [vmem:[#allocation8 + $0x28] sm:$0xf]
    %v454 = vld [vmem:[#allocation8 + $0x2c] sm:$0xf]
    %v455 = vld [vmem:[#allocation8 + $0x30] sm:$0xf]
    %v456 = vld [vmem:[#allocation8 + $0x34] sm:$0xf]
    %v457 = vld [vmem:[#allocation8 + $0x38] sm:$0xf]
    %v458 = vld [vmem:[#allocation8 + $0x3c] sm:$0xf]
    %v459 = vld [vmem:[%s6] sm:$0x1]
    %v461 = vlaneseq
    %v462 = vshrl.u32 %v461, 7
    %v463 = vsub.s32 0, %v462
    %v464 = vrot.slane %v459, %v463
    %v482 = vunpack.c.l.b16 %v443
    %v483 = vunpack.c.l.b16 %v444
    %v484 = vunpack.c.l.b16 %v445
    %v485 = vunpack.c.l.b16 %v446
    %v486 = vunpack.c.l.b16 %v447
    %v487 = vunpack.c.l.b16 %v448
    %v488 = vunpack.c.l.b16 %v449
    %v489 = vunpack.c.l.b16 %v450
    %v490 = vunpack.c.l.b16 %v451
    %v491 = vunpack.c.l.b16 %v452
    %v492 = vunpack.c.l.b16 %v453
    %v493 = vunpack.c.l.b16 %v454
    %v494 = vunpack.c.l.b16 %v455
    %v495 = vunpack.c.l.b16 %v456
    %v496 = vunpack.c.l.b16 %v457
    %v497 = vunpack.c.l.b16 %v458
    %v498 = vpack.c.b16 %v483, %v482
    %v499 = vpack.c.b16 %v485, %v484
    %v500 = vpack.c.b16 %v487, %v486
    %v501 = vpack.c.b16 %v489, %v488
    %v502 = vpack.c.b16 %v491, %v490
    %v503 = vpack.c.b16 %v493, %v492
    %v504 = vpack.c.b16 %v495, %v494
    %v505 = vpack.c.b16 %v497, %v496
    %514 = vmatprep.subr.bf16.mxu0 0
    %515 = vmatpush1.bf16.msra.mxu0 %v498
    %516 = vmatprep.subr.bf16.mxu0 0
    %517 = vmatpush1.bf16.msra.mxu0 %v499
    %518 = vmatprep.subr.bf16.mxu0 0
    %519 = vmatpush1.bf16.msra.mxu0 %v500
    %520 = vmatprep.subr.bf16.mxu0 0
    %521 = vmatpush1.bf16.msra.mxu0 %v501
    %522 = vmatprep.subr.bf16.mxu0 0
    %523 = vmatpush1.bf16.msra.mxu0 %v502
    %524 = vmatprep.subr.bf16.mxu0 0
    %525 = vmatpush1.bf16.msra.mxu0 %v503
    %526 = vmatprep.subr.bf16.mxu0 0
    %527 = vmatpush1.bf16.msra.mxu0 %v504
    %528 = vmatprep.subr.bf16.mxu0 0
    %529 = vmatpush1.bf16.msra.mxu0 %v505
    %530 = vmatprep.subr.bf16.mxu0 0
    %531 = vmatpush1.bf16.msra.mxu0 0
    %532 = vmatprep.subr.bf16.mxu0 0
    %533 = vmatpush1.bf16.msra.mxu0 0
    %534 = vmatprep.subr.bf16.mxu0 0
    %535 = vmatpush1.bf16.msra.mxu0 0
    %536 = vmatprep.subr.bf16.mxu0 0
    %537 = vmatpush1.bf16.msra.mxu0 0
    %538 = vmatprep.subr.bf16.mxu0 0
    %539 = vmatpush1.bf16.msra.mxu0 0
    %540 = vmatprep.subr.bf16.mxu0 0
    %541 = vmatpush1.bf16.msra.mxu0 0
    %542 = vmatprep.subr.bf16.mxu0 0
    %543 = vmatpush1.bf16.msra.mxu0 0
    %544 = vmatprep.subr.bf16.mxu0 0
    %545 = vmatpush1.bf16.msra.mxu0 0
    %546 = vmatprep.mubr.bf16.mxu0 0
    %547 = vmatmul.mubr.bf16.gmra.mrb[0].mxu0 %v433
    %v548 = vpop.f32.mrb[0].mxu0
    %v549 = vadd.f32 %v464, %v548
    %v550 = vpop.f32.mrb[0].mxu0
    %v551 = vpop.f32.mrb[0].mxu0
    %v552 = vadd.f32 %v464, %v551
    %v553 = vpop.f32.mrb[0].mxu0
    %554 = vdwg.mxu0
    %v555 = vmax.f32 %v549, 0.0
    %v556 = vmax.f32 %v552, 0.0
    %v557 = vpack.c.bf16 %v556, %v555
    %v559 = vunpack.c.l.b16 %v557
    %v560 = vunpack.c.h.b16 %v557
    %v561 = vpack.c.b16 %v559, %v559
    %v562 = vpack.c.b16 %v560, %v560
    %565 = vst [vmem:[#allocation21] sm:$0xf] %v561
    %566 = vst [vmem:[#allocation21 + $0x4] sm:$0xf] %v562
    %v567 = vld [vmem:[#allocation10] sm:$0xf]
    %v568 = vld [vmem:[#allocation10 + $0x4] sm:$0xf]
    %v569 = vld [vmem:[#allocation10 + $0x8] sm:$0xf]
    %v570 = vld [vmem:[#allocation10 + $0xc] sm:$0xf]
    %v571 = vld [vmem:[#allocation10 + $0x10] sm:$0xf]
    %v572 = vld [vmem:[#allocation10 + $0x14] sm:$0xf]
    %v573 = vld [vmem:[#allocation10 + $0x18] sm:$0xf]
    %v574 = vld [vmem:[#allocation10 + $0x1c] sm:$0xf]
    %v575 = vld [vmem:[#allocation10 + $0x20] sm:$0xf]
    %v576 = vld [vmem:[#allocation10 + $0x24] sm:$0xf]
    %v577 = vld [vmem:[#allocation10 + $0x28] sm:$0xf]
    %v578 = vld [vmem:[#allocation10 + $0x2c] sm:$0xf]
    %v579 = vld [vmem:[#allocation10 + $0x30] sm:$0xf]
    %v580 = vld [vmem:[#allocation10 + $0x34] sm:$0xf]
    %v581 = vld [vmem:[#allocation10 + $0x38] sm:$0xf]
    %v582 = vld [vmem:[#allocation10 + $0x3c] sm:$0xf]
    %v583 = vld [vmem:[%s8] sm:$0x1]
    %v585 = vlaneseq
    %v586 = vshrl.u32 %v585, 7
    %v587 = vsub.s32 0, %v586
    %v588 = vrot.slane %v583, %v587
    %v606 = vunpack.c.l.b16 %v567
    %v607 = vunpack.c.l.b16 %v568
    %v608 = vunpack.c.l.b16 %v569
    %v609 = vunpack.c.l.b16 %v570
    %v610 = vunpack.c.l.b16 %v571
    %v611 = vunpack.c.l.b16 %v572
    %v612 = vunpack.c.l.b16 %v573
    %v613 = vunpack.c.l.b16 %v574
    %v614 = vunpack.c.l.b16 %v575
    %v615 = vunpack.c.l.b16 %v576
    %v616 = vunpack.c.l.b16 %v577
    %v617 = vunpack.c.l.b16 %v578
    %v618 = vunpack.c.l.b16 %v579
    %v619 = vunpack.c.l.b16 %v580
    %v620 = vunpack.c.l.b16 %v581
    %v621 = vunpack.c.l.b16 %v582
    %v622 = vpack.c.b16 %v607, %v606
    %v623 = vpack.c.b16 %v609, %v608
    %v624 = vpack.c.b16 %v611, %v610
    %v625 = vpack.c.b16 %v613, %v612
    %v626 = vpack.c.b16 %v615, %v614
    %v627 = vpack.c.b16 %v617, %v616
    %v628 = vpack.c.b16 %v619, %v618
    %v629 = vpack.c.b16 %v621, %v620
    %638 = vmatprep.subr.bf16.mxu0 0
    %639 = vmatpush1.bf16.msra.mxu0 %v622
    %640 = vmatprep.subr.bf16.mxu0 0
    %641 = vmatpush1.bf16.msra.mxu0 %v623
    %642 = vmatprep.subr.bf16.mxu0 0
    %643 = vmatpush1.bf16.msra.mxu0 %v624
    %644 = vmatprep.subr.bf16.mxu0 0
    %645 = vmatpush1.bf16.msra.mxu0 %v625
    %646 = vmatprep.subr.bf16.mxu0 0
    %647 = vmatpush1.bf16.msra.mxu0 %v626
    %648 = vmatprep.subr.bf16.mxu0 0
    %649 = vmatpush1.bf16.msra.mxu0 %v627
    %650 = vmatprep.subr.bf16.mxu0 0
    %651 = vmatpush1.bf16.msra.mxu0 %v628
    %652 = vmatprep.subr.bf16.mxu0 0
    %653 = vmatpush1.bf16.msra.mxu0 %v629
    %654 = vmatprep.subr.bf16.mxu0 0
    %655 = vmatpush1.bf16.msra.mxu0 0
    %656 = vmatprep.subr.bf16.mxu0 0
    %657 = vmatpush1.bf16.msra.mxu0 0
    %658 = vmatprep.subr.bf16.mxu0 0
    %659 = vmatpush1.bf16.msra.mxu0 0
    %660 = vmatprep.subr.bf16.mxu0 0
    %661 = vmatpush1.bf16.msra.mxu0 0
    %662 = vmatprep.subr.bf16.mxu0 0
    %663 = vmatpush1.bf16.msra.mxu0 0
    %664 = vmatprep.subr.bf16.mxu0 0
    %665 = vmatpush1.bf16.msra.mxu0 0
    %666 = vmatprep.subr.bf16.mxu0 0
    %667 = vmatpush1.bf16.msra.mxu0 0
    %668 = vmatprep.subr.bf16.mxu0 0
    %669 = vmatpush1.bf16.msra.mxu0 0
    %670 = vmatprep.mubr.bf16.mxu0 0
    %671 = vmatmul.mubr.bf16.gmra.mrb[0].mxu0 %v557
    %v672 = vpop.f32.mrb[0].mxu0
    %v673 = vadd.f32 %v588, %v672
    %v674 = vpop.f32.mrb[0].mxu0
    %v675 = vpop.f32.mrb[0].mxu0
    %v676 = vadd.f32 %v588, %v675
    %v677 = vpop.f32.mrb[0].mxu0
    %678 = vdwg.mxu0
    %v679 = vpack.c.bf16 %v676, %v673
    %v681 = vunpack.c.l.b16 %v679
    %v682 = vunpack.c.h.b16 %v679
    %v683 = vpack.c.b16 %v681, %v681
    %v684 = vpack.c.b16 %v682, %v682
    %687 = vst [vmem:[#allocation23] sm:$0xf] %v683
    %688 = vst [vmem:[#allocation23 + $0x4] sm:$0xf] %v684
    %v689 = vld [vmem:[#allocation11] sm:$0xf]
    %v690 = vld [vmem:[#allocation11 + $0x4] sm:$0xf]
    %v691 = vld [vmem:[#allocation11 + $0x8] sm:$0xf]
    %v692 = vld [vmem:[#allocation11 + $0xc] sm:$0xf]
    %v693 = vld [vmem:[#allocation11 + $0x10] sm:$0xf]
    %v694 = vld [vmem:[#allocation11 + $0x14] sm:$0xf]
    %v695 = vld [vmem:[#allocation11 + $0x18] sm:$0xf]
    %v696 = vld [vmem:[#allocation11 + $0x1c] sm:$0xf]
    %v697 = vld [vmem:[#allocation11 + $0x20] sm:$0xf]
    %v698 = vld [vmem:[#allocation11 + $0x24] sm:$0xf]
    %v699 = vld [vmem:[#allocation11 + $0x28] sm:$0xf]
    %v700 = vld [vmem:[#allocation11 + $0x2c] sm:$0xf]
    %v701 = vld [vmem:[#allocation11 + $0x30] sm:$0xf]
    %v702 = vld [vmem:[#allocation11 + $0x34] sm:$0xf]
    %v703 = vld [vmem:[#allocation11 + $0x38] sm:$0xf]
    %v704 = vld [vmem:[#allocation11 + $0x3c] sm:$0xf]
    %v705 = vld [vmem:[%s10] sm:$0x1]
    %v707 = vlaneseq
    %v708 = vshrl.u32 %v707, 7
    %v709 = vsub.s32 0, %v708
    %v710 = vrot.slane %v705, %v709
    %v728 = vunpack.c.l.b16 %v689
    %v729 = vunpack.c.l.b16 %v690
    %v730 = vunpack.c.l.b16 %v691
    %v731 = vunpack.c.l.b16 %v692
    %v732 = vunpack.c.l.b16 %v693
    %v733 = vunpack.c.l.b16 %v694
    %v734 = vunpack.c.l.b16 %v695
    %v735 = vunpack.c.l.b16 %v696
    %v736 = vunpack.c.l.b16 %v697
    %v737 = vunpack.c.l.b16 %v698
    %v738 = vunpack.c.l.b16 %v699
    %v739 = vunpack.c.l.b16 %v700
    %v740 = vunpack.c.l.b16 %v701
    %v741 = vunpack.c.l.b16 %v702
    %v742 = vunpack.c.l.b16 %v703
    %v743 = vunpack.c.l.b16 %v704
    %v744 = vpack.c.b16 %v729, %v728
    %v745 = vpack.c.b16 %v731, %v730
    %v746 = vpack.c.b16 %v733, %v732
    %v747 = vpack.c.b16 %v735, %v734
    %v748 = vpack.c.b16 %v737, %v736
    %v749 = vpack.c.b16 %v739, %v738
    %v750 = vpack.c.b16 %v741, %v740
    %v751 = vpack.c.b16 %v743, %v742
    %760 = vmatprep.subr.bf16.mxu0 0
    %761 = vmatpush1.bf16.msra.mxu0 %v744
    %762 = vmatprep.subr.bf16.mxu0 0
    %763 = vmatpush1.bf16.msra.mxu0 %v745
    %764 = vmatprep.subr.bf16.mxu0 0
    %765 = vmatpush1.bf16.msra.mxu0 %v746
    %766 = vmatprep.subr.bf16.mxu0 0
    %767 = vmatpush1.bf16.msra.mxu0 %v747
    %768 = vmatprep.subr.bf16.mxu0 0
    %769 = vmatpush1.bf16.msra.mxu0 %v748
    %770 = vmatprep.subr.bf16.mxu0 0
    %771 = vmatpush1.bf16.msra.mxu0 %v749
    %772 = vmatprep.subr.bf16.mxu0 0
    %773 = vmatpush1.bf16.msra.mxu0 %v750
    %774 = vmatprep.subr.bf16.mxu0 0
    %775 = vmatpush1.bf16.msra.mxu0 %v751
    %776 = vmatprep.subr.bf16.mxu0 0
    %777 = vmatpush1.bf16.msra.mxu0 0
    %778 = vmatprep.subr.bf16.mxu0 0
    %779 = vmatpush1.bf16.msra.mxu0 0
    %780 = vmatprep.subr.bf16.mxu0 0
    %781 = vmatpush1.bf16.msra.mxu0 0
    %782 = vmatprep.subr.bf16.mxu0 0
    %783 = vmatpush1.bf16.msra.mxu0 0
    %784 = vmatprep.subr.bf16.mxu0 0
    %785 = vmatpush1.bf16.msra.mxu0 0
    %786 = vmatprep.subr.bf16.mxu0 0
    %787 = vmatpush1.bf16.msra.mxu0 0
    %788 = vmatprep.subr.bf16.mxu0 0
    %789 = vmatpush1.bf16.msra.mxu0 0
    %790 = vmatprep.subr.bf16.mxu0 0
    %791 = vmatpush1.bf16.msra.mxu0 0
    %792 = vmatprep.mubr.bf16.mxu0 0
    %793 = vmatmul.mubr.bf16.gmra.mrb[0].mxu0 %v679
    %v794 = vpop.f32.mrb[0].mxu0
    %v795 = vadd.f32 %v710, %v794
    %v796 = vpop.f32.mrb[0].mxu0
    %v797 = vpop.f32.mrb[0].mxu0
    %v798 = vadd.f32 %v710, %v797
    %v799 = vpop.f32.mrb[0].mxu0
    %800 = vdwg.mxu0
    %v801 = vmax.f32 %v795, 0.0
    %v802 = vmax.f32 %v798, 0.0
    %v803 = vpack.c.bf16 %v802, %v801
    %v804 = vld [vmem:[#allocation13] sm:$0xf]
    %v805 = vld [vmem:[#allocation13 + $0x4] sm:$0xf]
    %v806 = vld [vmem:[#allocation13 + $0x8] sm:$0xf]
    %v807 = vld [vmem:[#allocation13 + $0xc] sm:$0xf]
    %v808 = vld [vmem:[#allocation13 + $0x10] sm:$0xf]
    %v809 = vld [vmem:[#allocation13 + $0x14] sm:$0xf]
    %v810 = vld [vmem:[#allocation13 + $0x18] sm:$0xf]
    %v811 = vld [vmem:[#allocation13 + $0x1c] sm:$0xf]
    %v812 = vld [vmem:[#allocation13 + $0x20] sm:$0xf]
    %v813 = vld [vmem:[#allocation13 + $0x24] sm:$0xf]
    %v814 = vld [vmem:[#allocation13 + $0x28] sm:$0xf]
    %v815 = vld [vmem:[#allocation13 + $0x2c] sm:$0xf]
    %v816 = vld [vmem:[#allocation13 + $0x30] sm:$0xf]
    %v817 = vld [vmem:[#allocation13 + $0x34] sm:$0xf]
    %v818 = vld [vmem:[#allocation13 + $0x38] sm:$0xf]
    %v819 = vld [vmem:[#allocation13 + $0x3c] sm:$0xf]
    %v820 = vld [vmem:[%s12] sm:$0x1]
    %v822 = vlaneseq
    %v823 = vshrl.u32 %v822, 7
    %v824 = vsub.s32 0, %v823
    %v825 = vrot.slane %v820, %v824
    %v843 = vunpack.c.l.b16 %v804
    %v844 = vunpack.c.l.b16 %v805
    %v845 = vunpack.c.l.b16 %v806
    %v846 = vunpack.c.l.b16 %v807
    %v847 = vunpack.c.l.b16 %v808
    %v848 = vunpack.c.l.b16 %v809
    %v849 = vunpack.c.l.b16 %v810
    %v850 = vunpack.c.l.b16 %v811
    %v851 = vunpack.c.l.b16 %v812
    %v852 = vunpack.c.l.b16 %v813
    %v853 = vunpack.c.l.b16 %v814
    %v854 = vunpack.c.l.b16 %v815
    %v855 = vunpack.c.l.b16 %v816
    %v856 = vunpack.c.l.b16 %v817
    %v857 = vunpack.c.l.b16 %v818
    %v858 = vunpack.c.l.b16 %v819
    %v859 = vpack.c.b16 %v844, %v843
    %v860 = vpack.c.b16 %v846, %v845
    %v861 = vpack.c.b16 %v848, %v847
    %v862 = vpack.c.b16 %v850, %v849
    %v863 = vpack.c.b16 %v852, %v851
    %v864 = vpack.c.b16 %v854, %v853
    %v865 = vpack.c.b16 %v856, %v855
    %v866 = vpack.c.b16 %v858, %v857
    %875 = vmatprep.subr.bf16.mxu0 0
    %876 = vmatpush1.bf16.msra.mxu0 %v859
    %877 = vmatprep.subr.bf16.mxu0 0
    %878 = vmatpush1.bf16.msra.mxu0 %v860
    %879 = vmatprep.subr.bf16.mxu0 0
    %880 = vmatpush1.bf16.msra.mxu0 %v861
    %881 = vmatprep.subr.bf16.mxu0 0
    %882 = vmatpush1.bf16.msra.mxu0 %v862
    %883 = vmatprep.subr.bf16.mxu0 0
    %884 = vmatpush1.bf16.msra.mxu0 %v863
    %885 = vmatprep.subr.bf16.mxu0 0
    %886 = vmatpush1.bf16.msra.mxu0 %v864
    %887 = vmatprep.subr.bf16.mxu0 0
    %888 = vmatpush1.bf16.msra.mxu0 %v865
    %889 = vmatprep.subr.bf16.mxu0 0
    %890 = vmatpush1.bf16.msra.mxu0 %v866
    %891 = vmatprep.subr.bf16.mxu0 0
    %892 = vmatpush1.bf16.msra.mxu0 0
    %893 = vmatprep.subr.bf16.mxu0 0
    %894 = vmatpush1.bf16.msra.mxu0 0
    %895 = vmatprep.subr.bf16.mxu0 0
    %896 = vmatpush1.bf16.msra.mxu0 0
    %897 = vmatprep.subr.bf16.mxu0 0
    %898 = vmatpush1.bf16.msra.mxu0 0
    %899 = vmatprep.subr.bf16.mxu0 0
    %900 = vmatpush1.bf16.msra.mxu0 0
    %901 = vmatprep.subr.bf16.mxu0 0
    %902 = vmatpush1.bf16.msra.mxu0 0
    %903 = vmatprep.subr.bf16.mxu0 0
    %904 = vmatpush1.bf16.msra.mxu0 0
    %905 = vmatprep.subr.bf16.mxu0 0
    %906 = vmatpush1.bf16.msra.mxu0 0
    %907 = vmatprep.mubr.bf16.mxu0 0
    %908 = vmatmul.mubr.bf16.gmra.mrb[0].mxu0 %v803
    %v909 = vpop.f32.mrb[0].mxu0
    %v910 = vadd.f32 %v825, %v909
    %v911 = vpop.f32.mrb[0].mxu0
    %v912 = vpop.f32.mrb[0].mxu0
    %v913 = vadd.f32 %v825, %v912
    %v914 = vpop.f32.mrb[0].mxu0
    %915 = vdwg.mxu0
    %v916 = vmax.f32 %v910, 0.0
    %v917 = vmax.f32 %v913, 0.0
    %v918 = vpack.c.bf16 %v917, %v916
    %v919 = vld [vmem:[#allocation14] sm:$0xf]
    %v920 = vld [vmem:[#allocation14 + $0x4] sm:$0xf]
    %v921 = vld [vmem:[#allocation14 + $0x8] sm:$0xf]
    %v922 = vld [vmem:[#allocation14 + $0xc] sm:$0xf]
    %v923 = vld [vmem:[#allocation14 + $0x10] sm:$0xf]
    %v924 = vld [vmem:[#allocation14 + $0x14] sm:$0xf]
    %v925 = vld [vmem:[#allocation14 + $0x18] sm:$0xf]
    %v926 = vld [vmem:[#allocation14 + $0x1c] sm:$0xf]
    %v927 = vld [vmem:[#allocation14 + $0x20] sm:$0xf]
    %v928 = vld [vmem:[#allocation14 + $0x24] sm:$0xf]
    %v929 = vld [vmem:[#allocation14 + $0x28] sm:$0xf]
    %v930 = vld [vmem:[#allocation14 + $0x2c] sm:$0xf]
    %v931 = vld [vmem:[#allocation14 + $0x30] sm:$0xf]
    %v932 = vld [vmem:[#allocation14 + $0x34] sm:$0xf]
    %v933 = vld [vmem:[#allocation14 + $0x38] sm:$0xf]
    %v934 = vld [vmem:[#allocation14 + $0x3c] sm:$0xf]
    %v935 = vld [vmem:[%s14] sm:$0x1]
    %v937 = vlaneseq
    %v938 = vshrl.u32 %v937, 7
    %v939 = vsub.s32 0, %v938
    %v940 = vrot.slane %v935, %v939
    %v958 = vunpack.c.l.b16 %v919
    %v959 = vunpack.c.l.b16 %v920
    %v960 = vunpack.c.l.b16 %v921
    %v961 = vunpack.c.l.b16 %v922
    %v962 = vunpack.c.l.b16 %v923
    %v963 = vunpack.c.l.b16 %v924
    %v964 = vunpack.c.l.b16 %v925
    %v965 = vunpack.c.l.b16 %v926
    %v966 = vunpack.c.l.b16 %v927
    %v967 = vunpack.c.l.b16 %v928
    %v968 = vunpack.c.l.b16 %v929
    %v969 = vunpack.c.l.b16 %v930
    %v970 = vunpack.c.l.b16 %v931
    %v971 = vunpack.c.l.b16 %v932
    %v972 = vunpack.c.l.b16 %v933
    %v973 = vunpack.c.l.b16 %v934
    %v974 = vpack.c.b16 %v959, %v958
    %v975 = vpack.c.b16 %v961, %v960
    %v976 = vpack.c.b16 %v963, %v962
    %v977 = vpack.c.b16 %v965, %v964
    %v978 = vpack.c.b16 %v967, %v966
    %v979 = vpack.c.b16 %v969, %v968
    %v980 = vpack.c.b16 %v971, %v970
    %v981 = vpack.c.b16 %v973, %v972
    %990 = vmatprep.subr.bf16.mxu0 0
    %991 = vmatpush1.bf16.msra.mxu0 %v974
    %992 = vmatprep.subr.bf16.mxu0 0
    %993 = vmatpush1.bf16.msra.mxu0 %v975
    %994 = vmatprep.subr.bf16.mxu0 0
    %995 = vmatpush1.bf16.msra.mxu0 %v976
    %996 = vmatprep.subr.bf16.mxu0 0
    %997 = vmatpush1.bf16.msra.mxu0 %v977
    %998 = vmatprep.subr.bf16.mxu0 0
    %999 = vmatpush1.bf16.msra.mxu0 %v978
    %1000 = vmatprep.subr.bf16.mxu0 0
    %1001 = vmatpush1.bf16.msra.mxu0 %v979
    %1002 = vmatprep.subr.bf16.mxu0 0
    %1003 = vmatpush1.bf16.msra.mxu0 %v980
    %1004 = vmatprep.subr.bf16.mxu0 0
    %1005 = vmatpush1.bf16.msra.mxu0 %v981
    %1006 = vmatprep.subr.bf16.mxu0 0
    %1007 = vmatpush1.bf16.msra.mxu0 0
    %1008 = vmatprep.subr.bf16.mxu0 0
    %1009 = vmatpush1.bf16.msra.mxu0 0
    %1010 = vmatprep.subr.bf16.mxu0 0
    %1011 = vmatpush1.bf16.msra.mxu0 0
    %1012 = vmatprep.subr.bf16.mxu0 0
    %1013 = vmatpush1.bf16.msra.mxu0 0
    %1014 = vmatprep.subr.bf16.mxu0 0
    %1015 = vmatpush1.bf16.msra.mxu0 0
    %1016 = vmatprep.subr.bf16.mxu0 0
    %1017 = vmatpush1.bf16.msra.mxu0 0
    %1018 = vmatprep.subr.bf16.mxu0 0
    %1019 = vmatpush1.bf16.msra.mxu0 0
    %1020 = vmatprep.subr.bf16.mxu0 0
    %1021 = vmatpush1.bf16.msra.mxu0 0
    %1022 = vmatprep.mubr.bf16.mxu0 0
    %1023 = vmatmul.mubr.bf16.gmra.mrb[0].mxu0 %v918
    %v1024 = vpop.f32.mrb[0].mxu0
    %v1025 = vadd.f32 %v940, %v1024
    %v1026 = vpop.f32.mrb[0].mxu0
    %v1027 = vpop.f32.mrb[0].mxu0
    %v1028 = vadd.f32 %v940, %v1027
    %v1029 = vpop.f32.mrb[0].mxu0
    %1030 = vdwg.mxu0
    %v1031 = vmax.f32 %v1025, 0.0
    %v1032 = vmax.f32 %v1028, 0.0
    %v1033 = vpack.c.bf16 %v1032, %v1031
    %v1034 = vld [vmem:[#allocation16] sm:$0xf]
    %v1035 = vld [vmem:[#allocation16 + $0x4] sm:$0xf]
    %v1036 = vld [vmem:[#allocation16 + $0x8] sm:$0xf]
    %v1037 = vld [vmem:[#allocation16 + $0xc] sm:$0xf]
    %v1038 = vld [vmem:[#allocation16 + $0x10] sm:$0xf]
    %v1039 = vld [vmem:[#allocation16 + $0x14] sm:$0xf]
    %v1040 = vld [vmem:[#allocation16 + $0x18] sm:$0xf]
    %v1041 = vld [vmem:[#allocation16 + $0x1c] sm:$0xf]
    %v1042 = vld [vmem:[#allocation16 + $0x20] sm:$0xf]
    %v1043 = vld [vmem:[#allocation16 + $0x24] sm:$0xf]
    %v1044 = vld [vmem:[#allocation16 + $0x28] sm:$0xf]
    %v1045 = vld [vmem:[#allocation16 + $0x2c] sm:$0xf]
    %v1046 = vld [vmem:[#allocation16 + $0x30] sm:$0xf]
    %v1047 = vld [vmem:[#allocation16 + $0x34] sm:$0xf]
    %v1048 = vld [vmem:[#allocation16 + $0x38] sm:$0xf]
    %v1049 = vld [vmem:[#allocation16 + $0x3c] sm:$0xf]
    %v1050 = vld [vmem:[%s16] sm:$0x1]
    %v1052 = vlaneseq
    %v1053 = vshrl.u32 %v1052, 7
    %v1054 = vsub.s32 0, %v1053
    %v1055 = vrot.slane %v1050, %v1054
    %v1073 = vunpack.c.l.b16 %v1034
    %v1074 = vunpack.c.l.b16 %v1035
    %v1075 = vunpack.c.l.b16 %v1036
    %v1076 = vunpack.c.l.b16 %v1037
    %v1077 = vunpack.c.l.b16 %v1038
    %v1078 = vunpack.c.l.b16 %v1039
    %v1079 = vunpack.c.l.b16 %v1040
    %v1080 = vunpack.c.l.b16 %v1041
    %v1081 = vunpack.c.l.b16 %v1042
    %v1082 = vunpack.c.l.b16 %v1043
    %v1083 = vunpack.c.l.b16 %v1044
    %v1084 = vunpack.c.l.b16 %v1045
    %v1085 = vunpack.c.l.b16 %v1046
    %v1086 = vunpack.c.l.b16 %v1047
    %v1087 = vunpack.c.l.b16 %v1048
    %v1088 = vunpack.c.l.b16 %v1049
    %v1089 = vpack.c.b16 %v1074, %v1073
    %v1090 = vpack.c.b16 %v1076, %v1075
    %v1091 = vpack.c.b16 %v1078, %v1077
    %v1092 = vpack.c.b16 %v1080, %v1079
    %v1093 = vpack.c.b16 %v1082, %v1081
    %v1094 = vpack.c.b16 %v1084, %v1083
    %v1095 = vpack.c.b16 %v1086, %v1085
    %v1096 = vpack.c.b16 %v1088, %v1087
    %1105 = vmatprep.subr.bf16.mxu0 0
    %1106 = vmatpush1.bf16.msra.mxu0 %v1089
    %1107 = vmatprep.subr.bf16.mxu0 0
    %1108 = vmatpush1.bf16.msra.mxu0 %v1090
    %1109 = vmatprep.subr.bf16.mxu0 0
    %1110 = vmatpush1.bf16.msra.mxu0 %v1091
    %1111 = vmatprep.subr.bf16.mxu0 0
    %1112 = vmatpush1.bf16.msra.mxu0 %v1092
    %1113 = vmatprep.subr.bf16.mxu0 0
    %1114 = vmatpush1.bf16.msra.mxu0 %v1093
    %1115 = vmatprep.subr.bf16.mxu0 0
    %1116 = vmatpush1.bf16.msra.mxu0 %v1094
    %1117 = vmatprep.subr.bf16.mxu0 0
    %1118 = vmatpush1.bf16.msra.mxu0 %v1095
    %1119 = vmatprep.subr.bf16.mxu0 0
    %1120 = vmatpush1.bf16.msra.mxu0 %v1096
    %1121 = vmatprep.subr.bf16.mxu0 0
    %1122 = vmatpush1.bf16.msra.mxu0 0
    %1123 = vmatprep.subr.bf16.mxu0 0
    %1124 = vmatpush1.bf16.msra.mxu0 0
    %1125 = vmatprep.subr.bf16.mxu0 0
    %1126 = vmatpush1.bf16.msra.mxu0 0
    %1127 = vmatprep.subr.bf16.mxu0 0
    %1128 = vmatpush1.bf16.msra.mxu0 0
    %1129 = vmatprep.subr.bf16.mxu0 0
    %1130 = vmatpush1.bf16.msra.mxu0 0
    %1131 = vmatprep.subr.bf16.mxu0 0
    %1132 = vmatpush1.bf16.msra.mxu0 0
    %1133 = vmatprep.subr.bf16.mxu0 0
    %1134 = vmatpush1.bf16.msra.mxu0 0
    %1135 = vmatprep.subr.bf16.mxu0 0
    %1136 = vmatpush1.bf16.msra.mxu0 0
    %1137 = vmatprep.mubr.bf16.mxu0 0
    %1138 = vmatmul.mubr.bf16.gmra.mrb[0].mxu0 %v1033
    %v1139 = vpop.f32.mrb[0].mxu0
    %v1140 = vadd.f32 %v1055, %v1139
    %v1141 = vpop.f32.mrb[0].mxu0
    %v1142 = vpop.f32.mrb[0].mxu0
    %v1143 = vadd.f32 %v1055, %v1142
    %v1144 = vpop.f32.mrb[0].mxu0
    %1145 = vdwg.mxu0
    %v1146 = vpack.c.bf16 %v1143, %v1140
    %v1148 = vunpack.c.l.b16 %v1146
    %v1149 = vunpack.c.h.b16 %v1146
    %v1150 = vpack.c.b16 %v1148, %v1148
    %v1151 = vpack.c.b16 %v1149, %v1149
    %1154 = vst [vmem:[#allocation17] sm:$0xf] %v1150
    %1155 = vst [vmem:[#allocation17 + $0x4] sm:$0xf] %v1151
    // Predicated region
    $region106: #{tpu_custom_call.1} parent=1 // pred_check
      _
    $region107: #{tpu_custom_call.1} parent=1 // pred_check_branch
      %1157 = sbr.rel (0) target = $region109
    $region108: #{tpu_custom_call.1} parent=1 // pred_region
      %s1159 = ssub.s32 128, 128
      %1160 = vsyncadd [#allocation4], %s1159
      %s1161 = sshll.u32 [#allocation17], 4
      %s1162 = int_to_ptr.vmem [resolvable:$true] %s1161
      %1167 = dma.vmem_to_hbm [thread:$0]  %s1162, 128, %s17, [#allocation4], 64, 64, 4
    $region109: #{tpu_custom_call.1} parent=1 // pred_fallthru
      _
    // Predicated region
    $region110: #{tpu_custom_call.1} parent=1 // pred_check
      _
    $region111: #{tpu_custom_call.1} parent=1 // pred_check_branch
      %1169 = sbr.rel (0) target = $region113
    $region112: #{tpu_custom_call.1} parent=1 // pred_region
      %s1171 = ssub.s32 128, 128
      %1172 = vsyncadd [#allocation19], %s1171
      %s1173 = sshll.u32 [#allocation18], 4
      %s1174 = int_to_ptr.vmem [resolvable:$true] %s1173
      %1179 = dma.vmem_to_hbm [thread:$0]  %s1174, 128, %s18, [#allocation19], 64, 64, 4
    $region113: #{tpu_custom_call.1} parent=1 // pred_fallthru
      _
    // Predicated region
    $region114: #{tpu_custom_call.1} parent=1 // pred_check
      _
    $region115: #{tpu_custom_call.1} parent=1 // pred_check_branch
      %1181 = sbr.rel (0) target = $region117
    $region116: #{tpu_custom_call.1} parent=1 // pred_region
      %s1183 = ssub.s32 128, 128
      %1184 = vsyncadd [#allocation19], %s1183
      %s1185 = sshll.u32 [#allocation20], 4
      %s1186 = int_to_ptr.vmem [resolvable:$true] %s1185
      %1191 = dma.vmem_to_hbm [thread:$0]  %s1186, 128, %s19, [#allocation19], 64, 64, 4
    $region117: #{tpu_custom_call.1} parent=1 // pred_fallthru
      _
    // Predicated region
    $region118: #{tpu_custom_call.1} parent=1 // pred_check
      _
    $region119: #{tpu_custom_call.1} parent=1 // pred_check_branch
      %1193 = sbr.rel (0) target = $region121
    $region120: #{tpu_custom_call.1} parent=1 // pred_region
      %s1195 = ssub.s32 128, 128
      %1196 = vsyncadd [#allocation22], %s1195
      %s1197 = sshll.u32 [#allocation21], 4
      %s1198 = int_to_ptr.vmem [resolvable:$true] %s1197
      %1203 = dma.vmem_to_hbm [thread:$0]  %s1198, 128, %s20, [#allocation22], 64, 64, 4
    $region121: #{tpu_custom_call.1} parent=1 // pred_fallthru
      _
    // Predicated region
    $region122: #{tpu_custom_call.1} parent=1 // pred_check
      _
    $region123: #{tpu_custom_call.1} parent=1 // pred_check_branch
      %1205 = sbr.rel (0) target = $region125
    $region124: #{tpu_custom_call.1} parent=1 // pred_region
      %s1207 = ssub.s32 128, 128
      %1208 = vsyncadd [#allocation22], %s1207
      %s1209 = sshll.u32 [#allocation23], 4
      %s1210 = int_to_ptr.vmem [resolvable:$true] %s1209
      %1215 = dma.vmem_to_hbm [thread:$0]  %s1210, 128, %s21, [#allocation22], 64, 64, 4
    $region125: #{tpu_custom_call.1} parent=1 // pred_fallthru
      _
    // Predicated region
    $region126: #{tpu_custom_call.1} parent=1 // pred_check
      _
    $region127: #{tpu_custom_call.1} parent=1 // pred_check_branch
      %1217 = sbr.rel (0) target = $region129
    $region128: #{tpu_custom_call.1} parent=1 // pred_region
      %1218 = dma.done [#allocation4], 128
    $region129: #{tpu_custom_call.1} parent=1 // pred_fallthru
      _
    // Predicated region
    $region130: #{tpu_custom_call.1} parent=1 // pred_check
      _
    $region131: #{tpu_custom_call.1} parent=1 // pred_check_branch
      %1220 = sbr.rel (0) target = $region133
    $region132: #{tpu_custom_call.1} parent=1 // pred_region
      %1221 = dma.done [#allocation19], 128
    $region133: #{tpu_custom_call.1} parent=1 // pred_fallthru
      _
    // Predicated region
    $region134: #{tpu_custom_call.1} parent=1 // pred_check
      _
    $region135: #{tpu_custom_call.1} parent=1 // pred_check_branch
      %1223 = sbr.rel (0) target = $region137
    $region136: #{tpu_custom_call.1} parent=1 // pred_region
      %1224 = dma.done [#allocation19], 128
    $region137: #{tpu_custom_call.1} parent=1 // pred_fallthru
      _
    // Predicated region
    $region138: #{tpu_custom_call.1} parent=1 // pred_check
      _
    $region139: #{tpu_custom_call.1} parent=1 // pred_check_branch
      %1226 = sbr.rel (0) target = $region141
    $region140: #{tpu_custom_call.1} parent=1 // pred_region
      %1227 = dma.done [#allocation22], 128
    $region141: #{tpu_custom_call.1} parent=1 // pred_fallthru
      _
    // Predicated region
    $region142: #{tpu_custom_call.1} parent=1 // pred_check
      _
    $region143: #{tpu_custom_call.1} parent=1 // pred_check_branch
      %1229 = sbr.rel (0) target = $region145
    $region144: #{tpu_custom_call.1} parent=1 // pred_region
      %1230 = dma.done [#allocation22], 128
    $region145: #{tpu_custom_call.1} parent=1 // pred_fallthru
      _
    %1231 = vsyncpa [#allocation3], 1
    %1232 = vsyncpa [#allocation6], 1
    %1233 = vsyncpa [#allocation9], 1
    %1234 = vsyncpa [#allocation12], 1
    %1235 = vsyncpa [#allocation15], 1
    %1236 = vsyncpa [#allocation4], 1
    %1237 = vsyncpa [#allocation19], 1
    %1238 = vsyncpa [#allocation22], 1

</llo_original>
